<compile_context>
chip_gen: v6e
topology: v6e:2x2x1
jax: 0.10.0
libtpu: 0.0.40
codegen_flags: <defaults>
</compile_context>

<pallas_src>
import jax
import jax.numpy as jnp
from jax.experimental import pallas as pl
from jax.experimental.pallas import tpu as pltpu

MID = 128            # out_channels of conv_local1 / conv_local2 (fixed in the module)
FUSED = 2 * MID      # 256 fused output channels


def _vmem_limit_bytes():
    """~85% of this generation's VMEM, capped at 112 MiB; conservative fallback."""
    try:
        cap = pltpu.get_tpu_info().vmem_capacity_bytes
        return int(min(cap * 0.85, 112 * 1024 * 1024))
    except Exception:
        return 32 * 1024 * 1024


_VMEM_LIMIT = _vmem_limit_bytes()


def _context_aware_kernel(x_ref, wf_ref, bias_ref, wrw_ref, brw_ref, o_ref,
                          xp_ref, im_ref, acc_ref):
    # Block shapes:
    #   x_ref   : (1, H, W, Cin)     f32   NHWC input (full precision, used for the gate)
    #   wf_ref  : (5, 5*Cin, 256)    bf16  fused conv weights, index [dy, dx*Cin+cin, cout]
    #   bias_ref: (1, 256)           f32   fused conv bias [b1 | b2]
    #   wrw_ref : (1, 256)           f32   conv_rw weight row [wrw1 | wrw2]
    #   brw_ref : (1, 1)             f32   conv_rw bias
    #   o_ref   : (1, H*W, Cin)      f32   gated output (flattened spatial)
    #   xp_ref  : (H+4, W+4, Cin)    bf16  scratch: input with 2-pixel zero halo
    #   im_ref  : ((H+4)*W, 5*Cin)   bf16  scratch: single im2col buffer (dx-concat)
    #   acc_ref : (H*W, 256)         f32   scratch: conv accumulator
    Hp, Wp, Cin = xp_ref.shape
    H, W = Hp - 4, Wp - 4
    HW = H * W

    x = x_ref[0]                                           # (H, W, Cin) f32

    # --- Padded input: zero ONLY the 4 halo strips, then write the interior ---
    xp_ref[0:2, :, :] = jnp.zeros((2, Wp, Cin), jnp.bfloat16)
    xp_ref[Hp - 2:Hp, :, :] = jnp.zeros((2, Wp, Cin), jnp.bfloat16)
    xp_ref[2:2 + H, 0:2, :] = jnp.zeros((H, 2, Cin), jnp.bfloat16)
    xp_ref[2:2 + H, Wp - 2:Wp, :] = jnp.zeros((H, 2, Cin), jnp.bfloat16)
    xp_ref[2:2 + H, 2:2 + W, :] = x.astype(jnp.bfloat16)

    # --- Single im2col buffer: 5 dx-shifted views concatenated on channels ----
    #     im[a*W + w, dx*Cin + c] == xp[a, dx + w, c]
    xp = xp_ref[...]                                       # (Hp, Wp, Cin) bf16
    im_ref[...] = jnp.concatenate(
        [xp[:, dx:dx + W, :] for dx in range(5)], axis=-1
    ).reshape(Hp * W, 5 * Cin)

    # --- Fused 3x3 + 5x5 conv: 5 matmuls with K = 5*Cin into a VMEM scratch ---
    #     Row slice dy*W : dy*W + H*W of the im2col buffer is the dy-shifted patch.
    acc_ref[...] = bias_ref[...] + jnp.dot(
        im_ref[0:HW, :], wf_ref[0], preferred_element_type=jnp.float32)
    for dy in range(1, 5):
        acc_ref[...] += jnp.dot(
            im_ref[dy * W:dy * W + HW, :], wf_ref[dy],
            preferred_element_type=jnp.float32)

    # --- ReLU, conv_rw (1x1, 256 -> 1) as a lane reduction, sigmoid via EUP ---
    b = jnp.maximum(acc_ref[...], 0.0)                      # (H*W, 256) f32
    s = jnp.sum(b * wrw_ref[...], axis=-1, keepdims=True) + brw_ref[...]
    y = pl.reciprocal(1.0 + jnp.exp(-s), approx=True)       # sigmoid, (H*W, 1) f32

    # --- out = x * y.repeat(1, C, 1, 1): channel-broadcast gate on the f32 x --
    o_ref[0] = x.reshape(HW, Cin) * y


@jax.jit
def context_aware_forward(x_nchw, params):
    """x_nchw: (N, C, H, W) float32. Returns (N, C, H, W) float32."""
    N, C, H, W = x_nchw.shape
    x_nhwc = jnp.transpose(x_nchw, (0, 2, 3, 1)).astype(jnp.float32)   # NHWC, f32

    # Fuse conv weights host-side: zero-pad w1 (3x3/pad1) into the 5x5/pad2
    # footprint, concat with w2 on Cout, flatten (dx, cin) -> dx*Cin + cin so it
    # matches the kernel's im2col channel order.
    w1_5 = jnp.pad(params["w1"], ((1, 1), (1, 1), (0, 0), (0, 0)))
    wf = jnp.concatenate([w1_5, params["w2"]], axis=-1)                # (5,5,C,256)
    wf5 = wf.reshape(5, 5 * C, FUSED).astype(jnp.bfloat16)             # (5,5*C,256)
    bias = jnp.concatenate([params["b1"], params["b2"]], axis=-1).astype(jnp.float32)
    wrw = jnp.concatenate([params["wrw1"], params["wrw2"]], axis=0)
    wrw = wrw.reshape(1, FUSED).astype(jnp.float32)                    # (1,256)
    brw = params["brw"].reshape(1, 1).astype(jnp.float32)              # (1,1)

    HW, Hp, Wp = H * W, H + 4, W + 4
    flops = N * HW * (2 * 25 * C * FUSED + 3 * FUSED + 2 * C + 8)
    bytes_accessed = (
        2 * N * HW * C * 4                                 # x in + out (f32, HBM)
        + 25 * C * FUSED * 2 + (2 * FUSED + 1) * 4         # weights / bias / wrw / brw
        + N * (Hp * Wp * C * 2                             # in-kernel: pad-buffer build
               + 2 * Hp * W * 5 * C * 2                    #   im2col write + read
               + 3 * HW * FUSED * 4))                      #   f32 accumulator traffic

    out_flat = pl.pallas_call(
        _context_aware_kernel,
        out_shape=jax.ShapeDtypeStruct((N, HW, C), jnp.float32),
        grid_spec=pltpu.PrefetchScalarGridSpec(
            num_scalar_prefetch=0,
            grid=(N,),
            in_specs=[
                pl.BlockSpec((1, H, W, C), lambda n: (n, 0, 0, 0)),
                # TODO(synk): on v7x, single-buffer the constant operands below
                # (pipeline_mode=pl.Buffered(1)) to halve their VMEM footprint.
                pl.BlockSpec((5, 5 * C, FUSED), lambda n: (0, 0, 0)),
                pl.BlockSpec((1, FUSED), lambda n: (0, 0)),
                pl.BlockSpec((1, FUSED), lambda n: (0, 0)),
                pl.BlockSpec((1, 1), lambda n: (0, 0)),
            ],
            out_specs=pl.BlockSpec((1, HW, C), lambda n: (n, 0, 0)),
            scratch_shapes=[
                pltpu.VMEM((Hp, Wp, C), jnp.bfloat16),         # padded input
                pltpu.VMEM((Hp * W, 5 * C), jnp.bfloat16),     # im2col buffer
                pltpu.VMEM((HW, FUSED), jnp.float32),          # conv accumulator
            ]),
        compiler_params=pltpu.CompilerParams(
            dimension_semantics=("parallel",),
            vmem_limit_bytes=_VMEM_LIMIT),
        cost_estimate=pl.CostEstimate(
            flops=flops, transcendentals=N * HW, bytes_accessed=bytes_accessed),
    )(x_nhwc, wf5, bias, wrw, brw)

    out_nhwc = out_flat.reshape(N, H, W, C)        # free reshape
    return jnp.transpose(out_nhwc, (0, 3, 1, 2))   # back to NCHW


def init_params(key, channel):
    """Deterministic synthetic parameters matching the module's shapes."""
    ks = jax.random.split(key, 7)
    return {
        # conv_local1: Conv2d(channel, 128, k=3) -> HWIO (3, 3, Cin, 128)
        "w1": 0.1 * jax.random.normal(ks[0], (3, 3, channel, MID), jnp.float32),
        "b1": 0.1 * jax.random.normal(ks[1], (1, MID), jnp.float32),
        # conv_local2: Conv2d(channel, 128, k=5) -> HWIO (5, 5, Cin, 128)
        "w2": 0.1 * jax.random.normal(ks[2], (5, 5, channel, MID), jnp.float32),
        "b2": 0.1 * jax.random.normal(ks[3], (1, MID), jnp.float32),
        # conv_rw: Conv2d(256, 1, k=1) split into the two 128-channel halves
        "wrw1": 0.1 * jax.random.normal(ks[4], (MID, 1), jnp.float32),
        "wrw2": 0.1 * jax.random.normal(ks[5], (MID, 1), jnp.float32),
        "brw": 0.1 * jax.random.normal(ks[6], (1, 1), jnp.float32),
    }


@jax.jit
def reference_forward(x_nchw, p):
    """Pure-JAX (XLA conv, f32) reference of the same forward pass, for validation."""
    x = jnp.transpose(x_nchw, (0, 2, 3, 1)).astype(jnp.float32)
    dn = ("NHWC", "HWIO", "NHWC")
    b1 = jax.nn.relu(
        jax.lax.conv_general_dilated(x, p["w1"], (1, 1), "SAME",
                                     dimension_numbers=dn) + p["b1"])
    b2 = jax.nn.relu(
        jax.lax.conv_general_dilated(x, p["w2"], (1, 1), "SAME",
                                     dimension_numbers=dn) + p["b2"])
    y = jnp.concatenate([b1, b2], axis=-1)
    wrw = jnp.concatenate([p["wrw1"], p["wrw2"]], axis=0).reshape(1, 1, FUSED, 1)
    y = jax.lax.conv_general_dilated(y, wrw, (1, 1), "SAME",
                                     dimension_numbers=dn) + p["brw"]
    y = jax.nn.sigmoid(y)
    out = x * y  # broadcast over channels == .repeat(1, C, 1, 1)
    return jnp.transpose(out, (0, 3, 1, 2))


if __name__ == "__main__":
    N, C, H, W = 2, 4, 16, 16  # small shapes; C plays the role of `channel`
    key = jax.random.PRNGKey(0)
    kx, kp = jax.random.split(key)
    x = jax.random.normal(kx, (N, C, H, W), jnp.float32)
    params = init_params(kp, C)

    out = jax.block_until_ready(context_aware_forward(x, params))
    ref = jax.block_until_ready(reference_forward(x, params))

    assert out.shape == (N, C, H, W)
    max_err = float(jnp.max(jnp.abs(out - ref)))
    # Conv path runs in bf16 (f32 accumulation); the gate multiply uses the
    # original f32 x, so only the conv/sigmoid chain carries bf16 rounding.
    assert jnp.allclose(out, ref, atol=2e-2, rtol=2e-2), max_err

    print("KERNEL_OK")
</pallas_src>

<mosaic_0001>
module attributes {stable_mosaic.version = 11 : i64} {
  func.func @_context_aware_kernel(%arg0: i32, %arg1: memref<1x16x16x4xf32, #tpu.memory_space<vmem>>, %arg2: memref<5x20x256xbf16, #tpu.memory_space<vmem>>, %arg3: memref<1x256xf32, #tpu.memory_space<vmem>>, %arg4: memref<1x256xf32, #tpu.memory_space<vmem>>, %arg5: memref<1x1xf32, #tpu.memory_space<vmem>>, %arg6: memref<1x256x4xf32, #tpu.memory_space<vmem>>, %arg7: memref<20x20x4xbf16, #tpu.memory_space<vmem>>, %arg8: memref<320x20xbf16, #tpu.memory_space<vmem>>, %arg9: memref<256x256xf32, #tpu.memory_space<vmem>>) attributes {dimension_semantics = [#tpu.dimension_semantics<parallel>], iteration_bounds = array<i64: 2>, scalar_prefetch = 0 : i64, scratch_operands = 3 : i64, tpu.core_type = #tpu.core_type<tc>, window_params = [{transform_indices = @transform_0, window_bounds = array<i64: 1, 16, 16, 4>}, {pipeline_mode = #tpu.pipeline_mode<synchronous>, transform_indices = @transform_1, window_bounds = array<i64: 5, 20, 256>}, {pipeline_mode = #tpu.pipeline_mode<synchronous>, transform_indices = @transform_2, window_bounds = array<i64: 1, 256>}, {pipeline_mode = #tpu.pipeline_mode<synchronous>, transform_indices = @transform_3, window_bounds = array<i64: 1, 256>}, {pipeline_mode = #tpu.pipeline_mode<synchronous>, transform_indices = @transform_4, window_bounds = array<i64: 1, 1>}, {transform_indices = @transform_5, window_bounds = array<i64: 1, 256, 4>}]} {
    %c0 = arith.constant 0 : index
    %c0_0 = arith.constant 0 : index
    %c0_1 = arith.constant 0 : index
    %c0_2 = arith.constant 0 : index
    %0 = vector.load %arg1[%c0, %c0_0, %c0_1, %c0_2] : memref<1x16x16x4xf32, #tpu.memory_space<vmem>>, vector<1x16x16x4xf32>
    %1 = vector.shape_cast %0 : vector<1x16x16x4xf32> to vector<16x16x4xf32>
    %cst = arith.constant 0.000000e+00 : bf16
    %2 = vector.broadcast %cst : bf16 to vector<2x20x4xbf16>
    %c0_3 = arith.constant 0 : index
    %c0_4 = arith.constant 0 : index
    %c0_5 = arith.constant 0 : index
    %3 = vector.load %arg7[%c0_3, %c0_4, %c0_5] : memref<20x20x4xbf16, #tpu.memory_space<vmem>>, vector<2x20x4xbf16>
    tpu.vector_store %arg7[%c0_3, %c0_4, %c0_5], %2 {strides = array<i32>} : memref<20x20x4xbf16, #tpu.memory_space<vmem>>, vector<2x20x4xbf16>,
    %cst_6 = arith.constant 0.000000e+00 : bf16
    %4 = vector.broadcast %cst_6 : bf16 to vector<2x20x4xbf16>
    %c18 = arith.constant 18 : index
    %c0_7 = arith.constant 0 : index
    %c0_8 = arith.constant 0 : index
    %5 = vector.load %arg7[%c18, %c0_7, %c0_8] : memref<20x20x4xbf16, #tpu.memory_space<vmem>>, vector<2x20x4xbf16>
    tpu.vector_store %arg7[%c18, %c0_7, %c0_8], %4 {strides = array<i32>} : memref<20x20x4xbf16, #tpu.memory_space<vmem>>, vector<2x20x4xbf16>,
    %cst_9 = arith.constant 0.000000e+00 : bf16
    %6 = vector.broadcast %cst_9 : bf16 to vector<16x2x4xbf16>
    %c2 = arith.constant 2 : index
    %c0_10 = arith.constant 0 : index
    %c0_11 = arith.constant 0 : index
    %7 = vector.load %arg7[%c2, %c0_10, %c0_11] : memref<20x20x4xbf16, #tpu.memory_space<vmem>>, vector<16x2x4xbf16>
    tpu.vector_store %arg7[%c2, %c0_10, %c0_11], %6 {strides = array<i32>} : memref<20x20x4xbf16, #tpu.memory_space<vmem>>, vector<16x2x4xbf16>,
    %cst_12 = arith.constant 0.000000e+00 : bf16
    %8 = vector.broadcast %cst_12 : bf16 to vector<16x2x4xbf16>
    %c2_13 = arith.constant 2 : index
    %c18_14 = arith.constant 18 : index
    %c0_15 = arith.constant 0 : index
    %9 = vector.load %arg7[%c2_13, %c18_14, %c0_15] : memref<20x20x4xbf16, #tpu.memory_space<vmem>>, vector<16x2x4xbf16>
    tpu.vector_store %arg7[%c2_13, %c18_14, %c0_15], %8 {strides = array<i32>} : memref<20x20x4xbf16, #tpu.memory_space<vmem>>, vector<16x2x4xbf16>,
    %10 = arith.truncf %1 : vector<16x16x4xf32> to vector<16x16x4xbf16>
    %c2_16 = arith.constant 2 : index
    %c2_17 = arith.constant 2 : index
    %c0_18 = arith.constant 0 : index
    %11 = vector.load %arg7[%c2_16, %c2_17, %c0_18] : memref<20x20x4xbf16, #tpu.memory_space<vmem>>, vector<16x16x4xbf16>
    tpu.vector_store %arg7[%c2_16, %c2_17, %c0_18], %10 {strides = array<i32>} : memref<20x20x4xbf16, #tpu.memory_space<vmem>>, vector<16x16x4xbf16>,
    %c0_19 = arith.constant 0 : index
    %c0_20 = arith.constant 0 : index
    %c0_21 = arith.constant 0 : index
    %12 = vector.load %arg7[%c0_19, %c0_20, %c0_21] : memref<20x20x4xbf16, #tpu.memory_space<vmem>>, vector<20x20x4xbf16>
    %13 = vector.extract_strided_slice %12 {offsets = [0, 0, 0], sizes = [20, 16, 4], strides = [1, 1, 1]} : vector<20x20x4xbf16> to vector<20x16x4xbf16>
    %14 = vector.extract_strided_slice %12 {offsets = [0, 1, 0], sizes = [20, 16, 4], strides = [1, 1, 1]} : vector<20x20x4xbf16> to vector<20x16x4xbf16>
    %15 = vector.extract_strided_slice %12 {offsets = [0, 2, 0], sizes = [20, 16, 4], strides = [1, 1, 1]} : vector<20x20x4xbf16> to vector<20x16x4xbf16>
    %16 = vector.extract_strided_slice %12 {offsets = [0, 3, 0], sizes = [20, 16, 4], strides = [1, 1, 1]} : vector<20x20x4xbf16> to vector<20x16x4xbf16>
    %17 = vector.extract_strided_slice %12 {offsets = [0, 4, 0], sizes = [20, 16, 4], strides = [1, 1, 1]} : vector<20x20x4xbf16> to vector<20x16x4xbf16>
    %18 = tpu.concatenate %13, %14, %15, %16, %17 in 2 : vector<20x16x4xbf16>, vector<20x16x4xbf16>, vector<20x16x4xbf16>, vector<20x16x4xbf16>, vector<20x16x4xbf16> -> vector<20x16x20xbf16>
    %19 = vector.shape_cast %18 : vector<20x16x20xbf16> to vector<320x20xbf16>
    %c0_22 = arith.constant 0 : index
    %c0_23 = arith.constant 0 : index
    %20 = vector.load %arg8[%c0_22, %c0_23] : memref<320x20xbf16, #tpu.memory_space<vmem>>, vector<320x20xbf16>
    tpu.vector_store %arg8[%c0_22, %c0_23], %19 {strides = array<i32>} : memref<320x20xbf16, #tpu.memory_space<vmem>>, vector<320x20xbf16>,
    %c0_24 = arith.constant 0 : index
    %c0_25 = arith.constant 0 : index
    %21 = vector.load %arg3[%c0_24, %c0_25] : memref<1x256xf32, #tpu.memory_space<vmem>>, vector<1x256xf32>
    %c0_26 = arith.constant 0 : index
    %c0_27 = arith.constant 0 : index
    %22 = vector.load %arg8[%c0_26, %c0_27] : memref<320x20xbf16, #tpu.memory_space<vmem>>, vector<256x20xbf16>
    %c0_28 = arith.constant 0 : index
    %c0_29 = arith.constant 0 : index
    %c0_30 = arith.constant 0 : index
    %23 = vector.load %arg2[%c0_28, %c0_29, %c0_30] : memref<5x20x256xbf16, #tpu.memory_space<vmem>>, vector<1x20x256xbf16>
    %24 = vector.shape_cast %23 : vector<1x20x256xbf16> to vector<20x256xbf16>
    %cst_31 = arith.constant dense<0.000000e+00> : vector<256x256xf32>
    %25 = tpu.matmul %22, %24, %cst_31 {dimension_numbers = #tpu.dot_dimension_numbers<[1], [0], [0], [1], [0, 0, 1, 1], [], []>} : vector<256x20xbf16>, vector<20x256xbf16>, vector<256x256xf32> -> vector<256x256xf32>
    %26 = vector.broadcast %21 : vector<1x256xf32> to vector<256x256xf32>
    %27 = arith.addf %26, %25 : vector<256x256xf32>
    %c0_32 = arith.constant 0 : index
    %c0_33 = arith.constant 0 : index
    %28 = vector.load %arg9[%c0_32, %c0_33] : memref<256x256xf32, #tpu.memory_space<vmem>>, vector<256x256xf32>
    tpu.vector_store %arg9[%c0_32, %c0_33], %27 {strides = array<i32>} : memref<256x256xf32, #tpu.memory_space<vmem>>, vector<256x256xf32>,
    %c0_34 = arith.constant 0 : index
    %c0_35 = arith.constant 0 : index
    %29 = vector.load %arg9[%c0_34, %c0_35] : memref<256x256xf32, #tpu.memory_space<vmem>>, vector<256x256xf32>
    %c16 = arith.constant 16 : index
    %c0_36 = arith.constant 0 : index
    %30 = vector.load %arg8[%c16, %c0_36] : memref<320x20xbf16, #tpu.memory_space<vmem>>, vector<256x20xbf16>
    %c1 = arith.constant 1 : index
    %c0_37 = arith.constant 0 : index
    %c0_38 = arith.constant 0 : index
    %31 = vector.load %arg2[%c1, %c0_37, %c0_38] : memref<5x20x256xbf16, #tpu.memory_space<vmem>>, vector<1x20x256xbf16>
    %32 = vector.shape_cast %31 : vector<1x20x256xbf16> to vector<20x256xbf16>
    %cst_39 = arith.constant dense<0.000000e+00> : vector<256x256xf32>
    %33 = tpu.matmul %30, %32, %cst_39 {dimension_numbers = #tpu.dot_dimension_numbers<[1], [0], [0], [1], [0, 0, 1, 1], [], []>} : vector<256x20xbf16>, vector<20x256xbf16>, vector<256x256xf32> -> vector<256x256xf32>
    %34 = arith.addf %29, %33 : vector<256x256xf32>
    %c0_40 = arith.constant 0 : index
    %c0_41 = arith.constant 0 : index
    %35 = vector.load %arg9[%c0_40, %c0_41] : memref<256x256xf32, #tpu.memory_space<vmem>>, vector<256x256xf32>
    tpu.vector_store %arg9[%c0_40, %c0_41], %34 {strides = array<i32>} : memref<256x256xf32, #tpu.memory_space<vmem>>, vector<256x256xf32>,
    %c0_42 = arith.constant 0 : index
    %c0_43 = arith.constant 0 : index
    %36 = vector.load %arg9[%c0_42, %c0_43] : memref<256x256xf32, #tpu.memory_space<vmem>>, vector<256x256xf32>
    %c32 = arith.constant 32 : index
    %c0_44 = arith.constant 0 : index
    %37 = vector.load %arg8[%c32, %c0_44] : memref<320x20xbf16, #tpu.memory_space<vmem>>, vector<256x20xbf16>
    %c2_45 = arith.constant 2 : index
    %c0_46 = arith.constant 0 : index
    %c0_47 = arith.constant 0 : index
    %38 = vector.load %arg2[%c2_45, %c0_46, %c0_47] : memref<5x20x256xbf16, #tpu.memory_space<vmem>>, vector<1x20x256xbf16>
    %39 = vector.shape_cast %38 : vector<1x20x256xbf16> to vector<20x256xbf16>
    %cst_48 = arith.constant dense<0.000000e+00> : vector<256x256xf32>
    %40 = tpu.matmul %37, %39, %cst_48 {dimension_numbers = #tpu.dot_dimension_numbers<[1], [0], [0], [1], [0, 0, 1, 1], [], []>} : vector<256x20xbf16>, vector<20x256xbf16>, vector<256x256xf32> -> vector<256x256xf32>
    %41 = arith.addf %36, %40 : vector<256x256xf32>
    %c0_49 = arith.constant 0 : index
    %c0_50 = arith.constant 0 : index
    %42 = vector.load %arg9[%c0_49, %c0_50] : memref<256x256xf32, #tpu.memory_space<vmem>>, vector<256x256xf32>
    tpu.vector_store %arg9[%c0_49, %c0_50], %41 {strides = array<i32>} : memref<256x256xf32, #tpu.memory_space<vmem>>, vector<256x256xf32>,
    %c0_51 = arith.constant 0 : index
    %c0_52 = arith.constant 0 : index
    %43 = vector.load %arg9[%c0_51, %c0_52] : memref<256x256xf32, #tpu.memory_space<vmem>>, vector<256x256xf32>
    %c48 = arith.constant 48 : index
    %c0_53 = arith.constant 0 : index
    %44 = vector.load %arg8[%c48, %c0_53] : memref<320x20xbf16, #tpu.memory_space<vmem>>, vector<256x20xbf16>
    %c3 = arith.constant 3 : index
    %c0_54 = arith.constant 0 : index
    %c0_55 = arith.constant 0 : index
    %45 = vector.load %arg2[%c3, %c0_54, %c0_55] : memref<5x20x256xbf16, #tpu.memory_space<vmem>>, vector<1x20x256xbf16>
    %46 = vector.shape_cast %45 : vector<1x20x256xbf16> to vector<20x256xbf16>
    %cst_56 = arith.constant dense<0.000000e+00> : vector<256x256xf32>
    %47 = tpu.matmul %44, %46, %cst_56 {dimension_numbers = #tpu.dot_dimension_numbers<[1], [0], [0], [1], [0, 0, 1, 1], [], []>} : vector<256x20xbf16>, vector<20x256xbf16>, vector<256x256xf32> -> vector<256x256xf32>
    %48 = arith.addf %43, %47 : vector<256x256xf32>
    %c0_57 = arith.constant 0 : index
    %c0_58 = arith.constant 0 : index
    %49 = vector.load %arg9[%c0_57, %c0_58] : memref<256x256xf32, #tpu.memory_space<vmem>>, vector<256x256xf32>
    tpu.vector_store %arg9[%c0_57, %c0_58], %48 {strides = array<i32>} : memref<256x256xf32, #tpu.memory_space<vmem>>, vector<256x256xf32>,
    %c0_59 = arith.constant 0 : index
    %c0_60 = arith.constant 0 : index
    %50 = vector.load %arg9[%c0_59, %c0_60] : memref<256x256xf32, #tpu.memory_space<vmem>>, vector<256x256xf32>
    %c64 = arith.constant 64 : index
    %c0_61 = arith.constant 0 : index
    %51 = vector.load %arg8[%c64, %c0_61] : memref<320x20xbf16, #tpu.memory_space<vmem>>, vector<256x20xbf16>
    %c4 = arith.constant 4 : index
    %c0_62 = arith.constant 0 : index
    %c0_63 = arith.constant 0 : index
    %52 = vector.load %arg2[%c4, %c0_62, %c0_63] : memref<5x20x256xbf16, #tpu.memory_space<vmem>>, vector<1x20x256xbf16>
    %53 = vector.shape_cast %52 : vector<1x20x256xbf16> to vector<20x256xbf16>
    %cst_64 = arith.constant dense<0.000000e+00> : vector<256x256xf32>
    %54 = tpu.matmul %51, %53, %cst_64 {dimension_numbers = #tpu.dot_dimension_numbers<[1], [0], [0], [1], [0, 0, 1, 1], [], []>} : vector<256x20xbf16>, vector<20x256xbf16>, vector<256x256xf32> -> vector<256x256xf32>
    %55 = arith.addf %50, %54 : vector<256x256xf32>
    %c0_65 = arith.constant 0 : index
    %c0_66 = arith.constant 0 : index
    %56 = vector.load %arg9[%c0_65, %c0_66] : memref<256x256xf32, #tpu.memory_space<vmem>>, vector<256x256xf32>
    tpu.vector_store %arg9[%c0_65, %c0_66], %55 {strides = array<i32>} : memref<256x256xf32, #tpu.memory_space<vmem>>, vector<256x256xf32>,
    %c0_67 = arith.constant 0 : index
    %c0_68 = arith.constant 0 : index
    %57 = vector.load %arg9[%c0_67, %c0_68] : memref<256x256xf32, #tpu.memory_space<vmem>>, vector<256x256xf32>
    %cst_69 = arith.constant 0.000000e+00 : f32
    %58 = vector.broadcast %cst_69 : f32 to vector<256x256xf32>
    %59 = arith.maximumf %57, %58 : vector<256x256xf32>
    %c0_70 = arith.constant 0 : index
    %c0_71 = arith.constant 0 : index
    %60 = vector.load %arg4[%c0_70, %c0_71] : memref<1x256xf32, #tpu.memory_space<vmem>>, vector<1x256xf32>
    %61 = vector.broadcast %60 : vector<1x256xf32> to vector<256x256xf32>
    %62 = arith.mulf %59, %61 : vector<256x256xf32>
    %cst_72 = arith.constant dense<0.000000e+00> : vector<256xf32>
    %63 = vector.multi_reduction <add>, %62, %cst_72 [1] : vector<256x256xf32> to vector<256xf32>
    %64 = vector.shape_cast %63 : vector<256xf32> to vector<256x1xf32>
    %c0_73 = arith.constant 0 : index
    %c0_74 = arith.constant 0 : index
    %65 = vector.load %arg5[%c0_73, %c0_74] : memref<1x1xf32, #tpu.memory_space<vmem>>, vector<1x1xf32>
    %66 = vector.broadcast %65 : vector<1x1xf32> to vector<256x1xf32>
    %67 = arith.addf %64, %66 : vector<256x1xf32>
    %cst_75 = arith.constant 0.000000e+00 : f32
    %68 = vector.broadcast %cst_75 : f32 to vector<256x1xf32>
    %69 = arith.subf %68, %67 : vector<256x1xf32>
    %70 = math.exp %69 : vector<256x1xf32>
    %cst_76 = arith.constant 1.000000e+00 : f32
    %71 = vector.broadcast %cst_76 : f32 to vector<256x1xf32>
    %72 = arith.addf %71, %70 : vector<256x1xf32>
    %73 = tpu.reciprocal %72 {approx = true} : vector<256x1xf32> -> vector<256x1xf32>
    %74 = vector.shape_cast %1 : vector<16x16x4xf32> to vector<256x4xf32>
    %75 = vector.broadcast %73 : vector<256x1xf32> to vector<256x4xf32>
    %76 = arith.mulf %74, %75 : vector<256x4xf32>
    %c0_77 = arith.constant 0 : index
    %c0_78 = arith.constant 0 : index
    %c0_79 = arith.constant 0 : index
    %77 = vector.load %arg6[%c0_77, %c0_78, %c0_79] : memref<1x256x4xf32, #tpu.memory_space<vmem>>, vector<1x256x4xf32>
    %78 = vector.shape_cast %77 : vector<1x256x4xf32> to vector<256x4xf32>
    %79 = vector.shape_cast %76 : vector<256x4xf32> to vector<1x256x4xf32>
    tpu.vector_store %arg6[%c0_77, %c0_78, %c0_79], %79 {strides = array<i32>} : memref<1x256x4xf32, #tpu.memory_space<vmem>>, vector<1x256x4xf32>,
    return
  }
  func.func @transform_0(%arg0: i32) -> (i32, i32, i32, i32) {
    %c0_i32 = arith.constant 0 : i32
    %c0_i32_0 = arith.constant 0 : i32
    %c0_i32_1 = arith.constant 0 : i32
    %c0_i32_2 = arith.constant 0 : i32
    return %arg0, %c0_i32, %c0_i32_0, %c0_i32_1 : i32, i32, i32, i32
  }
  func.func @transform_1(%arg0: i32) -> (i32, i32, i32) {
    %c0_i32 = arith.constant 0 : i32
    %c0_i32_0 = arith.constant 0 : i32
    %c0_i32_1 = arith.constant 0 : i32
    %c0_i32_2 = arith.constant 0 : i32
    return %c0_i32, %c0_i32_0, %c0_i32_1 : i32, i32, i32
  }
  func.func @transform_2(%arg0: i32) -> (i32, i32) {
    %c0_i32 = arith.constant 0 : i32
    %c0_i32_0 = arith.constant 0 : i32
    %c0_i32_1 = arith.constant 0 : i32
    return %c0_i32, %c0_i32_0 : i32, i32
  }
  func.func @transform_3(%arg0: i32) -> (i32, i32) {
    %c0_i32 = arith.constant 0 : i32
    %c0_i32_0 = arith.constant 0 : i32
    %c0_i32_1 = arith.constant 0 : i32
    return %c0_i32, %c0_i32_0 : i32, i32
  }
  func.func @transform_4(%arg0: i32) -> (i32, i32) {
    %c0_i32 = arith.constant 0 : i32
    %c0_i32_0 = arith.constant 0 : i32
    %c0_i32_1 = arith.constant 0 : i32
    return %c0_i32, %c0_i32_0 : i32, i32
  }
  func.func @transform_5(%arg0: i32) -> (i32, i32, i32) {
    %c0_i32 = arith.constant 0 : i32
    %c0_i32_0 = arith.constant 0 : i32
    %c0_i32_1 = arith.constant 0 : i32
    return %arg0, %c0_i32, %c0_i32_0 : i32, i32, i32
  }
}

</mosaic_0001>

<llo_original>
// kernel: context_aware_forward.1
$region0: #{context_aware_forward.1}
  #allocation0 [shape = 'u32[]', space=smem, size = 0x4, offset = 0x4, fixed_abs, tag = 'smem constant byte address 0x4 - core index']
  #allocation1 [shape = 'u32[144,128]{1,0:T(1,128)}', space=vmem, size = 0x12000, scoped, tag = 'internal scratch']
  #allocation2 [shape = 'bf16[20,20,4]{2,1,0:T(8,128)(2,1)}', space=vmem, size = 0x1e000, scoped, tag = 'scratch operand']
  #allocation3 [shape = 'bf16[320,20]{1,0:T(8,128)(2,1)}', space=vmem, size = 0x14000, scoped, tag = 'scratch operand']
  #allocation4 [shape = 'f32[256,256]{1,0:T(8,128)}', space=vmem, size = 0x40000, scoped, tag = 'scratch operand']
  #allocation5 [shape = 'f32[1,1]{1,0:T(1,128)S(1)}', space=vmem, size = 0x200, scoped, tag = 'scoped memory for context_aware_forward.1']
  %s0 = inlined_call_operand.vmem [shape: f32[2,16,16,4], index: 0, kind: input, shape index: {}]
  %s1 = inlined_call_operand.vmem [shape: bf16[5,20,256], index: 1, kind: input, shape index: {}]
  %s2 = inlined_call_operand.vmem [shape: f32[1,256], index: 2, kind: input, shape index: {}]
  %s3 = inlined_call_operand.vmem [shape: f32[1,256], index: 3, kind: input, shape index: {}]
  %s4 = inlined_call_operand.<no memory space> [shape: f32[1,1], index: 4, kind: input, shape index: {}]
  %s5 = inlined_call_operand.vmem [shape: f32[2,256,4], index: 5, kind: output, shape index: {}]
  %s6 = sld [smem:[#allocation0]]
  $region53: #{context_aware_forward.1} parent=0
    _
  %s8 = ssub.s32 1, %s6
  %s9 = scalar_select 0, %s8, %s6
  %v10 = vstv %s4
  %11 = vst [vmem:[#allocation5] sm:$0x1] %v10
  loop: start=0, step=1, limit=4
  $region2: #{context_aware_forward.1} parent=0 // loop_pre_header
    _
  $region3: #{context_aware_forward.1} parent=0 // loop_header
    %s13 = sphi 0, %s17
    %p14 = scmp.ge.s32.totalorder %s13, 4
    %s23 = sphi 0, %s25
    %s26 = sphi 0, %s23
    %s27 = sphi 0, %s26
    %s43 = sphi 0, %s27
    %s47 = sphi 0, %s47
    %s49 = sphi 0, %s47
    %s50 = sphi 0, %s49
    %s64 = sphi 0, %s50
    %s68 = sphi 0, %s68
    %s70 = sphi 0, %s68
    %s71 = sphi 0, %s70
    %s85 = sphi 0, %s71
    %s89 = sphi 0, %s89
    %s91 = sphi 0, %s89
    %s92 = sphi 0, %s91
    %s106 = sphi 0, %s92
    %s110 = sphi 0, %s110
    %s112 = sphi 0, %s110
    %s113 = sphi 0, %s112
    %s127 = sphi 0, %s113
    %s133 = sphi 0, %s135
    %s136 = sphi 0, %s133
    %s137 = sphi 0, %s136
    %s153 = sphi 0, %s137
  $region4: #{context_aware_forward.1} parent=0 // loop_header_branch
    %16 = sbr.rel (%p14) target = $region8
  $region5: #{context_aware_forward.1} parent=0 // loop_body
    %s18 = ssub.s32 %s13, 1
    %s19 = ssub.s32 %s13, 2
    %s20 = sadd.s32 %s13, 1
    %s21 = ssub.s32 %s13, %s20
    %p22 = scmp.eq.s32.totalorder %s21, 0
    %s24 = sadd.s32 %s23, 1
    %s25 = scalar_select %p22, %s23, %s24
    %p28 = pneg %p22
    %p29 = scmp.eq.s32.totalorder %s13, 1
    %p30 = por %p28, %p29
    %p31 = scmp.ne.s32.totalorder %s23, %s26
    %p32 = scmp.eq.s32.totalorder %s13, 0
    %p33 = por %p31, %p32
    %p34 = scmp.ne.s32.totalorder %s23, %s26
    %p35 = scmp.eq.s32.totalorder %s18, 1
    %p36 = por %p34, %p35
    %p37 = scmp.ne.s32.totalorder %s26, %s27
    %p38 = scmp.eq.s32.totalorder %s18, 0
    %p39 = por %p37, %p38
    %p40 = scmp.ne.s32.totalorder %s26, %s27
    %p41 = scmp.eq.s32.totalorder %s19, 1
    %p42 = por %p40, %p41
    %p44 = scmp.ne.s32.totalorder %s27, %s43
    %p45 = scmp.eq.s32.totalorder %s19, 0
    %p46 = por %p44, %p45
    %s48 = sadd.s32 %s47, 1
    %p51 = scmp.eq.s32.totalorder %s13, 1
    %p52 = scmp.ne.s32.totalorder %s47, %s49
    %p53 = scmp.eq.s32.totalorder %s13, 0
    %p54 = por %p52, %p53
    %p55 = scmp.ne.s32.totalorder %s47, %s49
    %p56 = scmp.eq.s32.totalorder %s18, 1
    %p57 = por %p55, %p56
    %p58 = scmp.ne.s32.totalorder %s49, %s50
    %p59 = scmp.eq.s32.totalorder %s18, 0
    %p60 = por %p58, %p59
    %p61 = scmp.ne.s32.totalorder %s49, %s50
    %p62 = scmp.eq.s32.totalorder %s19, 1
    %p63 = por %p61, %p62
    %p65 = scmp.ne.s32.totalorder %s50, %s64
    %p66 = scmp.eq.s32.totalorder %s19, 0
    %p67 = por %p65, %p66
    %s69 = sadd.s32 %s68, 1
    %p72 = scmp.eq.s32.totalorder %s13, 1
    %p73 = scmp.ne.s32.totalorder %s68, %s70
    %p74 = scmp.eq.s32.totalorder %s13, 0
    %p75 = por %p73, %p74
    %p76 = scmp.ne.s32.totalorder %s68, %s70
    %p77 = scmp.eq.s32.totalorder %s18, 1
    %p78 = por %p76, %p77
    %p79 = scmp.ne.s32.totalorder %s70, %s71
    %p80 = scmp.eq.s32.totalorder %s18, 0
    %p81 = por %p79, %p80
    %p82 = scmp.ne.s32.totalorder %s70, %s71
    %p83 = scmp.eq.s32.totalorder %s19, 1
    %p84 = por %p82, %p83
    %p86 = scmp.ne.s32.totalorder %s71, %s85
    %p87 = scmp.eq.s32.totalorder %s19, 0
    %p88 = por %p86, %p87
    %s90 = sadd.s32 %s89, 1
    %p93 = scmp.eq.s32.totalorder %s13, 1
    %p94 = scmp.ne.s32.totalorder %s89, %s91
    %p95 = scmp.eq.s32.totalorder %s13, 0
    %p96 = por %p94, %p95
    %p97 = scmp.ne.s32.totalorder %s89, %s91
    %p98 = scmp.eq.s32.totalorder %s18, 1
    %p99 = por %p97, %p98
    %p100 = scmp.ne.s32.totalorder %s91, %s92
    %p101 = scmp.eq.s32.totalorder %s18, 0
    %p102 = por %p100, %p101
    %p103 = scmp.ne.s32.totalorder %s91, %s92
    %p104 = scmp.eq.s32.totalorder %s19, 1
    %p105 = por %p103, %p104
    %p107 = scmp.ne.s32.totalorder %s92, %s106
    %p108 = scmp.eq.s32.totalorder %s19, 0
    %p109 = por %p107, %p108
    %s111 = sadd.s32 %s110, 1
    %p114 = scmp.eq.s32.totalorder %s13, 1
    %p115 = scmp.ne.s32.totalorder %s110, %s112
    %p116 = scmp.eq.s32.totalorder %s13, 0
    %p117 = por %p115, %p116
    %p118 = scmp.ne.s32.totalorder %s110, %s112
    %p119 = scmp.eq.s32.totalorder %s18, 1
    %p120 = por %p118, %p119
    %p121 = scmp.ne.s32.totalorder %s112, %s113
    %p122 = scmp.eq.s32.totalorder %s18, 0
    %p123 = por %p121, %p122
    %p124 = scmp.ne.s32.totalorder %s112, %s113
    %p125 = scmp.eq.s32.totalorder %s19, 1
    %p126 = por %p124, %p125
    %p128 = scmp.ne.s32.totalorder %s113, %s127
    %p129 = scmp.eq.s32.totalorder %s19, 0
    %p130 = por %p128, %p129
    %s131 = ssub.s32 %s13, %s20
    %p132 = scmp.eq.s32.totalorder %s131, 0
    %s134 = sadd.s32 %s133, 1
    %s135 = scalar_select %p132, %s133, %s134
    %p138 = pneg %p132
    %p139 = scmp.eq.s32.totalorder %s13, 1
    %p140 = por %p138, %p139
    %p141 = scmp.ne.s32.totalorder %s133, %s136
    %p142 = scmp.eq.s32.totalorder %s13, 0
    %p143 = por %p141, %p142
    %p144 = scmp.ne.s32.totalorder %s133, %s136
    %p145 = scmp.eq.s32.totalorder %s18, 1
    %p146 = por %p144, %p145
    %p147 = scmp.ne.s32.totalorder %s136, %s137
    %p148 = scmp.eq.s32.totalorder %s18, 0
    %p149 = por %p147, %p148
    %p150 = scmp.ne.s32.totalorder %s136, %s137
    %p151 = scmp.eq.s32.totalorder %s19, 1
    %p152 = por %p150, %p151
    %p154 = scmp.ne.s32.totalorder %s137, %s153
    %p155 = scmp.eq.s32.totalorder %s19, 0
    %p156 = por %p154, %p155
    %p157 = scmp.le.s32.totalorder 1, %s13
    %p158 = scmp.lt.s32.totalorder %s13, 3
    %p159 = pnand %p157, %p158
    %p160 = pneg %p159
    // Predicated region
    $region9: #{context_aware_forward.1} parent=5 // pred_check
      _
    $region10: #{context_aware_forward.1} parent=5 // pred_check_branch
      %162 = sbr.rel (%p159) target = $region12
    $region11: #{context_aware_forward.1} parent=5 // pred_region
      %s163 = ssub.s32 %s13, 1
      // Predicated region
      $region13: #{context_aware_forward.1} parent=11 // pred_check
        %p164 = pneg %p60
      $region14: #{context_aware_forward.1} parent=11 // pred_check_branch
        %166 = sbr.rel (%p164) target = $region16
      $region15: #{context_aware_forward.1} parent=11 // pred_region
        _
      $region16: #{context_aware_forward.1} parent=11 // pred_fallthru
        _
      // Predicated region
      $region17: #{context_aware_forward.1} parent=11 // pred_check
        %p167 = pneg %p81
      $region18: #{context_aware_forward.1} parent=11 // pred_check_branch
        %169 = sbr.rel (%p167) target = $region20
      $region19: #{context_aware_forward.1} parent=11 // pred_region
        _
      $region20: #{context_aware_forward.1} parent=11 // pred_fallthru
        _
      // Predicated region
      $region21: #{context_aware_forward.1} parent=11 // pred_check
        %p170 = pneg %p102
      $region22: #{context_aware_forward.1} parent=11 // pred_check_branch
        %172 = sbr.rel (%p170) target = $region24
      $region23: #{context_aware_forward.1} parent=11 // pred_region
        _
      $region24: #{context_aware_forward.1} parent=11 // pred_fallthru
        _
      // Predicated region
      $region25: #{context_aware_forward.1} parent=11 // pred_check
        %p173 = pneg %p123
      $region26: #{context_aware_forward.1} parent=11 // pred_check_branch
        %175 = sbr.rel (%p173) target = $region28
      $region27: #{context_aware_forward.1} parent=11 // pred_region
        _
      $region28: #{context_aware_forward.1} parent=11 // pred_fallthru
        _
    $region12: #{context_aware_forward.1} parent=5 // pred_fallthru
      _
    %p176 = scmp.lt.s32.totalorder %s13, 2
    // Predicated region
    $region29: #{context_aware_forward.1} parent=5 // pred_check
      %p177 = pneg %p176
    $region30: #{context_aware_forward.1} parent=5 // pred_check_branch
      %179 = sbr.rel (%p177) target = $region32
    $region31: #{context_aware_forward.1} parent=5 // pred_region
      // Predicated region
      $region33: #{context_aware_forward.1} parent=31 // pred_check
        %p180 = pneg %p33
      $region34: #{context_aware_forward.1} parent=31 // pred_check_branch
        %182 = sbr.rel (%p180) target = $region36
      $region35: #{context_aware_forward.1} parent=31 // pred_region
        %p183 = scmp.lt.s32.totalorder %s13, 1
        %s184 = scalar_select %p183, %s13, 1
        %s185 = smul.addr %s184, 32
        %s186 = smul.addr %s185, 8
        %s187 = scalar_lea.vmem %s0, %s186
      $region36: #{context_aware_forward.1} parent=31 // pred_fallthru
        _
    $region32: #{context_aware_forward.1} parent=5 // pred_fallthru
      _
    %p188 = scmp.le.s32.totalorder 1, %s13
    %p189 = scmp.lt.s32.totalorder %s13, 3
    %p190 = pnand %p188, %p189
    %p191 = pneg %p190
    // Predicated region
    $region37: #{context_aware_forward.1} parent=5 // pred_check
      _
    $region38: #{context_aware_forward.1} parent=5 // pred_check_branch
      %193 = sbr.rel (%p190) target = $region40
    $region39: #{context_aware_forward.1} parent=5 // pred_region
      %s194 = ssub.s32 %s13, 1
      %p195 = scmp.lt.s32.totalorder %s18, 1
      %s196 = scalar_select %p195, %s18, 1
      %s197 = smul.addr %s196, 32
      %s198 = smul.addr %s197, 8
      %s199 = scalar_lea.vmem %s0, %s198
      %p200 = pneg %p39
      %p201 = pneg %p36
      %p202 = pneg %p60
      %p203 = pneg %p57
      %p204 = pneg %p81
      %p205 = pneg %p78
      %p206 = pneg %p102
      %p207 = pneg %p99
      %p208 = pneg %p123
      %p209 = pneg %p120
      %p210 = pneg %p149
      %p211 = pneg %p146
      %p212 = scmp.lt.s32.totalorder %s18, 1
      %s213 = scalar_select %p212, %s18, 1
      %s214 = smul.addr %s213, 32
      %s215 = smul.addr %s214, 8
      %s216 = scalar_lea.vmem %s5, %s215
      %p217 = scmp.lt.s32.totalorder %s18, 1
      %s218 = scalar_select %p217, %s18, 1
      %s219 = smul.addr %s218, 32
      %s220 = smul.addr %s219, 8
      %s221 = scalar_lea.vmem %s0, %s220
      %p222 = scmp.lt.s32.totalorder %s18, 1
      %s223 = scalar_select %p222, %s18, 1
      %s224 = smul.addr %s223, 32
      %s225 = smul.addr %s224, 8
      %s226 = scalar_lea.vmem %s5, %s225
      %v228 = vld [vmem:[%s221] sm:$0xff]
      %v229 = vld [vmem:[%s221 + $0x8] sm:$0xff]
      %v230 = vld [vmem:[%s221 + $0x10] sm:$0xff]
      %v231 = vld [vmem:[%s221 + $0x18] sm:$0xff]
      %v232 = vld [vmem:[%s221 + $0x20] sm:$0xff]
      %v233 = vld [vmem:[%s221 + $0x28] sm:$0xff]
      %v234 = vld [vmem:[%s221 + $0x30] sm:$0xff]
      %v235 = vld [vmem:[%s221 + $0x38] sm:$0xff]
      %v236 = vld [vmem:[%s221 + $0x40] sm:$0xff]
      %v237 = vld [vmem:[%s221 + $0x48] sm:$0xff]
      %v238 = vld [vmem:[%s221 + $0x50] sm:$0xff]
      %v239 = vld [vmem:[%s221 + $0x58] sm:$0xff]
      %v240 = vld [vmem:[%s221 + $0x60] sm:$0xff]
      %v241 = vld [vmem:[%s221 + $0x68] sm:$0xff]
      %v242 = vld [vmem:[%s221 + $0x70] sm:$0xff]
      %v243 = vld [vmem:[%s221 + $0x78] sm:$0xff]
      %v244 = vld [vmem:[%s221 + $0x80] sm:$0xff]
      %v245 = vld [vmem:[%s221 + $0x88] sm:$0xff]
      %v246 = vld [vmem:[%s221 + $0x90] sm:$0xff]
      %v247 = vld [vmem:[%s221 + $0x98] sm:$0xff]
      %v248 = vld [vmem:[%s221 + $0xa0] sm:$0xff]
      %v249 = vld [vmem:[%s221 + $0xa8] sm:$0xff]
      %v250 = vld [vmem:[%s221 + $0xb0] sm:$0xff]
      %v251 = vld [vmem:[%s221 + $0xb8] sm:$0xff]
      %v252 = vld [vmem:[%s221 + $0xc0] sm:$0xff]
      %v253 = vld [vmem:[%s221 + $0xc8] sm:$0xff]
      %v254 = vld [vmem:[%s221 + $0xd0] sm:$0xff]
      %v255 = vld [vmem:[%s221 + $0xd8] sm:$0xff]
      %v256 = vld [vmem:[%s221 + $0xe0] sm:$0xff]
      %v257 = vld [vmem:[%s221 + $0xe8] sm:$0xff]
      %v258 = vld [vmem:[%s221 + $0xf0] sm:$0xff]
      %v259 = vld [vmem:[%s221 + $0xf8] sm:$0xff]
      %vm260 = vcmask 27648
      %261 = vst.msk [vmem:[#allocation2] sm:$0xf] %vm260, 0
      %262 = vst.msk [vmem:[#allocation2 + $0x4] sm:$0xf] %vm260, 0
      %vm263 = vcmask 25600
      %264 = vst.msk [vmem:[#allocation2 + $0x8] sm:$0x3] %vm263, 0
      %265 = vst.msk [vmem:[#allocation2 + $0xc] sm:$0xf] %vm260, 0
      %266 = vst.msk [vmem:[#allocation2 + $0x10] sm:$0xf] %vm260, 0
      %267 = vst.msk [vmem:[#allocation2 + $0x14] sm:$0x3] %vm263, 0
      %s268 = scalar_lea.vmem [#allocation2], 216
      %269 = vst.msk [vmem:[%s268] sm:$0xf] %vm260, 0
      %270 = vst.msk [vmem:[%s268 + $0x4] sm:$0xf] %vm260, 0
      %271 = vst.msk [vmem:[%s268 + $0x8] sm:$0x3] %vm263, 0
      %272 = vst.msk [vmem:[%s268 + $0xc] sm:$0xf] %vm260, 0
      %273 = vst.msk [vmem:[%s268 + $0x10] sm:$0xf] %vm260, 0
      %274 = vst.msk [vmem:[%s268 + $0x14] sm:$0x3] %vm263, 0
      %s275 = scalar_lea.vmem [#allocation2], 24
      %vm276 = vcmask 24576
      %277 = vst.msk [vmem:[%s275] sm:$0x1] %vm276, 0
      %278 = vst.msk [vmem:[%s275 + $0xc] sm:$0x1] %vm276, 0
      %279 = vst.msk [vmem:[%s275 + $0x18] sm:$0x1] %vm276, 0
      %280 = vst.msk [vmem:[%s275 + $0x24] sm:$0x1] %vm276, 0
      %281 = vst.msk [vmem:[%s275 + $0x30] sm:$0x1] %vm276, 0
      %282 = vst.msk [vmem:[%s275 + $0x3c] sm:$0x1] %vm276, 0
      %283 = vst.msk [vmem:[%s275 + $0x48] sm:$0x1] %vm276, 0
      %284 = vst.msk [vmem:[%s275 + $0x54] sm:$0x1] %vm276, 0
      %285 = vst.msk [vmem:[%s275 + $0x60] sm:$0x1] %vm276, 0
      %286 = vst.msk [vmem:[%s275 + $0x6c] sm:$0x1] %vm276, 0
      %287 = vst.msk [vmem:[%s275 + $0x78] sm:$0x1] %vm276, 0
      %288 = vst.msk [vmem:[%s275 + $0x84] sm:$0x1] %vm276, 0
      %289 = vst.msk [vmem:[%s275 + $0x90] sm:$0x1] %vm276, 0
      %290 = vst.msk [vmem:[%s275 + $0x9c] sm:$0x1] %vm276, 0
      %291 = vst.msk [vmem:[%s275 + $0xa8] sm:$0x1] %vm276, 0
      %292 = vst.msk [vmem:[%s275 + $0xb4] sm:$0x1] %vm276, 0
      %vm293 = vcmask 25601
      %294 = vst.msk [vmem:[%s275 + $0x8] sm:$0x2] %vm293, 0
      %295 = vst.msk [vmem:[%s275 + $0x14] sm:$0x2] %vm293, 0
      %296 = vst.msk [vmem:[%s275 + $0x20] sm:$0x2] %vm293, 0
      %297 = vst.msk [vmem:[%s275 + $0x2c] sm:$0x2] %vm293, 0
      %298 = vst.msk [vmem:[%s275 + $0x38] sm:$0x2] %vm293, 0
      %299 = vst.msk [vmem:[%s275 + $0x44] sm:$0x2] %vm293, 0
      %300 = vst.msk [vmem:[%s275 + $0x50] sm:$0x2] %vm293, 0
      %301 = vst.msk [vmem:[%s275 + $0x5c] sm:$0x2] %vm293, 0
      %302 = vst.msk [vmem:[%s275 + $0x68] sm:$0x2] %vm293, 0
      %303 = vst.msk [vmem:[%s275 + $0x74] sm:$0x2] %vm293, 0
      %304 = vst.msk [vmem:[%s275 + $0x80] sm:$0x2] %vm293, 0
      %305 = vst.msk [vmem:[%s275 + $0x8c] sm:$0x2] %vm293, 0
      %306 = vst.msk [vmem:[%s275 + $0x98] sm:$0x2] %vm293, 0
      %307 = vst.msk [vmem:[%s275 + $0xa4] sm:$0x2] %vm293, 0
      %308 = vst.msk [vmem:[%s275 + $0xb0] sm:$0x2] %vm293, 0
      %309 = vst.msk [vmem:[%s275 + $0xbc] sm:$0x2] %vm293, 0
      %v310 = vpack.c.bf16 %v229, %v228
      %v311 = vpack.c.bf16 %v231, %v230
      %v312 = vpack.c.bf16 %v233, %v232
      %v313 = vpack.c.bf16 %v235, %v234
      %v314 = vpack.c.bf16 %v237, %v236
      %v315 = vpack.c.bf16 %v239, %v238
      %v316 = vpack.c.bf16 %v241, %v240
      %v317 = vpack.c.bf16 %v243, %v242
      %v318 = vpack.c.bf16 %v245, %v244
      %v319 = vpack.c.bf16 %v247, %v246
      %v320 = vpack.c.bf16 %v249, %v248
      %v321 = vpack.c.bf16 %v251, %v250
      %v322 = vpack.c.bf16 %v253, %v252
      %v323 = vpack.c.bf16 %v255, %v254
      %v324 = vpack.c.bf16 %v257, %v256
      %v325 = vpack.c.bf16 %v259, %v258
      %v342 = vunpack.c.l.b16 %v310
      %v343 = vunpack.c.h.b16 %v310
      %v344 = vunpack.c.l.b16 %v311
      %v345 = vunpack.c.h.b16 %v311
      %v346 = vunpack.c.l.b16 %v312
      %v347 = vunpack.c.h.b16 %v312
      %v348 = vunpack.c.l.b16 %v313
      %v349 = vunpack.c.h.b16 %v313
      %v350 = vunpack.c.l.b16 %v314
      %v351 = vunpack.c.h.b16 %v314
      %v352 = vunpack.c.l.b16 %v315
      %v353 = vunpack.c.h.b16 %v315
      %v354 = vunpack.c.l.b16 %v316
      %v355 = vunpack.c.h.b16 %v316
      %v356 = vunpack.c.l.b16 %v317
      %v357 = vunpack.c.h.b16 %v317
      %v358 = vunpack.c.l.b16 %v318
      %v359 = vunpack.c.h.b16 %v318
      %v360 = vunpack.c.l.b16 %v319
      %v361 = vunpack.c.h.b16 %v319
      %v362 = vunpack.c.l.b16 %v320
      %v363 = vunpack.c.h.b16 %v320
      %v364 = vunpack.c.l.b16 %v321
      %v365 = vunpack.c.h.b16 %v321
      %v366 = vunpack.c.l.b16 %v322
      %v367 = vunpack.c.h.b16 %v322
      %v368 = vunpack.c.l.b16 %v323
      %v369 = vunpack.c.h.b16 %v323
      %v370 = vunpack.c.l.b16 %v324
      %v371 = vunpack.c.h.b16 %v324
      %v372 = vunpack.c.l.b16 %v325
      %v373 = vunpack.c.h.b16 %v325
      %v374 = vpack.c.b16 %v342, %v342
      %v375 = vpack.c.b16 %v343, %v343
      %v376 = vpack.c.b16 %v344, %v344
      %v377 = vpack.c.b16 %v345, %v345
      %v378 = vpack.c.b16 %v346, %v346
      %v379 = vpack.c.b16 %v347, %v347
      %v380 = vpack.c.b16 %v348, %v348
      %v381 = vpack.c.b16 %v349, %v349
      %v382 = vpack.c.b16 %v350, %v350
      %v383 = vpack.c.b16 %v351, %v351
      %v384 = vpack.c.b16 %v352, %v352
      %v385 = vpack.c.b16 %v353, %v353
      %v386 = vpack.c.b16 %v354, %v354
      %v387 = vpack.c.b16 %v355, %v355
      %v388 = vpack.c.b16 %v356, %v356
      %v389 = vpack.c.b16 %v357, %v357
      %v390 = vpack.c.b16 %v358, %v358
      %v391 = vpack.c.b16 %v359, %v359
      %v392 = vpack.c.b16 %v360, %v360
      %v393 = vpack.c.b16 %v361, %v361
      %v394 = vpack.c.b16 %v362, %v362
      %v395 = vpack.c.b16 %v363, %v363
      %v396 = vpack.c.b16 %v364, %v364
      %v397 = vpack.c.b16 %v365, %v365
      %v398 = vpack.c.b16 %v366, %v366
      %v399 = vpack.c.b16 %v367, %v367
      %v400 = vpack.c.b16 %v368, %v368
      %v401 = vpack.c.b16 %v369, %v369
      %v402 = vpack.c.b16 %v370, %v370
      %v403 = vpack.c.b16 %v371, %v371
      %v404 = vpack.c.b16 %v372, %v372
      %v405 = vpack.c.b16 %v373, %v373
      %vm406 = vcmask 1040384
      %vm407 = vcmask 1044484
      %vm408 = vmor %vm406, %vm407
      %v409 = vrot.slane %v374, 7
      %v410 = vrot.slane %v409, 4
      %v411 = vrot.slane %v375, 7
      %v412 = vsel %vm408, %v410, %v411
      %v413 = vrot.slane %v411, 4
      %v414 = vrot.slane %v376, 7
      %v415 = vrot.slane %v414, 4
      %v416 = vrot.slane %v377, 7
      %v417 = vsel %vm408, %v415, %v416
      %v418 = vrot.slane %v416, 4
      %v419 = vrot.slane %v378, 7
      %v420 = vrot.slane %v419, 4
      %v421 = vrot.slane %v379, 7
      %v422 = vsel %vm408, %v420, %v421
      %v423 = vrot.slane %v421, 4
      %v424 = vrot.slane %v380, 7
      %v425 = vrot.slane %v424, 4
      %v426 = vrot.slane %v381, 7
      %v427 = vsel %vm408, %v425, %v426
      %v428 = vrot.slane %v426, 4
      %v429 = vrot.slane %v382, 7
      %v430 = vrot.slane %v429, 4
      %v431 = vrot.slane %v383, 7
      %v432 = vsel %vm408, %v430, %v431
      %v433 = vrot.slane %v431, 4
      %v434 = vrot.slane %v384, 7
      %v435 = vrot.slane %v434, 4
      %v436 = vrot.slane %v385, 7
      %v437 = vsel %vm408, %v435, %v436
      %v438 = vrot.slane %v436, 4
      %v439 = vrot.slane %v386, 7
      %v440 = vrot.slane %v439, 4
      %v441 = vrot.slane %v387, 7
      %v442 = vsel %vm408, %v440, %v441
      %v443 = vrot.slane %v441, 4
      %v444 = vrot.slane %v388, 7
      %v445 = vrot.slane %v444, 4
      %v446 = vrot.slane %v389, 7
      %v447 = vsel %vm408, %v445, %v446
      %v448 = vrot.slane %v446, 4
      %v449 = vrot.slane %v390, 7
      %v450 = vrot.slane %v449, 4
      %v451 = vrot.slane %v391, 7
      %v452 = vsel %vm408, %v450, %v451
      %v453 = vrot.slane %v451, 4
      %v454 = vrot.slane %v392, 7
      %v455 = vrot.slane %v454, 4
      %v456 = vrot.slane %v393, 7
      %v457 = vsel %vm408, %v455, %v456
      %v458 = vrot.slane %v456, 4
      %v459 = vrot.slane %v394, 7
      %v460 = vrot.slane %v459, 4
      %v461 = vrot.slane %v395, 7
      %v462 = vsel %vm408, %v460, %v461
      %v463 = vrot.slane %v461, 4
      %v464 = vrot.slane %v396, 7
      %v465 = vrot.slane %v464, 4
      %v466 = vrot.slane %v397, 7
      %v467 = vsel %vm408, %v465, %v466
      %v468 = vrot.slane %v466, 4
      %v469 = vrot.slane %v398, 7
      %v470 = vrot.slane %v469, 4
      %v471 = vrot.slane %v399, 7
      %v472 = vsel %vm408, %v470, %v471
      %v473 = vrot.slane %v471, 4
      %v474 = vrot.slane %v400, 7
      %v475 = vrot.slane %v474, 4
      %v476 = vrot.slane %v401, 7
      %v477 = vsel %vm408, %v475, %v476
      %v478 = vrot.slane %v476, 4
      %v479 = vrot.slane %v402, 7
      %v480 = vrot.slane %v479, 4
      %v481 = vrot.slane %v403, 7
      %v482 = vsel %vm408, %v480, %v481
      %v483 = vrot.slane %v481, 4
      %v484 = vrot.slane %v404, 7
      %v485 = vrot.slane %v484, 4
      %v486 = vrot.slane %v405, 7
      %v487 = vsel %vm408, %v485, %v486
      %v488 = vrot.slane %v486, 4
      %vm537 = vcmask 27649
      %538 = vst.msk [vmem:[%s275] sm:$0xe] %vm537, %v409
      %539 = vst.msk [vmem:[%s275 + $0x4] sm:$0xf] %vm260, %v412
      %540 = vst.msk [vmem:[%s275 + $0x8] sm:$0x1] %vm276, %v413
      %541 = vst.msk [vmem:[%s275 + $0xc] sm:$0xe] %vm537, %v414
      %542 = vst.msk [vmem:[%s275 + $0x10] sm:$0xf] %vm260, %v417
      %543 = vst.msk [vmem:[%s275 + $0x14] sm:$0x1] %vm276, %v418
      %544 = vst.msk [vmem:[%s275 + $0x18] sm:$0xe] %vm537, %v419
      %545 = vst.msk [vmem:[%s275 + $0x1c] sm:$0xf] %vm260, %v422
      %546 = vst.msk [vmem:[%s275 + $0x20] sm:$0x1] %vm276, %v423
      %547 = vst.msk [vmem:[%s275 + $0x24] sm:$0xe] %vm537, %v424
      %548 = vst.msk [vmem:[%s275 + $0x28] sm:$0xf] %vm260, %v427
      %549 = vst.msk [vmem:[%s275 + $0x2c] sm:$0x1] %vm276, %v428
      %550 = vst.msk [vmem:[%s275 + $0x30] sm:$0xe] %vm537, %v429
      %551 = vst.msk [vmem:[%s275 + $0x34] sm:$0xf] %vm260, %v432
      %552 = vst.msk [vmem:[%s275 + $0x38] sm:$0x1] %vm276, %v433
      %553 = vst.msk [vmem:[%s275 + $0x3c] sm:$0xe] %vm537, %v434
      %554 = vst.msk [vmem:[%s275 + $0x40] sm:$0xf] %vm260, %v437
      %555 = vst.msk [vmem:[%s275 + $0x44] sm:$0x1] %vm276, %v438
      %556 = vst.msk [vmem:[%s275 + $0x48] sm:$0xe] %vm537, %v439
      %557 = vst.msk [vmem:[%s275 + $0x4c] sm:$0xf] %vm260, %v442
      %558 = vst.msk [vmem:[%s275 + $0x50] sm:$0x1] %vm276, %v443
      %559 = vst.msk [vmem:[%s275 + $0x54] sm:$0xe] %vm537, %v444
      %560 = vst.msk [vmem:[%s275 + $0x58] sm:$0xf] %vm260, %v447
      %561 = vst.msk [vmem:[%s275 + $0x5c] sm:$0x1] %vm276, %v448
      %562 = vst.msk [vmem:[%s275 + $0x60] sm:$0xe] %vm537, %v449
      %563 = vst.msk [vmem:[%s275 + $0x64] sm:$0xf] %vm260, %v452
      %564 = vst.msk [vmem:[%s275 + $0x68] sm:$0x1] %vm276, %v453
      %565 = vst.msk [vmem:[%s275 + $0x6c] sm:$0xe] %vm537, %v454
      %566 = vst.msk [vmem:[%s275 + $0x70] sm:$0xf] %vm260, %v457
      %567 = vst.msk [vmem:[%s275 + $0x74] sm:$0x1] %vm276, %v458
      %568 = vst.msk [vmem:[%s275 + $0x78] sm:$0xe] %vm537, %v459
      %569 = vst.msk [vmem:[%s275 + $0x7c] sm:$0xf] %vm260, %v462
      %570 = vst.msk [vmem:[%s275 + $0x80] sm:$0x1] %vm276, %v463
      %571 = vst.msk [vmem:[%s275 + $0x84] sm:$0xe] %vm537, %v464
      %572 = vst.msk [vmem:[%s275 + $0x88] sm:$0xf] %vm260, %v467
      %573 = vst.msk [vmem:[%s275 + $0x8c] sm:$0x1] %vm276, %v468
      %574 = vst.msk [vmem:[%s275 + $0x90] sm:$0xe] %vm537, %v469
      %575 = vst.msk [vmem:[%s275 + $0x94] sm:$0xf] %vm260, %v472
      %576 = vst.msk [vmem:[%s275 + $0x98] sm:$0x1] %vm276, %v473
      %577 = vst.msk [vmem:[%s275 + $0x9c] sm:$0xe] %vm537, %v474
      %578 = vst.msk [vmem:[%s275 + $0xa0] sm:$0xf] %vm260, %v477
      %579 = vst.msk [vmem:[%s275 + $0xa4] sm:$0x1] %vm276, %v478
      %580 = vst.msk [vmem:[%s275 + $0xa8] sm:$0xe] %vm537, %v479
      %581 = vst.msk [vmem:[%s275 + $0xac] sm:$0xf] %vm260, %v482
      %582 = vst.msk [vmem:[%s275 + $0xb0] sm:$0x1] %vm276, %v483
      %583 = vst.msk [vmem:[%s275 + $0xb4] sm:$0xe] %vm537, %v484
      %584 = vst.msk [vmem:[%s275 + $0xb8] sm:$0xf] %vm260, %v487
      %585 = vst.msk [vmem:[%s275 + $0xbc] sm:$0x1] %vm276, %v488
      %v586 = vld [vmem:[#allocation2] sm:$0xf]
      %v587 = vld [vmem:[#allocation2 + $0x4] sm:$0xf]
      %v588 = vld [vmem:[#allocation2 + $0x8] sm:$0x3]
      %v589 = vld [vmem:[#allocation2 + $0xc] sm:$0xf]
      %v590 = vld [vmem:[#allocation2 + $0x10] sm:$0xf]
      %v591 = vld [vmem:[#allocation2 + $0x14] sm:$0x3]
      %v592 = vld [vmem:[#allocation2 + $0x18] sm:$0xf]
      %v593 = vld [vmem:[#allocation2 + $0x1c] sm:$0xf]
      %v594 = vld [vmem:[#allocation2 + $0x20] sm:$0x3]
      %v595 = vld [vmem:[#allocation2 + $0x24] sm:$0xf]
      %v596 = vld [vmem:[#allocation2 + $0x28] sm:$0xf]
      %v597 = vld [vmem:[#allocation2 + $0x2c] sm:$0x3]
      %v598 = vld [vmem:[#allocation2 + $0x30] sm:$0xf]
      %v599 = vld [vmem:[#allocation2 + $0x34] sm:$0xf]
      %v600 = vld [vmem:[#allocation2 + $0x38] sm:$0x3]
      %v601 = vld [vmem:[#allocation2 + $0x3c] sm:$0xf]
      %v602 = vld [vmem:[#allocation2 + $0x40] sm:$0xf]
      %v603 = vld [vmem:[#allocation2 + $0x44] sm:$0x3]
      %v604 = vld [vmem:[#allocation2 + $0x48] sm:$0xf]
      %v605 = vld [vmem:[#allocation2 + $0x4c] sm:$0xf]
      %v606 = vld [vmem:[#allocation2 + $0x50] sm:$0x3]
      %v607 = vld [vmem:[#allocation2 + $0x54] sm:$0xf]
      %v608 = vld [vmem:[#allocation2 + $0x58] sm:$0xf]
      %v609 = vld [vmem:[#allocation2 + $0x5c] sm:$0x3]
      %v610 = vld [vmem:[#allocation2 + $0x60] sm:$0xf]
      %v611 = vld [vmem:[#allocation2 + $0x64] sm:$0xf]
      %v612 = vld [vmem:[#allocation2 + $0x68] sm:$0x3]
      %v613 = vld [vmem:[#allocation2 + $0x6c] sm:$0xf]
      %v614 = vld [vmem:[#allocation2 + $0x70] sm:$0xf]
      %v615 = vld [vmem:[#allocation2 + $0x74] sm:$0x3]
      %v616 = vld [vmem:[#allocation2 + $0x78] sm:$0xf]
      %v617 = vld [vmem:[#allocation2 + $0x7c] sm:$0xf]
      %v618 = vld [vmem:[#allocation2 + $0x80] sm:$0x3]
      %v619 = vld [vmem:[#allocation2 + $0x84] sm:$0xf]
      %v620 = vld [vmem:[#allocation2 + $0x88] sm:$0xf]
      %v621 = vld [vmem:[#allocation2 + $0x8c] sm:$0x3]
      %v622 = vld [vmem:[#allocation2 + $0x90] sm:$0xf]
      %v623 = vld [vmem:[#allocation2 + $0x94] sm:$0xf]
      %v624 = vld [vmem:[#allocation2 + $0x98] sm:$0x3]
      %v625 = vld [vmem:[#allocation2 + $0x9c] sm:$0xf]
      %v626 = vld [vmem:[#allocation2 + $0xa0] sm:$0xf]
      %v627 = vld [vmem:[#allocation2 + $0xa4] sm:$0x3]
      %v628 = vld [vmem:[#allocation2 + $0xa8] sm:$0xf]
      %v629 = vld [vmem:[#allocation2 + $0xac] sm:$0xf]
      %v630 = vld [vmem:[#allocation2 + $0xb0] sm:$0x3]
      %v631 = vld [vmem:[#allocation2 + $0xb4] sm:$0xf]
      %v632 = vld [vmem:[#allocation2 + $0xb8] sm:$0xf]
      %v633 = vld [vmem:[#allocation2 + $0xbc] sm:$0x3]
      %v634 = vld [vmem:[#allocation2 + $0xc0] sm:$0xf]
      %v635 = vld [vmem:[#allocation2 + $0xc4] sm:$0xf]
      %v636 = vld [vmem:[#allocation2 + $0xc8] sm:$0x3]
      %v637 = vld [vmem:[#allocation2 + $0xcc] sm:$0xf]
      %v638 = vld [vmem:[#allocation2 + $0xd0] sm:$0xf]
      %v639 = vld [vmem:[#allocation2 + $0xd4] sm:$0x3]
      %v640 = vld [vmem:[#allocation2 + $0xd8] sm:$0xf]
      %v641 = vld [vmem:[#allocation2 + $0xdc] sm:$0xf]
      %v642 = vld [vmem:[#allocation2 + $0xe0] sm:$0x3]
      %v643 = vld [vmem:[#allocation2 + $0xe4] sm:$0xf]
      %v644 = vld [vmem:[#allocation2 + $0xe8] sm:$0xf]
      %v645 = vld [vmem:[#allocation2 + $0xec] sm:$0x3]
      %v686 = vunpack.c.l.b16 %v586
      %v687 = vunpack.c.l.b16 %v587
      %v688 = vunpack.c.l.b16 %v589
      %v689 = vunpack.c.l.b16 %v590
      %v690 = vunpack.c.l.b16 %v592
      %v691 = vunpack.c.l.b16 %v593
      %v692 = vunpack.c.l.b16 %v595
      %v693 = vunpack.c.l.b16 %v596
      %v694 = vunpack.c.l.b16 %v598
      %v695 = vunpack.c.l.b16 %v599
      %v696 = vunpack.c.l.b16 %v601
      %v697 = vunpack.c.l.b16 %v602
      %v698 = vunpack.c.l.b16 %v604
      %v699 = vunpack.c.l.b16 %v605
      %v700 = vunpack.c.l.b16 %v607
      %v701 = vunpack.c.l.b16 %v608
      %v702 = vunpack.c.l.b16 %v610
      %v703 = vunpack.c.l.b16 %v611
      %v704 = vunpack.c.l.b16 %v613
      %v705 = vunpack.c.l.b16 %v614
      %v706 = vunpack.c.l.b16 %v616
      %v707 = vunpack.c.l.b16 %v617
      %v708 = vunpack.c.l.b16 %v619
      %v709 = vunpack.c.l.b16 %v620
      %v710 = vunpack.c.l.b16 %v622
      %v711 = vunpack.c.l.b16 %v623
      %v712 = vunpack.c.l.b16 %v625
      %v713 = vunpack.c.l.b16 %v626
      %v714 = vunpack.c.l.b16 %v628
      %v715 = vunpack.c.l.b16 %v629
      %v716 = vunpack.c.l.b16 %v631
      %v717 = vunpack.c.l.b16 %v632
      %v718 = vunpack.c.l.b16 %v634
      %v719 = vunpack.c.l.b16 %v635
      %v720 = vunpack.c.l.b16 %v637
      %v721 = vunpack.c.l.b16 %v638
      %v722 = vunpack.c.l.b16 %v640
      %v723 = vunpack.c.l.b16 %v641
      %v724 = vunpack.c.l.b16 %v643
      %v725 = vunpack.c.l.b16 %v644
      %v726 = vpack.c.b16 %v687, %v686
      %v727 = vpack.c.b16 %v689, %v688
      %v728 = vpack.c.b16 %v691, %v690
      %v729 = vpack.c.b16 %v693, %v692
      %v730 = vpack.c.b16 %v695, %v694
      %v731 = vpack.c.b16 %v697, %v696
      %v732 = vpack.c.b16 %v699, %v698
      %v733 = vpack.c.b16 %v701, %v700
      %v734 = vpack.c.b16 %v703, %v702
      %v735 = vpack.c.b16 %v705, %v704
      %v736 = vpack.c.b16 %v707, %v706
      %v737 = vpack.c.b16 %v709, %v708
      %v738 = vpack.c.b16 %v711, %v710
      %v739 = vpack.c.b16 %v713, %v712
      %v740 = vpack.c.b16 %v715, %v714
      %v741 = vpack.c.b16 %v717, %v716
      %v742 = vpack.c.b16 %v719, %v718
      %v743 = vpack.c.b16 %v721, %v720
      %v744 = vpack.c.b16 %v723, %v722
      %v745 = vpack.c.b16 %v725, %v724
      %v766 = vunpack.c.l.b16 %v588
      %v767 = vunpack.c.l.b16 %v591
      %v768 = vunpack.c.l.b16 %v594
      %v769 = vunpack.c.l.b16 %v597
      %v770 = vunpack.c.l.b16 %v600
      %v771 = vunpack.c.l.b16 %v603
      %v772 = vunpack.c.l.b16 %v606
      %v773 = vunpack.c.l.b16 %v609
      %v774 = vunpack.c.l.b16 %v612
      %v775 = vunpack.c.l.b16 %v615
      %v776 = vunpack.c.l.b16 %v618
      %v777 = vunpack.c.l.b16 %v621
      %v778 = vunpack.c.l.b16 %v624
      %v779 = vunpack.c.l.b16 %v627
      %v780 = vunpack.c.l.b16 %v630
      %v781 = vunpack.c.l.b16 %v633
      %v782 = vunpack.c.l.b16 %v636
      %v783 = vunpack.c.l.b16 %v639
      %v784 = vunpack.c.l.b16 %v642
      %v785 = vunpack.c.l.b16 %v645
      %v786 = vpack.c.b16 %v766, %v766
      %v787 = vpack.c.b16 %v767, %v767
      %v788 = vpack.c.b16 %v768, %v768
      %v789 = vpack.c.b16 %v769, %v769
      %v790 = vpack.c.b16 %v770, %v770
      %v791 = vpack.c.b16 %v771, %v771
      %v792 = vpack.c.b16 %v772, %v772
      %v793 = vpack.c.b16 %v773, %v773
      %v794 = vpack.c.b16 %v774, %v774
      %v795 = vpack.c.b16 %v775, %v775
      %v796 = vpack.c.b16 %v776, %v776
      %v797 = vpack.c.b16 %v777, %v777
      %v798 = vpack.c.b16 %v778, %v778
      %v799 = vpack.c.b16 %v779, %v779
      %v800 = vpack.c.b16 %v780, %v780
      %v801 = vpack.c.b16 %v781, %v781
      %v802 = vpack.c.b16 %v782, %v782
      %v803 = vpack.c.b16 %v783, %v783
      %v804 = vpack.c.b16 %v784, %v784
      %v805 = vpack.c.b16 %v785, %v785
      %vm806 = vsmask.f32 7424
      %v808 = vshrl.u32 %v726, 16
      %v810 = vshll.u32 %v726, 16
      %v812 = vrot.slane %v810, 1
      %v813 = vor.u32 %v808, %v812
      %v815 = vshll.u32 %v786, 16
      %v817 = vrot.slane %v815, 1
      %v818 = vsel %vm806, %v813, %v817
      %v820 = vshrl.u32 %v727, 16
      %v822 = vshll.u32 %v727, 16
      %v824 = vrot.slane %v822, 1
      %v825 = vor.u32 %v820, %v824
      %v827 = vshll.u32 %v787, 16
      %v829 = vrot.slane %v827, 1
      %v830 = vsel %vm806, %v825, %v829
      %v832 = vshrl.u32 %v728, 16
      %v834 = vshll.u32 %v728, 16
      %v836 = vrot.slane %v834, 1
      %v837 = vor.u32 %v832, %v836
      %v839 = vshll.u32 %v788, 16
      %v841 = vrot.slane %v839, 1
      %v842 = vsel %vm806, %v837, %v841
      %v844 = vshrl.u32 %v729, 16
      %v846 = vshll.u32 %v729, 16
      %v848 = vrot.slane %v846, 1
      %v849 = vor.u32 %v844, %v848
      %v851 = vshll.u32 %v789, 16
      %v853 = vrot.slane %v851, 1
      %v854 = vsel %vm806, %v849, %v853
      %v856 = vshrl.u32 %v730, 16
      %v858 = vshll.u32 %v730, 16
      %v860 = vrot.slane %v858, 1
      %v861 = vor.u32 %v856, %v860
      %v863 = vshll.u32 %v790, 16
      %v865 = vrot.slane %v863, 1
      %v866 = vsel %vm806, %v861, %v865
      %v868 = vshrl.u32 %v731, 16
      %v870 = vshll.u32 %v731, 16
      %v872 = vrot.slane %v870, 1
      %v873 = vor.u32 %v868, %v872
      %v875 = vshll.u32 %v791, 16
      %v877 = vrot.slane %v875, 1
      %v878 = vsel %vm806, %v873, %v877
      %v880 = vshrl.u32 %v732, 16
      %v882 = vshll.u32 %v732, 16
      %v884 = vrot.slane %v882, 1
      %v885 = vor.u32 %v880, %v884
      %v887 = vshll.u32 %v792, 16
      %v889 = vrot.slane %v887, 1
      %v890 = vsel %vm806, %v885, %v889
      %v892 = vshrl.u32 %v733, 16
      %v894 = vshll.u32 %v733, 16
      %v896 = vrot.slane %v894, 1
      %v897 = vor.u32 %v892, %v896
      %v899 = vshll.u32 %v793, 16
      %v901 = vrot.slane %v899, 1
      %v902 = vsel %vm806, %v897, %v901
      %v904 = vshrl.u32 %v734, 16
      %v906 = vshll.u32 %v734, 16
      %v908 = vrot.slane %v906, 1
      %v909 = vor.u32 %v904, %v908
      %v911 = vshll.u32 %v794, 16
      %v913 = vrot.slane %v911, 1
      %v914 = vsel %vm806, %v909, %v913
      %v916 = vshrl.u32 %v735, 16
      %v918 = vshll.u32 %v735, 16
      %v920 = vrot.slane %v918, 1
      %v921 = vor.u32 %v916, %v920
      %v923 = vshll.u32 %v795, 16
      %v925 = vrot.slane %v923, 1
      %v926 = vsel %vm806, %v921, %v925
      %v928 = vshrl.u32 %v736, 16
      %v930 = vshll.u32 %v736, 16
      %v932 = vrot.slane %v930, 1
      %v933 = vor.u32 %v928, %v932
      %v935 = vshll.u32 %v796, 16
      %v937 = vrot.slane %v935, 1
      %v938 = vsel %vm806, %v933, %v937
      %v940 = vshrl.u32 %v737, 16
      %v942 = vshll.u32 %v737, 16
      %v944 = vrot.slane %v942, 1
      %v945 = vor.u32 %v940, %v944
      %v947 = vshll.u32 %v797, 16
      %v949 = vrot.slane %v947, 1
      %v950 = vsel %vm806, %v945, %v949
      %v952 = vshrl.u32 %v738, 16
      %v954 = vshll.u32 %v738, 16
      %v956 = vrot.slane %v954, 1
      %v957 = vor.u32 %v952, %v956
      %v959 = vshll.u32 %v798, 16
      %v961 = vrot.slane %v959, 1
      %v962 = vsel %vm806, %v957, %v961
      %v964 = vshrl.u32 %v739, 16
      %v966 = vshll.u32 %v739, 16
      %v968 = vrot.slane %v966, 1
      %v969 = vor.u32 %v964, %v968
      %v971 = vshll.u32 %v799, 16
      %v973 = vrot.slane %v971, 1
      %v974 = vsel %vm806, %v969, %v973
      %v976 = vshrl.u32 %v740, 16
      %v978 = vshll.u32 %v740, 16
      %v980 = vrot.slane %v978, 1
      %v981 = vor.u32 %v976, %v980
      %v983 = vshll.u32 %v800, 16
      %v985 = vrot.slane %v983, 1
      %v986 = vsel %vm806, %v981, %v985
      %v988 = vshrl.u32 %v741, 16
      %v990 = vshll.u32 %v741, 16
      %v992 = vrot.slane %v990, 1
      %v993 = vor.u32 %v988, %v992
      %v995 = vshll.u32 %v801, 16
      %v997 = vrot.slane %v995, 1
      %v998 = vsel %vm806, %v993, %v997
      %v1000 = vshrl.u32 %v742, 16
      %v1002 = vshll.u32 %v742, 16
      %v1004 = vrot.slane %v1002, 1
      %v1005 = vor.u32 %v1000, %v1004
      %v1007 = vshll.u32 %v802, 16
      %v1009 = vrot.slane %v1007, 1
      %v1010 = vsel %vm806, %v1005, %v1009
      %v1012 = vshrl.u32 %v743, 16
      %v1014 = vshll.u32 %v743, 16
      %v1016 = vrot.slane %v1014, 1
      %v1017 = vor.u32 %v1012, %v1016
      %v1019 = vshll.u32 %v803, 16
      %v1021 = vrot.slane %v1019, 1
      %v1022 = vsel %vm806, %v1017, %v1021
      %v1024 = vshrl.u32 %v744, 16
      %v1026 = vshll.u32 %v744, 16
      %v1028 = vrot.slane %v1026, 1
      %v1029 = vor.u32 %v1024, %v1028
      %v1031 = vshll.u32 %v804, 16
      %v1033 = vrot.slane %v1031, 1
      %v1034 = vsel %vm806, %v1029, %v1033
      %v1036 = vshrl.u32 %v745, 16
      %v1038 = vshll.u32 %v745, 16
      %v1040 = vrot.slane %v1038, 1
      %v1041 = vor.u32 %v1036, %v1040
      %v1043 = vshll.u32 %v805, 16
      %v1045 = vrot.slane %v1043, 1
      %v1046 = vsel %vm806, %v1041, %v1045
      %1047 = vrot.lane.b32.xlu0 %v818, 4
      %v1048 = vpop.permute.xlu0 %1047
      %1049 = vrot.lane.b32.xlu0 %v830, 4
      %v1050 = vpop.permute.xlu0 %1049
      %1051 = vrot.lane.b32.xlu0 %v842, 4
      %v1052 = vpop.permute.xlu0 %1051
      %1053 = vrot.lane.b32.xlu0 %v854, 4
      %v1054 = vpop.permute.xlu0 %1053
      %1055 = vrot.lane.b32.xlu0 %v866, 4
      %v1056 = vpop.permute.xlu0 %1055
      %1057 = vrot.lane.b32.xlu0 %v878, 4
      %v1058 = vpop.permute.xlu0 %1057
      %1059 = vrot.lane.b32.xlu0 %v890, 4
      %v1060 = vpop.permute.xlu0 %1059
      %1061 = vrot.lane.b32.xlu0 %v902, 4
      %v1062 = vpop.permute.xlu0 %1061
      %1063 = vrot.lane.b32.xlu0 %v914, 4
      %v1064 = vpop.permute.xlu0 %1063
      %1065 = vrot.lane.b32.xlu0 %v926, 4
      %v1066 = vpop.permute.xlu0 %1065
      %1067 = vrot.lane.b32.xlu0 %v938, 4
      %v1068 = vpop.permute.xlu0 %1067
      %1069 = vrot.lane.b32.xlu0 %v950, 4
      %v1070 = vpop.permute.xlu0 %1069
      %1071 = vrot.lane.b32.xlu0 %v962, 4
      %v1072 = vpop.permute.xlu0 %1071
      %1073 = vrot.lane.b32.xlu0 %v974, 4
      %v1074 = vpop.permute.xlu0 %1073
      %1075 = vrot.lane.b32.xlu0 %v986, 4
      %v1076 = vpop.permute.xlu0 %1075
      %1077 = vrot.lane.b32.xlu0 %v998, 4
      %v1078 = vpop.permute.xlu0 %1077
      %1079 = vrot.lane.b32.xlu0 %v1010, 4
      %v1080 = vpop.permute.xlu0 %1079
      %1081 = vrot.lane.b32.xlu0 %v1022, 4
      %v1082 = vpop.permute.xlu0 %1081
      %1083 = vrot.lane.b32.xlu0 %v1034, 4
      %v1084 = vpop.permute.xlu0 %1083
      %1085 = vrot.lane.b32.xlu0 %v1046, 4
      %v1086 = vpop.permute.xlu0 %1085
      %vm1087 = vcmask 1046528
      %v1088 = vrot.slane %v726, 1
      %v1089 = vrot.slane %v786, 1
      %v1090 = vsel %vm1087, %v1088, %v1089
      %v1091 = vrot.slane %v727, 1
      %v1092 = vrot.slane %v787, 1
      %v1093 = vsel %vm1087, %v1091, %v1092
      %v1094 = vrot.slane %v728, 1
      %v1095 = vrot.slane %v788, 1
      %v1096 = vsel %vm1087, %v1094, %v1095
      %v1097 = vrot.slane %v729, 1
      %v1098 = vrot.slane %v789, 1
      %v1099 = vsel %vm1087, %v1097, %v1098
      %v1100 = vrot.slane %v730, 1
      %v1101 = vrot.slane %v790, 1
      %v1102 = vsel %vm1087, %v1100, %v1101
      %v1103 = vrot.slane %v731, 1
      %v1104 = vrot.slane %v791, 1
      %v1105 = vsel %vm1087, %v1103, %v1104
      %v1106 = vrot.slane %v732, 1
      %v1107 = vrot.slane %v792, 1
      %v1108 = vsel %vm1087, %v1106, %v1107
      %v1109 = vrot.slane %v733, 1
      %v1110 = vrot.slane %v793, 1
      %v1111 = vsel %vm1087, %v1109, %v1110
      %v1112 = vrot.slane %v734, 1
      %v1113 = vrot.slane %v794, 1
      %v1114 = vsel %vm1087, %v1112, %v1113
      %v1115 = vrot.slane %v735, 1
      %v1116 = vrot.slane %v795, 1
      %v1117 = vsel %vm1087, %v1115, %v1116
      %v1118 = vrot.slane %v736, 1
      %v1119 = vrot.slane %v796, 1
      %v1120 = vsel %vm1087, %v1118, %v1119
      %v1121 = vrot.slane %v737, 1
      %v1122 = vrot.slane %v797, 1
      %v1123 = vsel %vm1087, %v1121, %v1122
      %v1124 = vrot.slane %v738, 1
      %v1125 = vrot.slane %v798, 1
      %v1126 = vsel %vm1087, %v1124, %v1125
      %v1127 = vrot.slane %v739, 1
      %v1128 = vrot.slane %v799, 1
      %v1129 = vsel %vm1087, %v1127, %v1128
      %v1130 = vrot.slane %v740, 1
      %v1131 = vrot.slane %v800, 1
      %v1132 = vsel %vm1087, %v1130, %v1131
      %v1133 = vrot.slane %v741, 1
      %v1134 = vrot.slane %v801, 1
      %v1135 = vsel %vm1087, %v1133, %v1134
      %v1136 = vrot.slane %v742, 1
      %v1137 = vrot.slane %v802, 1
      %v1138 = vsel %vm1087, %v1136, %v1137
      %v1139 = vrot.slane %v743, 1
      %v1140 = vrot.slane %v803, 1
      %v1141 = vsel %vm1087, %v1139, %v1140
      %v1142 = vrot.slane %v744, 1
      %v1143 = vrot.slane %v804, 1
      %v1144 = vsel %vm1087, %v1142, %v1143
      %v1145 = vrot.slane %v745, 1
      %v1146 = vrot.slane %v805, 1
      %v1147 = vsel %vm1087, %v1145, %v1146
      %1148 = vrot.lane.b32.xlu0 %v1090, 8
      %v1149 = vpop.permute.xlu0 %1148
      %1150 = vrot.lane.b32.xlu0 %v1093, 8
      %v1151 = vpop.permute.xlu0 %1150
      %1152 = vrot.lane.b32.xlu0 %v1096, 8
      %v1153 = vpop.permute.xlu0 %1152
      %1154 = vrot.lane.b32.xlu0 %v1099, 8
      %v1155 = vpop.permute.xlu0 %1154
      %1156 = vrot.lane.b32.xlu0 %v1102, 8
      %v1157 = vpop.permute.xlu0 %1156
      %1158 = vrot.lane.b32.xlu0 %v1105, 8
      %v1159 = vpop.permute.xlu0 %1158
      %1160 = vrot.lane.b32.xlu0 %v1108, 8
      %v1161 = vpop.permute.xlu0 %1160
      %1162 = vrot.lane.b32.xlu0 %v1111, 8
      %v1163 = vpop.permute.xlu0 %1162
      %1164 = vrot.lane.b32.xlu0 %v1114, 8
      %v1165 = vpop.permute.xlu0 %1164
      %1166 = vrot.lane.b32.xlu0 %v1117, 8
      %v1167 = vpop.permute.xlu0 %1166
      %1168 = vrot.lane.b32.xlu0 %v1120, 8
      %v1169 = vpop.permute.xlu0 %1168
      %1170 = vrot.lane.b32.xlu0 %v1123, 8
      %v1171 = vpop.permute.xlu0 %1170
      %1172 = vrot.lane.b32.xlu0 %v1126, 8
      %v1173 = vpop.permute.xlu0 %1172
      %1174 = vrot.lane.b32.xlu0 %v1129, 8
      %v1175 = vpop.permute.xlu0 %1174
      %1176 = vrot.lane.b32.xlu0 %v1132, 8
      %v1177 = vpop.permute.xlu0 %1176
      %1178 = vrot.lane.b32.xlu0 %v1135, 8
      %v1179 = vpop.permute.xlu0 %1178
      %1180 = vrot.lane.b32.xlu0 %v1138, 8
      %v1181 = vpop.permute.xlu0 %1180
      %1182 = vrot.lane.b32.xlu0 %v1141, 8
      %v1183 = vpop.permute.xlu0 %1182
      %1184 = vrot.lane.b32.xlu0 %v1144, 8
      %v1185 = vpop.permute.xlu0 %1184
      %1186 = vrot.lane.b32.xlu0 %v1147, 8
      %v1187 = vpop.permute.xlu0 %1186
      %vm1188 = vsmask.f32 6400
      %v1189 = vrot.slane %v808, 1
      %v1190 = vrot.slane %v810, 2
      %v1191 = vor.u32 %v1189, %v1190
      %v1192 = vshrl.u32 %v786, 16
      %v1194 = vrot.slane %v1192, 1
      %v1195 = vrot.slane %v815, 2
      %v1196 = vor.u32 %v1194, %v1195
      %v1197 = vsel %vm1188, %v1191, %v1196
      %v1198 = vrot.slane %v820, 1
      %v1199 = vrot.slane %v822, 2
      %v1200 = vor.u32 %v1198, %v1199
      %v1201 = vshrl.u32 %v787, 16
      %v1203 = vrot.slane %v1201, 1
      %v1204 = vrot.slane %v827, 2
      %v1205 = vor.u32 %v1203, %v1204
      %v1206 = vsel %vm1188, %v1200, %v1205
      %v1207 = vrot.slane %v832, 1
      %v1208 = vrot.slane %v834, 2
      %v1209 = vor.u32 %v1207, %v1208
      %v1210 = vshrl.u32 %v788, 16
      %v1212 = vrot.slane %v1210, 1
      %v1213 = vrot.slane %v839, 2
      %v1214 = vor.u32 %v1212, %v1213
      %v1215 = vsel %vm1188, %v1209, %v1214
      %v1216 = vrot.slane %v844, 1
      %v1217 = vrot.slane %v846, 2
      %v1218 = vor.u32 %v1216, %v1217
      %v1219 = vshrl.u32 %v789, 16
      %v1221 = vrot.slane %v1219, 1
      %v1222 = vrot.slane %v851, 2
      %v1223 = vor.u32 %v1221, %v1222
      %v1224 = vsel %vm1188, %v1218, %v1223
      %v1225 = vrot.slane %v856, 1
      %v1226 = vrot.slane %v858, 2
      %v1227 = vor.u32 %v1225, %v1226
      %v1228 = vshrl.u32 %v790, 16
      %v1230 = vrot.slane %v1228, 1
      %v1231 = vrot.slane %v863, 2
      %v1232 = vor.u32 %v1230, %v1231
      %v1233 = vsel %vm1188, %v1227, %v1232
      %v1234 = vrot.slane %v868, 1
      %v1235 = vrot.slane %v870, 2
      %v1236 = vor.u32 %v1234, %v1235
      %v1237 = vshrl.u32 %v791, 16
      %v1239 = vrot.slane %v1237, 1
      %v1240 = vrot.slane %v875, 2
      %v1241 = vor.u32 %v1239, %v1240
      %v1242 = vsel %vm1188, %v1236, %v1241
      %v1243 = vrot.slane %v880, 1
      %v1244 = vrot.slane %v882, 2
      %v1245 = vor.u32 %v1243, %v1244
      %v1246 = vshrl.u32 %v792, 16
      %v1248 = vrot.slane %v1246, 1
      %v1249 = vrot.slane %v887, 2
      %v1250 = vor.u32 %v1248, %v1249
      %v1251 = vsel %vm1188, %v1245, %v1250
      %v1252 = vrot.slane %v892, 1
      %v1253 = vrot.slane %v894, 2
      %v1254 = vor.u32 %v1252, %v1253
      %v1255 = vshrl.u32 %v793, 16
      %v1257 = vrot.slane %v1255, 1
      %v1258 = vrot.slane %v899, 2
      %v1259 = vor.u32 %v1257, %v1258
      %v1260 = vsel %vm1188, %v1254, %v1259
      %v1261 = vrot.slane %v904, 1
      %v1262 = vrot.slane %v906, 2
      %v1263 = vor.u32 %v1261, %v1262
      %v1264 = vshrl.u32 %v794, 16
      %v1266 = vrot.slane %v1264, 1
      %v1267 = vrot.slane %v911, 2
      %v1268 = vor.u32 %v1266, %v1267
      %v1269 = vsel %vm1188, %v1263, %v1268
      %v1270 = vrot.slane %v916, 1
      %v1271 = vrot.slane %v918, 2
      %v1272 = vor.u32 %v1270, %v1271
      %v1273 = vshrl.u32 %v795, 16
      %v1275 = vrot.slane %v1273, 1
      %v1276 = vrot.slane %v923, 2
      %v1277 = vor.u32 %v1275, %v1276
      %v1278 = vsel %vm1188, %v1272, %v1277
      %v1279 = vrot.slane %v928, 1
      %v1280 = vrot.slane %v930, 2
      %v1281 = vor.u32 %v1279, %v1280
      %v1282 = vshrl.u32 %v796, 16
      %v1284 = vrot.slane %v1282, 1
      %v1285 = vrot.slane %v935, 2
      %v1286 = vor.u32 %v1284, %v1285
      %v1287 = vsel %vm1188, %v1281, %v1286
      %v1288 = vrot.slane %v940, 1
      %v1289 = vrot.slane %v942, 2
      %v1290 = vor.u32 %v1288, %v1289
      %v1291 = vshrl.u32 %v797, 16
      %v1293 = vrot.slane %v1291, 1
      %v1294 = vrot.slane %v947, 2
      %v1295 = vor.u32 %v1293, %v1294
      %v1296 = vsel %vm1188, %v1290, %v1295
      %v1297 = vrot.slane %v952, 1
      %v1298 = vrot.slane %v954, 2
      %v1299 = vor.u32 %v1297, %v1298
      %v1300 = vshrl.u32 %v798, 16
      %v1302 = vrot.slane %v1300, 1
      %v1303 = vrot.slane %v959, 2
      %v1304 = vor.u32 %v1302, %v1303
      %v1305 = vsel %vm1188, %v1299, %v1304
      %v1306 = vrot.slane %v964, 1
      %v1307 = vrot.slane %v966, 2
      %v1308 = vor.u32 %v1306, %v1307
      %v1309 = vshrl.u32 %v799, 16
      %v1311 = vrot.slane %v1309, 1
      %v1312 = vrot.slane %v971, 2
      %v1313 = vor.u32 %v1311, %v1312
      %v1314 = vsel %vm1188, %v1308, %v1313
      %v1315 = vrot.slane %v976, 1
      %v1316 = vrot.slane %v978, 2
      %v1317 = vor.u32 %v1315, %v1316
      %v1318 = vshrl.u32 %v800, 16
      %v1320 = vrot.slane %v1318, 1
      %v1321 = vrot.slane %v983, 2
      %v1322 = vor.u32 %v1320, %v1321
      %v1323 = vsel %vm1188, %v1317, %v1322
      %v1324 = vrot.slane %v988, 1
      %v1325 = vrot.slane %v990, 2
      %v1326 = vor.u32 %v1324, %v1325
      %v1327 = vshrl.u32 %v801, 16
      %v1329 = vrot.slane %v1327, 1
      %v1330 = vrot.slane %v995, 2
      %v1331 = vor.u32 %v1329, %v1330
      %v1332 = vsel %vm1188, %v1326, %v1331
      %v1333 = vrot.slane %v1000, 1
      %v1334 = vrot.slane %v1002, 2
      %v1335 = vor.u32 %v1333, %v1334
      %v1336 = vshrl.u32 %v802, 16
      %v1338 = vrot.slane %v1336, 1
      %v1339 = vrot.slane %v1007, 2
      %v1340 = vor.u32 %v1338, %v1339
      %v1341 = vsel %vm1188, %v1335, %v1340
      %v1342 = vrot.slane %v1012, 1
      %v1343 = vrot.slane %v1014, 2
      %v1344 = vor.u32 %v1342, %v1343
      %v1345 = vshrl.u32 %v803, 16
      %v1347 = vrot.slane %v1345, 1
      %v1348 = vrot.slane %v1019, 2
      %v1349 = vor.u32 %v1347, %v1348
      %v1350 = vsel %vm1188, %v1344, %v1349
      %v1351 = vrot.slane %v1024, 1
      %v1352 = vrot.slane %v1026, 2
      %v1353 = vor.u32 %v1351, %v1352
      %v1354 = vshrl.u32 %v804, 16
      %v1356 = vrot.slane %v1354, 1
      %v1357 = vrot.slane %v1031, 2
      %v1358 = vor.u32 %v1356, %v1357
      %v1359 = vsel %vm1188, %v1353, %v1358
      %v1360 = vrot.slane %v1036, 1
      %v1361 = vrot.slane %v1038, 2
      %v1362 = vor.u32 %v1360, %v1361
      %v1363 = vshrl.u32 %v805, 16
      %v1365 = vrot.slane %v1363, 1
      %v1366 = vrot.slane %v1043, 2
      %v1367 = vor.u32 %v1365, %v1366
      %v1368 = vsel %vm1188, %v1362, %v1367
      %1369 = vrot.lane.b32.xlu0 %v1197, 12
      %v1370 = vpop.permute.xlu0 %1369
      %1371 = vrot.lane.b32.xlu0 %v1206, 12
      %v1372 = vpop.permute.xlu0 %1371
      %1373 = vrot.lane.b32.xlu0 %v1215, 12
      %v1374 = vpop.permute.xlu0 %1373
      %1375 = vrot.lane.b32.xlu0 %v1224, 12
      %v1376 = vpop.permute.xlu0 %1375
      %1377 = vrot.lane.b32.xlu0 %v1233, 12
      %v1378 = vpop.permute.xlu0 %1377
      %1379 = vrot.lane.b32.xlu0 %v1242, 12
      %v1380 = vpop.permute.xlu0 %1379
      %1381 = vrot.lane.b32.xlu0 %v1251, 12
      %v1382 = vpop.permute.xlu0 %1381
      %1383 = vrot.lane.b32.xlu0 %v1260, 12
      %v1384 = vpop.permute.xlu0 %1383
      %1385 = vrot.lane.b32.xlu0 %v1269, 12
      %v1386 = vpop.permute.xlu0 %1385
      %1387 = vrot.lane.b32.xlu0 %v1278, 12
      %v1388 = vpop.permute.xlu0 %1387
      %1389 = vrot.lane.b32.xlu0 %v1287, 12
      %v1390 = vpop.permute.xlu0 %1389
      %1391 = vrot.lane.b32.xlu0 %v1296, 12
      %v1392 = vpop.permute.xlu0 %1391
      %1393 = vrot.lane.b32.xlu0 %v1305, 12
      %v1394 = vpop.permute.xlu0 %1393
      %1395 = vrot.lane.b32.xlu0 %v1314, 12
      %v1396 = vpop.permute.xlu0 %1395
      %1397 = vrot.lane.b32.xlu0 %v1323, 12
      %v1398 = vpop.permute.xlu0 %1397
      %1399 = vrot.lane.b32.xlu0 %v1332, 12
      %v1400 = vpop.permute.xlu0 %1399
      %1401 = vrot.lane.b32.xlu0 %v1341, 12
      %v1402 = vpop.permute.xlu0 %1401
      %1403 = vrot.lane.b32.xlu0 %v1350, 12
      %v1404 = vpop.permute.xlu0 %1403
      %1405 = vrot.lane.b32.xlu0 %v1359, 12
      %v1406 = vpop.permute.xlu0 %1405
      %1407 = vrot.lane.b32.xlu0 %v1368, 12
      %v1408 = vpop.permute.xlu0 %1407
      %vm1409 = vcmask 1045504
      %v1410 = vrot.slane %v726, 2
      %v1411 = vrot.slane %v786, 2
      %v1412 = vsel %vm1409, %v1410, %v1411
      %v1413 = vrot.slane %v727, 2
      %v1414 = vrot.slane %v787, 2
      %v1415 = vsel %vm1409, %v1413, %v1414
      %v1416 = vrot.slane %v728, 2
      %v1417 = vrot.slane %v788, 2
      %v1418 = vsel %vm1409, %v1416, %v1417
      %v1419 = vrot.slane %v729, 2
      %v1420 = vrot.slane %v789, 2
      %v1421 = vsel %vm1409, %v1419, %v1420
      %v1422 = vrot.slane %v730, 2
      %v1423 = vrot.slane %v790, 2
      %v1424 = vsel %vm1409, %v1422, %v1423
      %v1425 = vrot.slane %v731, 2
      %v1426 = vrot.slane %v791, 2
      %v1427 = vsel %vm1409, %v1425, %v1426
      %v1428 = vrot.slane %v732, 2
      %v1429 = vrot.slane %v792, 2
      %v1430 = vsel %vm1409, %v1428, %v1429
      %v1431 = vrot.slane %v733, 2
      %v1432 = vrot.slane %v793, 2
      %v1433 = vsel %vm1409, %v1431, %v1432
      %v1434 = vrot.slane %v734, 2
      %v1435 = vrot.slane %v794, 2
      %v1436 = vsel %vm1409, %v1434, %v1435
      %v1437 = vrot.slane %v735, 2
      %v1438 = vrot.slane %v795, 2
      %v1439 = vsel %vm1409, %v1437, %v1438
      %v1440 = vrot.slane %v736, 2
      %v1441 = vrot.slane %v796, 2
      %v1442 = vsel %vm1409, %v1440, %v1441
      %v1443 = vrot.slane %v737, 2
      %v1444 = vrot.slane %v797, 2
      %v1445 = vsel %vm1409, %v1443, %v1444
      %v1446 = vrot.slane %v738, 2
      %v1447 = vrot.slane %v798, 2
      %v1448 = vsel %vm1409, %v1446, %v1447
      %v1449 = vrot.slane %v739, 2
      %v1450 = vrot.slane %v799, 2
      %v1451 = vsel %vm1409, %v1449, %v1450
      %v1452 = vrot.slane %v740, 2
      %v1453 = vrot.slane %v800, 2
      %v1454 = vsel %vm1409, %v1452, %v1453
      %v1455 = vrot.slane %v741, 2
      %v1456 = vrot.slane %v801, 2
      %v1457 = vsel %vm1409, %v1455, %v1456
      %v1458 = vrot.slane %v742, 2
      %v1459 = vrot.slane %v802, 2
      %v1460 = vsel %vm1409, %v1458, %v1459
      %v1461 = vrot.slane %v743, 2
      %v1462 = vrot.slane %v803, 2
      %v1463 = vsel %vm1409, %v1461, %v1462
      %v1464 = vrot.slane %v744, 2
      %v1465 = vrot.slane %v804, 2
      %v1466 = vsel %vm1409, %v1464, %v1465
      %v1467 = vrot.slane %v745, 2
      %v1468 = vrot.slane %v805, 2
      %v1469 = vsel %vm1409, %v1467, %v1468
      %1470 = vrot.lane.b32.xlu0 %v1412, 16
      %v1471 = vpop.permute.xlu0 %1470
      %1472 = vrot.lane.b32.xlu0 %v1415, 16
      %v1473 = vpop.permute.xlu0 %1472
      %1474 = vrot.lane.b32.xlu0 %v1418, 16
      %v1475 = vpop.permute.xlu0 %1474
      %1476 = vrot.lane.b32.xlu0 %v1421, 16
      %v1477 = vpop.permute.xlu0 %1476
      %1478 = vrot.lane.b32.xlu0 %v1424, 16
      %v1479 = vpop.permute.xlu0 %1478
      %1480 = vrot.lane.b32.xlu0 %v1427, 16
      %v1481 = vpop.permute.xlu0 %1480
      %1482 = vrot.lane.b32.xlu0 %v1430, 16
      %v1483 = vpop.permute.xlu0 %1482
      %1484 = vrot.lane.b32.xlu0 %v1433, 16
      %v1485 = vpop.permute.xlu0 %1484
      %1486 = vrot.lane.b32.xlu0 %v1436, 16
      %v1487 = vpop.permute.xlu0 %1486
      %1488 = vrot.lane.b32.xlu0 %v1439, 16
      %v1489 = vpop.permute.xlu0 %1488
      %1490 = vrot.lane.b32.xlu0 %v1442, 16
      %v1491 = vpop.permute.xlu0 %1490
      %1492 = vrot.lane.b32.xlu0 %v1445, 16
      %v1493 = vpop.permute.xlu0 %1492
      %1494 = vrot.lane.b32.xlu0 %v1448, 16
      %v1495 = vpop.permute.xlu0 %1494
      %1496 = vrot.lane.b32.xlu0 %v1451, 16
      %v1497 = vpop.permute.xlu0 %1496
      %1498 = vrot.lane.b32.xlu0 %v1454, 16
      %v1499 = vpop.permute.xlu0 %1498
      %1500 = vrot.lane.b32.xlu0 %v1457, 16
      %v1501 = vpop.permute.xlu0 %1500
      %1502 = vrot.lane.b32.xlu0 %v1460, 16
      %v1503 = vpop.permute.xlu0 %1502
      %1504 = vrot.lane.b32.xlu0 %v1463, 16
      %v1505 = vpop.permute.xlu0 %1504
      %1506 = vrot.lane.b32.xlu0 %v1466, 16
      %v1507 = vpop.permute.xlu0 %1506
      %1508 = vrot.lane.b32.xlu0 %v1469, 16
      %v1509 = vpop.permute.xlu0 %1508
      %vm1510 = vcmask 31744
      %v1512 = vsel %vm1510, %v726, %v1048
      %v1514 = vsel %vm1510, %v727, %v1050
      %v1516 = vsel %vm1510, %v728, %v1052
      %v1518 = vsel %vm1510, %v729, %v1054
      %v1520 = vsel %vm1510, %v730, %v1056
      %v1522 = vsel %vm1510, %v731, %v1058
      %v1524 = vsel %vm1510, %v732, %v1060
      %v1526 = vsel %vm1510, %v733, %v1062
      %v1528 = vsel %vm1510, %v734, %v1064
      %v1530 = vsel %vm1510, %v735, %v1066
      %v1532 = vsel %vm1510, %v736, %v1068
      %v1534 = vsel %vm1510, %v737, %v1070
      %v1536 = vsel %vm1510, %v738, %v1072
      %v1538 = vsel %vm1510, %v739, %v1074
      %v1540 = vsel %vm1510, %v740, %v1076
      %v1542 = vsel %vm1510, %v741, %v1078
      %v1544 = vsel %vm1510, %v742, %v1080
      %v1546 = vsel %vm1510, %v743, %v1082
      %v1548 = vsel %vm1510, %v744, %v1084
      %v1550 = vsel %vm1510, %v745, %v1086
      %vm1551 = vcmask 64512
      %v1553 = vsel %vm1551, %v1512, %v1149
      %v1555 = vsel %vm1551, %v1514, %v1151
      %v1557 = vsel %vm1551, %v1516, %v1153
      %v1559 = vsel %vm1551, %v1518, %v1155
      %v1561 = vsel %vm1551, %v1520, %v1157
      %v1563 = vsel %vm1551, %v1522, %v1159
      %v1565 = vsel %vm1551, %v1524, %v1161
      %v1567 = vsel %vm1551, %v1526, %v1163
      %v1569 = vsel %vm1551, %v1528, %v1165
      %v1571 = vsel %vm1551, %v1530, %v1167
      %v1573 = vsel %vm1551, %v1532, %v1169
      %v1575 = vsel %vm1551, %v1534, %v1171
      %v1577 = vsel %vm1551, %v1536, %v1173
      %v1579 = vsel %vm1551, %v1538, %v1175
      %v1581 = vsel %vm1551, %v1540, %v1177
      %v1583 = vsel %vm1551, %v1542, %v1179
      %v1585 = vsel %vm1551, %v1544, %v1181
      %v1587 = vsel %vm1551, %v1546, %v1183
      %v1589 = vsel %vm1551, %v1548, %v1185
      %v1591 = vsel %vm1551, %v1550, %v1187
      %vm1592 = vcmask 97280
      %v1594 = vsel %vm1592, %v1553, %v1370
      %v1596 = vsel %vm1592, %v1555, %v1372
      %v1598 = vsel %vm1592, %v1557, %v1374
      %v1600 = vsel %vm1592, %v1559, %v1376
      %v1602 = vsel %vm1592, %v1561, %v1378
      %v1604 = vsel %vm1592, %v1563, %v1380
      %v1606 = vsel %vm1592, %v1565, %v1382
      %v1608 = vsel %vm1592, %v1567, %v1384
      %v1610 = vsel %vm1592, %v1569, %v1386
      %v1612 = vsel %vm1592, %v1571, %v1388
      %v1614 = vsel %vm1592, %v1573, %v1390
      %v1616 = vsel %vm1592, %v1575, %v1392
      %v1618 = vsel %vm1592, %v1577, %v1394
      %v1620 = vsel %vm1592, %v1579, %v1396
      %v1622 = vsel %vm1592, %v1581, %v1398
      %v1624 = vsel %vm1592, %v1583, %v1400
      %v1626 = vsel %vm1592, %v1585, %v1402
      %v1628 = vsel %vm1592, %v1587, %v1404
      %v1630 = vsel %vm1592, %v1589, %v1406
      %v1632 = vsel %vm1592, %v1591, %v1408
      %vm1633 = vcmask 130048
      %v1635 = vsel %vm1633, %v1594, %v1471
      %v1637 = vsel %vm1633, %v1596, %v1473
      %v1639 = vsel %vm1633, %v1598, %v1475
      %v1641 = vsel %vm1633, %v1600, %v1477
      %v1643 = vsel %vm1633, %v1602, %v1479
      %v1645 = vsel %vm1633, %v1604, %v1481
      %v1647 = vsel %vm1633, %v1606, %v1483
      %v1649 = vsel %vm1633, %v1608, %v1485
      %v1651 = vsel %vm1633, %v1610, %v1487
      %v1653 = vsel %vm1633, %v1612, %v1489
      %v1655 = vsel %vm1633, %v1614, %v1491
      %v1657 = vsel %vm1633, %v1616, %v1493
      %v1659 = vsel %vm1633, %v1618, %v1495
      %v1661 = vsel %vm1633, %v1620, %v1497
      %v1663 = vsel %vm1633, %v1622, %v1499
      %v1665 = vsel %vm1633, %v1624, %v1501
      %v1667 = vsel %vm1633, %v1626, %v1503
      %v1669 = vsel %vm1633, %v1628, %v1505
      %v1671 = vsel %vm1633, %v1630, %v1507
      %v1673 = vsel %vm1633, %v1632, %v1509
      %v1694 = vunpack.c.l.b16 %v1635
      %v1695 = vunpack.c.h.b16 %v1635
      %v1696 = vunpack.c.l.b16 %v1637
      %v1697 = vunpack.c.h.b16 %v1637
      %v1698 = vunpack.c.l.b16 %v1639
      %v1699 = vunpack.c.h.b16 %v1639
      %v1700 = vunpack.c.l.b16 %v1641
      %v1701 = vunpack.c.h.b16 %v1641
      %v1702 = vunpack.c.l.b16 %v1643
      %v1703 = vunpack.c.h.b16 %v1643
      %v1704 = vunpack.c.l.b16 %v1645
      %v1705 = vunpack.c.h.b16 %v1645
      %v1706 = vunpack.c.l.b16 %v1647
      %v1707 = vunpack.c.h.b16 %v1647
      %v1708 = vunpack.c.l.b16 %v1649
      %v1709 = vunpack.c.h.b16 %v1649
      %v1710 = vunpack.c.l.b16 %v1651
      %v1711 = vunpack.c.h.b16 %v1651
      %v1712 = vunpack.c.l.b16 %v1653
      %v1713 = vunpack.c.h.b16 %v1653
      %v1714 = vunpack.c.l.b16 %v1655
      %v1715 = vunpack.c.h.b16 %v1655
      %v1716 = vunpack.c.l.b16 %v1657
      %v1717 = vunpack.c.h.b16 %v1657
      %v1718 = vunpack.c.l.b16 %v1659
      %v1719 = vunpack.c.h.b16 %v1659
      %v1720 = vunpack.c.l.b16 %v1661
      %v1721 = vunpack.c.h.b16 %v1661
      %v1722 = vunpack.c.l.b16 %v1663
      %v1723 = vunpack.c.h.b16 %v1663
      %v1724 = vunpack.c.l.b16 %v1665
      %v1725 = vunpack.c.h.b16 %v1665
      %v1726 = vunpack.c.l.b16 %v1667
      %v1727 = vunpack.c.h.b16 %v1667
      %v1728 = vunpack.c.l.b16 %v1669
      %v1729 = vunpack.c.h.b16 %v1669
      %v1730 = vunpack.c.l.b16 %v1671
      %v1731 = vunpack.c.h.b16 %v1671
      %v1732 = vunpack.c.l.b16 %v1673
      %v1733 = vunpack.c.h.b16 %v1673
      %v1734 = vpack.c.b16 %v1694, %v1694
      %v1735 = vpack.c.b16 %v1695, %v1695
      %v1736 = vpack.c.b16 %v1696, %v1696
      %v1737 = vpack.c.b16 %v1697, %v1697
      %v1738 = vpack.c.b16 %v1698, %v1698
      %v1739 = vpack.c.b16 %v1699, %v1699
      %v1740 = vpack.c.b16 %v1700, %v1700
      %v1741 = vpack.c.b16 %v1701, %v1701
      %v1742 = vpack.c.b16 %v1702, %v1702
      %v1743 = vpack.c.b16 %v1703, %v1703
      %v1744 = vpack.c.b16 %v1704, %v1704
      %v1745 = vpack.c.b16 %v1705, %v1705
      %v1746 = vpack.c.b16 %v1706, %v1706
      %v1747 = vpack.c.b16 %v1707, %v1707
      %v1748 = vpack.c.b16 %v1708, %v1708
      %v1749 = vpack.c.b16 %v1709, %v1709
      %v1750 = vpack.c.b16 %v1710, %v1710
      %v1751 = vpack.c.b16 %v1711, %v1711
      %v1752 = vpack.c.b16 %v1712, %v1712
      %v1753 = vpack.c.b16 %v1713, %v1713
      %v1754 = vpack.c.b16 %v1714, %v1714
      %v1755 = vpack.c.b16 %v1715, %v1715
      %v1756 = vpack.c.b16 %v1716, %v1716
      %v1757 = vpack.c.b16 %v1717, %v1717
      %v1758 = vpack.c.b16 %v1718, %v1718
      %v1759 = vpack.c.b16 %v1719, %v1719
      %v1760 = vpack.c.b16 %v1720, %v1720
      %v1761 = vpack.c.b16 %v1721, %v1721
      %v1762 = vpack.c.b16 %v1722, %v1722
      %v1763 = vpack.c.b16 %v1723, %v1723
      %v1764 = vpack.c.b16 %v1724, %v1724
      %v1765 = vpack.c.b16 %v1725, %v1725
      %v1766 = vpack.c.b16 %v1726, %v1726
      %v1767 = vpack.c.b16 %v1727, %v1727
      %v1768 = vpack.c.b16 %v1728, %v1728
      %v1769 = vpack.c.b16 %v1729, %v1729
      %v1770 = vpack.c.b16 %v1730, %v1730
      %v1771 = vpack.c.b16 %v1731, %v1731
      %v1772 = vpack.c.b16 %v1732, %v1732
      %v1773 = vpack.c.b16 %v1733, %v1733
      %vm1814 = vcmask 158720
      %1815 = vst.msk [vmem:[#allocation3] sm:$0xf] %vm1814, %v1734
      %1816 = vst.msk [vmem:[#allocation3 + $0x4] sm:$0xf] %vm1814, %v1735
      %1817 = vst.msk [vmem:[#allocation3 + $0x8] sm:$0xf] %vm1814, %v1736
      %1818 = vst.msk [vmem:[#allocation3 + $0xc] sm:$0xf] %vm1814, %v1737
      %1819 = vst.msk [vmem:[#allocation3 + $0x10] sm:$0xf] %vm1814, %v1738
      %1820 = vst.msk [vmem:[#allocation3 + $0x14] sm:$0xf] %vm1814, %v1739
      %1821 = vst.msk [vmem:[#allocation3 + $0x18] sm:$0xf] %vm1814, %v1740
      %1822 = vst.msk [vmem:[#allocation3 + $0x1c] sm:$0xf] %vm1814, %v1741
      %1823 = vst.msk [vmem:[#allocation3 + $0x20] sm:$0xf] %vm1814, %v1742
      %1824 = vst.msk [vmem:[#allocation3 + $0x24] sm:$0xf] %vm1814, %v1743
      %1825 = vst.msk [vmem:[#allocation3 + $0x28] sm:$0xf] %vm1814, %v1744
      %1826 = vst.msk [vmem:[#allocation3 + $0x2c] sm:$0xf] %vm1814, %v1745
      %1827 = vst.msk [vmem:[#allocation3 + $0x30] sm:$0xf] %vm1814, %v1746
      %1828 = vst.msk [vmem:[#allocation3 + $0x34] sm:$0xf] %vm1814, %v1747
      %1829 = vst.msk [vmem:[#allocation3 + $0x38] sm:$0xf] %vm1814, %v1748
      %1830 = vst.msk [vmem:[#allocation3 + $0x3c] sm:$0xf] %vm1814, %v1749
      %1831 = vst.msk [vmem:[#allocation3 + $0x40] sm:$0xf] %vm1814, %v1750
      %1832 = vst.msk [vmem:[#allocation3 + $0x44] sm:$0xf] %vm1814, %v1751
      %1833 = vst.msk [vmem:[#allocation3 + $0x48] sm:$0xf] %vm1814, %v1752
      %1834 = vst.msk [vmem:[#allocation3 + $0x4c] sm:$0xf] %vm1814, %v1753
      %1835 = vst.msk [vmem:[#allocation3 + $0x50] sm:$0xf] %vm1814, %v1754
      %1836 = vst.msk [vmem:[#allocation3 + $0x54] sm:$0xf] %vm1814, %v1755
      %1837 = vst.msk [vmem:[#allocation3 + $0x58] sm:$0xf] %vm1814, %v1756
      %1838 = vst.msk [vmem:[#allocation3 + $0x5c] sm:$0xf] %vm1814, %v1757
      %1839 = vst.msk [vmem:[#allocation3 + $0x60] sm:$0xf] %vm1814, %v1758
      %1840 = vst.msk [vmem:[#allocation3 + $0x64] sm:$0xf] %vm1814, %v1759
      %1841 = vst.msk [vmem:[#allocation3 + $0x68] sm:$0xf] %vm1814, %v1760
      %1842 = vst.msk [vmem:[#allocation3 + $0x6c] sm:$0xf] %vm1814, %v1761
      %1843 = vst.msk [vmem:[#allocation3 + $0x70] sm:$0xf] %vm1814, %v1762
      %1844 = vst.msk [vmem:[#allocation3 + $0x74] sm:$0xf] %vm1814, %v1763
      %1845 = vst.msk [vmem:[#allocation3 + $0x78] sm:$0xf] %vm1814, %v1764
      %1846 = vst.msk [vmem:[#allocation3 + $0x7c] sm:$0xf] %vm1814, %v1765
      %1847 = vst.msk [vmem:[#allocation3 + $0x80] sm:$0xf] %vm1814, %v1766
      %1848 = vst.msk [vmem:[#allocation3 + $0x84] sm:$0xf] %vm1814, %v1767
      %1849 = vst.msk [vmem:[#allocation3 + $0x88] sm:$0xf] %vm1814, %v1768
      %1850 = vst.msk [vmem:[#allocation3 + $0x8c] sm:$0xf] %vm1814, %v1769
      %1851 = vst.msk [vmem:[#allocation3 + $0x90] sm:$0xf] %vm1814, %v1770
      %1852 = vst.msk [vmem:[#allocation3 + $0x94] sm:$0xf] %vm1814, %v1771
      %1853 = vst.msk [vmem:[#allocation3 + $0x98] sm:$0xf] %vm1814, %v1772
      %1854 = vst.msk [vmem:[#allocation3 + $0x9c] sm:$0xf] %vm1814, %v1773
      %v1855 = vld [vmem:[%s2] sm:$0x3]
      %v1856 = vld [vmem:[#allocation3] sm:$0xf]
      %v1857 = vld [vmem:[#allocation3 + $0x4] sm:$0xf]
      %v1858 = vld [vmem:[#allocation3 + $0x8] sm:$0xf]
      %v1859 = vld [vmem:[#allocation3 + $0xc] sm:$0xf]
      %v1860 = vld [vmem:[#allocation3 + $0x10] sm:$0xf]
      %v1861 = vld [vmem:[#allocation3 + $0x14] sm:$0xf]
      %v1862 = vld [vmem:[#allocation3 + $0x18] sm:$0xf]
      %v1863 = vld [vmem:[#allocation3 + $0x1c] sm:$0xf]
      %v1864 = vld [vmem:[#allocation3 + $0x20] sm:$0xf]
      %v1865 = vld [vmem:[#allocation3 + $0x24] sm:$0xf]
      %v1866 = vld [vmem:[#allocation3 + $0x28] sm:$0xf]
      %v1867 = vld [vmem:[#allocation3 + $0x2c] sm:$0xf]
      %v1868 = vld [vmem:[#allocation3 + $0x30] sm:$0xf]
      %v1869 = vld [vmem:[#allocation3 + $0x34] sm:$0xf]
      %v1870 = vld [vmem:[#allocation3 + $0x38] sm:$0xf]
      %v1871 = vld [vmem:[#allocation3 + $0x3c] sm:$0xf]
      %v1872 = vld [vmem:[#allocation3 + $0x40] sm:$0xf]
      %v1873 = vld [vmem:[#allocation3 + $0x44] sm:$0xf]
      %v1874 = vld [vmem:[#allocation3 + $0x48] sm:$0xf]
      %v1875 = vld [vmem:[#allocation3 + $0x4c] sm:$0xf]
      %v1876 = vld [vmem:[#allocation3 + $0x50] sm:$0xf]
      %v1877 = vld [vmem:[#allocation3 + $0x54] sm:$0xf]
      %v1878 = vld [vmem:[#allocation3 + $0x58] sm:$0xf]
      %v1879 = vld [vmem:[#allocation3 + $0x5c] sm:$0xf]
      %v1880 = vld [vmem:[#allocation3 + $0x60] sm:$0xf]
      %v1881 = vld [vmem:[#allocation3 + $0x64] sm:$0xf]
      %v1882 = vld [vmem:[#allocation3 + $0x68] sm:$0xf]
      %v1883 = vld [vmem:[#allocation3 + $0x6c] sm:$0xf]
      %v1884 = vld [vmem:[#allocation3 + $0x70] sm:$0xf]
      %v1885 = vld [vmem:[#allocation3 + $0x74] sm:$0xf]
      %v1886 = vld [vmem:[#allocation3 + $0x78] sm:$0xf]
      %v1887 = vld [vmem:[#allocation3 + $0x7c] sm:$0xf]
      %v1888 = vld [vmem:[%s1] sm:$0xff]
      %v1889 = vld [vmem:[%s1 + $0x8] sm:$0xff]
      %v1890 = vld [vmem:[%s1 + $0x10] sm:$0x33]
      %v1923 = vunpack.c.l.b16 %v1856
      %v1924 = vunpack.c.l.b16 %v1857
      %v1925 = vunpack.c.l.b16 %v1858
      %v1926 = vunpack.c.l.b16 %v1859
      %v1927 = vunpack.c.l.b16 %v1860
      %v1928 = vunpack.c.l.b16 %v1861
      %v1929 = vunpack.c.l.b16 %v1862
      %v1930 = vunpack.c.l.b16 %v1863
      %v1931 = vunpack.c.l.b16 %v1864
      %v1932 = vunpack.c.l.b16 %v1865
      %v1933 = vunpack.c.l.b16 %v1866
      %v1934 = vunpack.c.l.b16 %v1867
      %v1935 = vunpack.c.l.b16 %v1868
      %v1936 = vunpack.c.l.b16 %v1869
      %v1937 = vunpack.c.l.b16 %v1870
      %v1938 = vunpack.c.l.b16 %v1871
      %v1939 = vunpack.c.l.b16 %v1872
      %v1940 = vunpack.c.l.b16 %v1873
      %v1941 = vunpack.c.l.b16 %v1874
      %v1942 = vunpack.c.l.b16 %v1875
      %v1943 = vunpack.c.l.b16 %v1876
      %v1944 = vunpack.c.l.b16 %v1877
      %v1945 = vunpack.c.l.b16 %v1878
      %v1946 = vunpack.c.l.b16 %v1879
      %v1947 = vunpack.c.l.b16 %v1880
      %v1948 = vunpack.c.l.b16 %v1881
      %v1949 = vunpack.c.l.b16 %v1882
      %v1950 = vunpack.c.l.b16 %v1883
      %v1951 = vunpack.c.l.b16 %v1884
      %v1952 = vunpack.c.l.b16 %v1885
      %v1953 = vunpack.c.l.b16 %v1886
      %v1954 = vunpack.c.l.b16 %v1887
      %v1955 = vpack.c.b16 %v1924, %v1923
      %v1956 = vpack.c.b16 %v1926, %v1925
      %v1957 = vpack.c.b16 %v1928, %v1927
      %v1958 = vpack.c.b16 %v1930, %v1929
      %v1959 = vpack.c.b16 %v1932, %v1931
      %v1960 = vpack.c.b16 %v1934, %v1933
      %v1961 = vpack.c.b16 %v1936, %v1935
      %v1962 = vpack.c.b16 %v1938, %v1937
      %v1963 = vpack.c.b16 %v1940, %v1939
      %v1964 = vpack.c.b16 %v1942, %v1941
      %v1965 = vpack.c.b16 %v1944, %v1943
      %v1966 = vpack.c.b16 %v1946, %v1945
      %v1967 = vpack.c.b16 %v1948, %v1947
      %v1968 = vpack.c.b16 %v1950, %v1949
      %v1969 = vpack.c.b16 %v1952, %v1951
      %v1970 = vpack.c.b16 %v1954, %v1953
      %v1974 = vunpack.c.l.b16 %v1888
      %v1975 = vunpack.c.h.b16 %v1888
      %v1976 = vunpack.c.l.b16 %v1889
      %v1977 = vunpack.c.h.b16 %v1889
      %v1978 = vunpack.c.l.b16 %v1890
      %v1979 = vunpack.c.h.b16 %v1890
      %v1980 = vpack.c.b16 %v1976, %v1974
      %v1981 = vpack.c.b16 %v1977, %v1975
      %v1982 = vpack.c.b16 %v1978, %v1978
      %v1983 = vpack.c.b16 %v1979, %v1979
      %vm1986 = vcmask 162816
      %v1988 = vsel %vm1986, %v1955, 0
      %v1991 = vsel %vm1986, %v1956, 0
      %v1994 = vsel %vm1986, %v1957, 0
      %v1997 = vsel %vm1986, %v1958, 0
      %v2000 = vsel %vm1986, %v1959, 0
      %v2003 = vsel %vm1986, %v1960, 0
      %v2006 = vsel %vm1986, %v1961, 0
      %v2009 = vsel %vm1986, %v1962, 0
      %v2012 = vsel %vm1986, %v1963, 0
      %v2015 = vsel %vm1986, %v1964, 0
      %v2018 = vsel %vm1986, %v1965, 0
      %v2021 = vsel %vm1986, %v1966, 0
      %v2024 = vsel %vm1986, %v1967, 0
      %v2027 = vsel %vm1986, %v1968, 0
      %v2030 = vsel %vm1986, %v1969, 0
      %v2033 = vsel %vm1986, %v1970, 0
      %vm2035 = vcmask 1041408
      %v2037 = vsel %vm2035, %v1982, 0
      %v2040 = vsel %vm2035, %v1983, 0
      %2042 = vmatprep.subr.bf16.mxu0 0
      %2043 = vmatpush1.bf16.msra.mxu0 0
      %2044 = vmatprep.subr.bf16.mxu0 0
      %2045 = vmatpush1.bf16.msra.mxu0 0
      %2046 = vmatprep.subr.bf16.mxu0 0
      %2047 = vmatpush1.bf16.msra.mxu0 0
      %2048 = vmatprep.subr.bf16.mxu0 0
      %2049 = vmatpush1.bf16.msra.mxu0 0
      %2050 = vmatprep.subr.bf16.mxu0 0
      %2051 = vmatpush1.bf16.msra.mxu0 0
      %2052 = vmatprep.subr.bf16.mxu0 0
      %2053 = vmatpush1.bf16.msra.mxu0 0
      %2054 = vmatprep.subr.bf16.mxu0 %v2040
      %2055 = vmatpush1.bf16.msra.mxu0 %v2037
      %2056 = vmatprep.subr.bf16.mxu0 %v1981
      %2057 = vmatpush1.bf16.msra.mxu0 %v1980
      %2058 = vmatprep.subr.bf16.mxu0 0
      %2059 = vmatpush2.bf16.msra.mxu0 0
      %2060 = vmatprep.subr.bf16.mxu0 0
      %2061 = vmatpush2.bf16.msra.mxu0 0
      %2062 = vmatprep.subr.bf16.mxu0 0
      %2063 = vmatpush2.bf16.msra.mxu0 0
      %2064 = vmatprep.subr.bf16.mxu0 0
      %2065 = vmatpush2.bf16.msra.mxu0 0
      %2066 = vmatprep.subr.bf16.mxu0 0
      %2067 = vmatpush2.bf16.msra.mxu0 0
      %2068 = vmatprep.subr.bf16.mxu0 0
      %2069 = vmatpush2.bf16.msra.mxu0 0
      %2070 = vmatprep.subr.bf16.mxu0 0
      %2071 = vmatpush2.bf16.msra.mxu0 0
      %2072 = vmatprep.subr.bf16.mxu0 0
      %2073 = vmatpush2.bf16.msra.mxu0 0
      %2074 = vmatprep.mubr.bf16.mxu0 0
      %2075 = vmatmul.mubr.bf16.gmra.mxu0 %v1988
      %v2076 = vpop.f32.mrf.mxu0
      %v2077 = vadd.f32 0.0, %v2076
      %v2078 = vpop.f32.mrf.mxu0
      %v2079 = vadd.f32 0.0, %v2078
      %v2080 = vpop.f32.mrf.mxu0
      %v2081 = vadd.f32 0.0, %v2080
      %v2082 = vpop.f32.mrf.mxu0
      %v2083 = vadd.f32 0.0, %v2082
      %2084 = vmatprep.mubr.bf16.mxu0 0
      %2085 = vmatmul.mubr.bf16.gmra.mxu0 %v1991
      %v2086 = vpop.f32.mrf.mxu0
      %v2087 = vadd.f32 0.0, %v2086
      %v2088 = vpop.f32.mrf.mxu0
      %v2089 = vadd.f32 0.0, %v2088
      %v2090 = vpop.f32.mrf.mxu0
      %v2091 = vadd.f32 0.0, %v2090
      %v2092 = vpop.f32.mrf.mxu0
      %v2093 = vadd.f32 0.0, %v2092
      %2094 = vmatprep.mubr.bf16.mxu0 0
      %2095 = vmatmul.mubr.bf16.gmra.mxu0 %v1994
      %v2096 = vpop.f32.mrf.mxu0
      %v2097 = vadd.f32 0.0, %v2096
      %v2098 = vpop.f32.mrf.mxu0
      %v2099 = vadd.f32 0.0, %v2098
      %v2100 = vpop.f32.mrf.mxu0
      %v2101 = vadd.f32 0.0, %v2100
      %v2102 = vpop.f32.mrf.mxu0
      %v2103 = vadd.f32 0.0, %v2102
      %2104 = vmatprep.mubr.bf16.mxu0 0
      %2105 = vmatmul.mubr.bf16.gmra.mxu0 %v1997
      %v2106 = vpop.f32.mrf.mxu0
      %v2107 = vadd.f32 0.0, %v2106
      %v2108 = vpop.f32.mrf.mxu0
      %v2109 = vadd.f32 0.0, %v2108
      %v2110 = vpop.f32.mrf.mxu0
      %v2111 = vadd.f32 0.0, %v2110
      %v2112 = vpop.f32.mrf.mxu0
      %v2113 = vadd.f32 0.0, %v2112
      %2114 = vmatprep.mubr.bf16.mxu0 0
      %2115 = vmatmul.mubr.bf16.gmra.mxu0 %v2000
      %v2116 = vpop.f32.mrf.mxu0
      %v2117 = vadd.f32 0.0, %v2116
      %v2118 = vpop.f32.mrf.mxu0
      %v2119 = vadd.f32 0.0, %v2118
      %v2120 = vpop.f32.mrf.mxu0
      %v2121 = vadd.f32 0.0, %v2120
      %v2122 = vpop.f32.mrf.mxu0
      %v2123 = vadd.f32 0.0, %v2122
      %2124 = vmatprep.mubr.bf16.mxu0 0
      %2125 = vmatmul.mubr.bf16.gmra.mxu0 %v2003
      %v2126 = vpop.f32.mrf.mxu0
      %v2127 = vadd.f32 0.0, %v2126
      %v2128 = vpop.f32.mrf.mxu0
      %v2129 = vadd.f32 0.0, %v2128
      %v2130 = vpop.f32.mrf.mxu0
      %v2131 = vadd.f32 0.0, %v2130
      %v2132 = vpop.f32.mrf.mxu0
      %v2133 = vadd.f32 0.0, %v2132
      %2134 = vmatprep.mubr.bf16.mxu0 0
      %2135 = vmatmul.mubr.bf16.gmra.mxu0 %v2006
      %v2136 = vpop.f32.mrf.mxu0
      %v2137 = vadd.f32 0.0, %v2136
      %v2138 = vpop.f32.mrf.mxu0
      %v2139 = vadd.f32 0.0, %v2138
      %v2140 = vpop.f32.mrf.mxu0
      %v2141 = vadd.f32 0.0, %v2140
      %v2142 = vpop.f32.mrf.mxu0
      %v2143 = vadd.f32 0.0, %v2142
      %2144 = vmatprep.mubr.bf16.mxu0 0
      %2145 = vmatmul.mubr.bf16.gmra.mxu0 %v2009
      %v2146 = vpop.f32.mrf.mxu0
      %v2147 = vadd.f32 0.0, %v2146
      %v2148 = vpop.f32.mrf.mxu0
      %v2149 = vadd.f32 0.0, %v2148
      %v2150 = vpop.f32.mrf.mxu0
      %v2151 = vadd.f32 0.0, %v2150
      %v2152 = vpop.f32.mrf.mxu0
      %v2153 = vadd.f32 0.0, %v2152
      %2154 = vmatprep.mubr.bf16.mxu0 0
      %2155 = vmatmul.mubr.bf16.gmra.mxu0 %v2012
      %v2156 = vpop.f32.mrf.mxu0
      %v2157 = vadd.f32 0.0, %v2156
      %v2158 = vpop.f32.mrf.mxu0
      %v2159 = vadd.f32 0.0, %v2158
      %v2160 = vpop.f32.mrf.mxu0
      %v2161 = vadd.f32 0.0, %v2160
      %v2162 = vpop.f32.mrf.mxu0
      %v2163 = vadd.f32 0.0, %v2162
      %2164 = vmatprep.mubr.bf16.mxu0 0
      %2165 = vmatmul.mubr.bf16.gmra.mxu0 %v2015
      %v2166 = vpop.f32.mrf.mxu0
      %v2167 = vadd.f32 0.0, %v2166
      %v2168 = vpop.f32.mrf.mxu0
      %v2169 = vadd.f32 0.0, %v2168
      %v2170 = vpop.f32.mrf.mxu0
      %v2171 = vadd.f32 0.0, %v2170
      %v2172 = vpop.f32.mrf.mxu0
      %v2173 = vadd.f32 0.0, %v2172
      %2174 = vmatprep.mubr.bf16.mxu0 0
      %2175 = vmatmul.mubr.bf16.gmra.mxu0 %v2018
      %v2176 = vpop.f32.mrf.mxu0
      %v2177 = vadd.f32 0.0, %v2176
      %v2178 = vpop.f32.mrf.mxu0
      %v2179 = vadd.f32 0.0, %v2178
      %v2180 = vpop.f32.mrf.mxu0
      %v2181 = vadd.f32 0.0, %v2180
      %v2182 = vpop.f32.mrf.mxu0
      %v2183 = vadd.f32 0.0, %v2182
      %2184 = vmatprep.mubr.bf16.mxu0 0
      %2185 = vmatmul.mubr.bf16.gmra.mxu0 %v2021
      %v2186 = vpop.f32.mrf.mxu0
      %v2187 = vadd.f32 0.0, %v2186
      %v2188 = vpop.f32.mrf.mxu0
      %v2189 = vadd.f32 0.0, %v2188
      %v2190 = vpop.f32.mrf.mxu0
      %v2191 = vadd.f32 0.0, %v2190
      %v2192 = vpop.f32.mrf.mxu0
      %v2193 = vadd.f32 0.0, %v2192
      %2194 = vmatprep.mubr.bf16.mxu0 0
      %2195 = vmatmul.mubr.bf16.gmra.mxu0 %v2024
      %v2196 = vpop.f32.mrf.mxu0
      %v2197 = vadd.f32 0.0, %v2196
      %v2198 = vpop.f32.mrf.mxu0
      %v2199 = vadd.f32 0.0, %v2198
      %v2200 = vpop.f32.mrf.mxu0
      %v2201 = vadd.f32 0.0, %v2200
      %v2202 = vpop.f32.mrf.mxu0
      %v2203 = vadd.f32 0.0, %v2202
      %2204 = vmatprep.mubr.bf16.mxu0 0
      %2205 = vmatmul.mubr.bf16.gmra.mxu0 %v2027
      %v2206 = vpop.f32.mrf.mxu0
      %v2207 = vadd.f32 0.0, %v2206
      %v2208 = vpop.f32.mrf.mxu0
      %v2209 = vadd.f32 0.0, %v2208
      %v2210 = vpop.f32.mrf.mxu0
      %v2211 = vadd.f32 0.0, %v2210
      %v2212 = vpop.f32.mrf.mxu0
      %v2213 = vadd.f32 0.0, %v2212
      %2214 = vmatprep.mubr.bf16.mxu0 0
      %2215 = vmatmul.mubr.bf16.gmra.mxu0 %v2030
      %v2216 = vpop.f32.mrf.mxu0
      %v2217 = vadd.f32 0.0, %v2216
      %v2218 = vpop.f32.mrf.mxu0
      %v2219 = vadd.f32 0.0, %v2218
      %v2220 = vpop.f32.mrf.mxu0
      %v2221 = vadd.f32 0.0, %v2220
      %v2222 = vpop.f32.mrf.mxu0
      %v2223 = vadd.f32 0.0, %v2222
      %2224 = vmatprep.mubr.bf16.mxu0 0
      %2225 = vmatmul.mubr.bf16.gmra.mxu0 %v2033
      %v2226 = vpop.f32.mrf.mxu0
      %v2227 = vadd.f32 0.0, %v2226
      %v2228 = vpop.f32.mrf.mxu0
      %v2229 = vadd.f32 0.0, %v2228
      %v2230 = vpop.f32.mrf.mxu0
      %v2231 = vadd.f32 0.0, %v2230
      %v2232 = vpop.f32.mrf.mxu0
      %v2233 = vadd.f32 0.0, %v2232
      %2234 = vdwg.mxu0
      %v2236 = vlaneseq
      %v2237 = vshrl.u32 %v2236, 7
      %v2238 = vsub.s32 0, %v2237
      %v2239 = vrot.slane %v1855, %v2238
      %v2240 = vlaneseq
      %v2241 = vshrl.u32 %v2240, 7
      %v2242 = vsub.s32 1, %v2241
      %v2243 = vrot.slane %v1855, %v2242
      %v2246 = vadd.f32 %v2239, %v2077
      %v2247 = vadd.f32 %v2243, %v2079
      %v2248 = vadd.f32 %v2239, %v2081
      %v2249 = vadd.f32 %v2243, %v2083
      %v2250 = vadd.f32 %v2239, %v2087
      %v2251 = vadd.f32 %v2243, %v2089
      %v2252 = vadd.f32 %v2239, %v2091
      %v2253 = vadd.f32 %v2243, %v2093
      %v2254 = vadd.f32 %v2239, %v2097
      %v2255 = vadd.f32 %v2243, %v2099
      %v2256 = vadd.f32 %v2239, %v2101
      %v2257 = vadd.f32 %v2243, %v2103
      %v2258 = vadd.f32 %v2239, %v2107
      %v2259 = vadd.f32 %v2243, %v2109
      %v2260 = vadd.f32 %v2239, %v2111
      %v2261 = vadd.f32 %v2243, %v2113
      %v2262 = vadd.f32 %v2239, %v2117
      %v2263 = vadd.f32 %v2243, %v2119
      %v2264 = vadd.f32 %v2239, %v2121
      %v2265 = vadd.f32 %v2243, %v2123
      %v2266 = vadd.f32 %v2239, %v2127
      %v2267 = vadd.f32 %v2243, %v2129
      %v2268 = vadd.f32 %v2239, %v2131
      %v2269 = vadd.f32 %v2243, %v2133
      %v2270 = vadd.f32 %v2239, %v2137
      %v2271 = vadd.f32 %v2243, %v2139
      %v2272 = vadd.f32 %v2239, %v2141
      %v2273 = vadd.f32 %v2243, %v2143
      %v2274 = vadd.f32 %v2239, %v2147
      %v2275 = vadd.f32 %v2243, %v2149
      %v2276 = vadd.f32 %v2239, %v2151
      %v2277 = vadd.f32 %v2243, %v2153
      %v2278 = vadd.f32 %v2239, %v2157
      %v2279 = vadd.f32 %v2243, %v2159
      %v2280 = vadd.f32 %v2239, %v2161
      %v2281 = vadd.f32 %v2243, %v2163
      %v2282 = vadd.f32 %v2239, %v2167
      %v2283 = vadd.f32 %v2243, %v2169
      %v2284 = vadd.f32 %v2239, %v2171
      %v2285 = vadd.f32 %v2243, %v2173
      %v2286 = vadd.f32 %v2239, %v2177
      %v2287 = vadd.f32 %v2243, %v2179
      %v2288 = vadd.f32 %v2239, %v2181
      %v2289 = vadd.f32 %v2243, %v2183
      %v2290 = vadd.f32 %v2239, %v2187
      %v2291 = vadd.f32 %v2243, %v2189
      %v2292 = vadd.f32 %v2239, %v2191
      %v2293 = vadd.f32 %v2243, %v2193
      %v2294 = vadd.f32 %v2239, %v2197
      %v2295 = vadd.f32 %v2243, %v2199
      %v2296 = vadd.f32 %v2239, %v2201
      %v2297 = vadd.f32 %v2243, %v2203
      %v2298 = vadd.f32 %v2239, %v2207
      %v2299 = vadd.f32 %v2243, %v2209
      %v2300 = vadd.f32 %v2239, %v2211
      %v2301 = vadd.f32 %v2243, %v2213
      %v2302 = vadd.f32 %v2239, %v2217
      %v2303 = vadd.f32 %v2243, %v2219
      %v2304 = vadd.f32 %v2239, %v2221
      %v2305 = vadd.f32 %v2243, %v2223
      %v2306 = vadd.f32 %v2239, %v2227
      %v2307 = vadd.f32 %v2243, %v2229
      %v2308 = vadd.f32 %v2239, %v2231
      %v2309 = vadd.f32 %v2243, %v2233
      %2310 = vst [vmem:[#allocation4] sm:$0xff] %v2246
      %2311 = vst [vmem:[#allocation4 + $0x8] sm:$0xff] %v2247
      %2312 = vst [vmem:[#allocation4 + $0x10] sm:$0xff] %v2248
      %2313 = vst [vmem:[#allocation4 + $0x18] sm:$0xff] %v2249
      %2314 = vst [vmem:[#allocation4 + $0x20] sm:$0xff] %v2250
      %2315 = vst [vmem:[#allocation4 + $0x28] sm:$0xff] %v2251
      %2316 = vst [vmem:[#allocation4 + $0x30] sm:$0xff] %v2252
      %2317 = vst [vmem:[#allocation4 + $0x38] sm:$0xff] %v2253
      %2318 = vst [vmem:[#allocation4 + $0x40] sm:$0xff] %v2254
      %2319 = vst [vmem:[#allocation4 + $0x48] sm:$0xff] %v2255
      %2320 = vst [vmem:[#allocation4 + $0x50] sm:$0xff] %v2256
      %2321 = vst [vmem:[#allocation4 + $0x58] sm:$0xff] %v2257
      %2322 = vst [vmem:[#allocation4 + $0x60] sm:$0xff] %v2258
      %2323 = vst [vmem:[#allocation4 + $0x68] sm:$0xff] %v2259
      %2324 = vst [vmem:[#allocation4 + $0x70] sm:$0xff] %v2260
      %2325 = vst [vmem:[#allocation4 + $0x78] sm:$0xff] %v2261
      %2326 = vst [vmem:[#allocation4 + $0x80] sm:$0xff] %v2262
      %2327 = vst [vmem:[#allocation4 + $0x88] sm:$0xff] %v2263
      %2328 = vst [vmem:[#allocation4 + $0x90] sm:$0xff] %v2264
      %2329 = vst [vmem:[#allocation4 + $0x98] sm:$0xff] %v2265
      %2330 = vst [vmem:[#allocation4 + $0xa0] sm:$0xff] %v2266
      %2331 = vst [vmem:[#allocation4 + $0xa8] sm:$0xff] %v2267
      %2332 = vst [vmem:[#allocation4 + $0xb0] sm:$0xff] %v2268
      %2333 = vst [vmem:[#allocation4 + $0xb8] sm:$0xff] %v2269
      %2334 = vst [vmem:[#allocation4 + $0xc0] sm:$0xff] %v2270
      %2335 = vst [vmem:[#allocation4 + $0xc8] sm:$0xff] %v2271
      %2336 = vst [vmem:[#allocation4 + $0xd0] sm:$0xff] %v2272
      %2337 = vst [vmem:[#allocation4 + $0xd8] sm:$0xff] %v2273
      %2338 = vst [vmem:[#allocation4 + $0xe0] sm:$0xff] %v2274
      %2339 = vst [vmem:[#allocation4 + $0xe8] sm:$0xff] %v2275
      %2340 = vst [vmem:[#allocation4 + $0xf0] sm:$0xff] %v2276
      %2341 = vst [vmem:[#allocation4 + $0xf8] sm:$0xff] %v2277
      %2342 = vst [vmem:[#allocation4 + $0x100] sm:$0xff] %v2278
      %2343 = vst [vmem:[#allocation4 + $0x108] sm:$0xff] %v2279
      %2344 = vst [vmem:[#allocation4 + $0x110] sm:$0xff] %v2280
      %2345 = vst [vmem:[#allocation4 + $0x118] sm:$0xff] %v2281
      %2346 = vst [vmem:[#allocation4 + $0x120] sm:$0xff] %v2282
      %2347 = vst [vmem:[#allocation4 + $0x128] sm:$0xff] %v2283
      %2348 = vst [vmem:[#allocation4 + $0x130] sm:$0xff] %v2284
      %2349 = vst [vmem:[#allocation4 + $0x138] sm:$0xff] %v2285
      %2350 = vst [vmem:[#allocation4 + $0x140] sm:$0xff] %v2286
      %2351 = vst [vmem:[#allocation4 + $0x148] sm:$0xff] %v2287
      %2352 = vst [vmem:[#allocation4 + $0x150] sm:$0xff] %v2288
      %2353 = vst [vmem:[#allocation4 + $0x158] sm:$0xff] %v2289
      %2354 = vst [vmem:[#allocation4 + $0x160] sm:$0xff] %v2290
      %2355 = vst [vmem:[#allocation4 + $0x168] sm:$0xff] %v2291
      %2356 = vst [vmem:[#allocation4 + $0x170] sm:$0xff] %v2292
      %2357 = vst [vmem:[#allocation4 + $0x178] sm:$0xff] %v2293
      %2358 = vst [vmem:[#allocation4 + $0x180] sm:$0xff] %v2294
      %2359 = vst [vmem:[#allocation4 + $0x188] sm:$0xff] %v2295
      %2360 = vst [vmem:[#allocation4 + $0x190] sm:$0xff] %v2296
      %2361 = vst [vmem:[#allocation4 + $0x198] sm:$0xff] %v2297
      %2362 = vst [vmem:[#allocation4 + $0x1a0] sm:$0xff] %v2298
      %2363 = vst [vmem:[#allocation4 + $0x1a8] sm:$0xff] %v2299
      %2364 = vst [vmem:[#allocation4 + $0x1b0] sm:$0xff] %v2300
      %2365 = vst [vmem:[#allocation4 + $0x1b8] sm:$0xff] %v2301
      %2366 = vst [vmem:[#allocation4 + $0x1c0] sm:$0xff] %v2302
      %2367 = vst [vmem:[#allocation4 + $0x1c8] sm:$0xff] %v2303
      %2368 = vst [vmem:[#allocation4 + $0x1d0] sm:$0xff] %v2304
      %2369 = vst [vmem:[#allocation4 + $0x1d8] sm:$0xff] %v2305
      %2370 = vst [vmem:[#allocation4 + $0x1e0] sm:$0xff] %v2306
      %2371 = vst [vmem:[#allocation4 + $0x1e8] sm:$0xff] %v2307
      %2372 = vst [vmem:[#allocation4 + $0x1f0] sm:$0xff] %v2308
      %2373 = vst [vmem:[#allocation4 + $0x1f8] sm:$0xff] %v2309
      %v2374 = vld [vmem:[#allocation4] sm:$0xff]
      %v2375 = vld [vmem:[#allocation4 + $0x8] sm:$0xff]
      %v2376 = vld [vmem:[#allocation4 + $0x10] sm:$0xff]
      %v2377 = vld [vmem:[#allocation4 + $0x18] sm:$0xff]
      %v2378 = vld [vmem:[#allocation4 + $0x20] sm:$0xff]
      %v2379 = vld [vmem:[#allocation4 + $0x28] sm:$0xff]
      %v2380 = vld [vmem:[#allocation4 + $0x30] sm:$0xff]
      %v2381 = vld [vmem:[#allocation4 + $0x38] sm:$0xff]
      %v2382 = vld [vmem:[#allocation4 + $0x40] sm:$0xff]
      %v2383 = vld [vmem:[#allocation4 + $0x48] sm:$0xff]
      %v2384 = vld [vmem:[#allocation4 + $0x50] sm:$0xff]
      %v2385 = vld [vmem:[#allocation4 + $0x58] sm:$0xff]
      %v2386 = vld [vmem:[#allocation4 + $0x60] sm:$0xff]
      %v2387 = vld [vmem:[#allocation4 + $0x68] sm:$0xff]
      %v2388 = vld [vmem:[#allocation4 + $0x70] sm:$0xff]
      %v2389 = vld [vmem:[#allocation4 + $0x78] sm:$0xff]
      %v2390 = vld [vmem:[#allocation4 + $0x80] sm:$0xff]
      %v2391 = vld [vmem:[#allocation4 + $0x88] sm:$0xff]
      %v2392 = vld [vmem:[#allocation4 + $0x90] sm:$0xff]
      %v2393 = vld [vmem:[#allocation4 + $0x98] sm:$0xff]
      %v2394 = vld [vmem:[#allocation4 + $0xa0] sm:$0xff]
      %v2395 = vld [vmem:[#allocation4 + $0xa8] sm:$0xff]
      %v2396 = vld [vmem:[#allocation4 + $0xb0] sm:$0xff]
      %v2397 = vld [vmem:[#allocation4 + $0xb8] sm:$0xff]
      %v2398 = vld [vmem:[#allocation4 + $0xc0] sm:$0xff]
      %v2399 = vld [vmem:[#allocation4 + $0xc8] sm:$0xff]
      %v2400 = vld [vmem:[#allocation4 + $0xd0] sm:$0xff]
      %v2401 = vld [vmem:[#allocation4 + $0xd8] sm:$0xff]
      %v2402 = vld [vmem:[#allocation4 + $0xe0] sm:$0xff]
      %v2403 = vld [vmem:[#allocation4 + $0xe8] sm:$0xff]
      %v2404 = vld [vmem:[#allocation4 + $0xf0] sm:$0xff]
      %v2405 = vld [vmem:[#allocation4 + $0xf8] sm:$0xff]
      %v2406 = vld [vmem:[#allocation4 + $0x100] sm:$0xff]
      %v2407 = vld [vmem:[#allocation4 + $0x108] sm:$0xff]
      %v2408 = vld [vmem:[#allocation4 + $0x110] sm:$0xff]
      %v2409 = vld [vmem:[#allocation4 + $0x118] sm:$0xff]
      %v2410 = vld [vmem:[#allocation4 + $0x120] sm:$0xff]
      %v2411 = vld [vmem:[#allocation4 + $0x128] sm:$0xff]
      %v2412 = vld [vmem:[#allocation4 + $0x130] sm:$0xff]
      %v2413 = vld [vmem:[#allocation4 + $0x138] sm:$0xff]
      %v2414 = vld [vmem:[#allocation4 + $0x140] sm:$0xff]
      %v2415 = vld [vmem:[#allocation4 + $0x148] sm:$0xff]
      %v2416 = vld [vmem:[#allocation4 + $0x150] sm:$0xff]
      %v2417 = vld [vmem:[#allocation4 + $0x158] sm:$0xff]
      %v2418 = vld [vmem:[#allocation4 + $0x160] sm:$0xff]
      %v2419 = vld [vmem:[#allocation4 + $0x168] sm:$0xff]
      %v2420 = vld [vmem:[#allocation4 + $0x170] sm:$0xff]
      %v2421 = vld [vmem:[#allocation4 + $0x178] sm:$0xff]
      %v2422 = vld [vmem:[#allocation4 + $0x180] sm:$0xff]
      %v2423 = vld [vmem:[#allocation4 + $0x188] sm:$0xff]
      %v2424 = vld [vmem:[#allocation4 + $0x190] sm:$0xff]
      %v2425 = vld [vmem:[#allocation4 + $0x198] sm:$0xff]
      %v2426 = vld [vmem:[#allocation4 + $0x1a0] sm:$0xff]
      %v2427 = vld [vmem:[#allocation4 + $0x1a8] sm:$0xff]
      %v2428 = vld [vmem:[#allocation4 + $0x1b0] sm:$0xff]
      %v2429 = vld [vmem:[#allocation4 + $0x1b8] sm:$0xff]
      %v2430 = vld [vmem:[#allocation4 + $0x1c0] sm:$0xff]
      %v2431 = vld [vmem:[#allocation4 + $0x1c8] sm:$0xff]
      %v2432 = vld [vmem:[#allocation4 + $0x1d0] sm:$0xff]
      %v2433 = vld [vmem:[#allocation4 + $0x1d8] sm:$0xff]
      %v2434 = vld [vmem:[#allocation4 + $0x1e0] sm:$0xff]
      %v2435 = vld [vmem:[#allocation4 + $0x1e8] sm:$0xff]
      %v2436 = vld [vmem:[#allocation4 + $0x1f0] sm:$0xff]
      %v2437 = vld [vmem:[#allocation4 + $0x1f8] sm:$0xff]
      %v2438 = vld [vmem:[#allocation3 + $0x8] sm:$0xf]
      %v2439 = vld [vmem:[#allocation3 + $0xc] sm:$0xf]
      %v2440 = vld [vmem:[#allocation3 + $0x10] sm:$0xf]
      %v2441 = vld [vmem:[#allocation3 + $0x14] sm:$0xf]
      %v2442 = vld [vmem:[#allocation3 + $0x18] sm:$0xf]
      %v2443 = vld [vmem:[#allocation3 + $0x1c] sm:$0xf]
      %v2444 = vld [vmem:[#allocation3 + $0x20] sm:$0xf]
      %v2445 = vld [vmem:[#allocation3 + $0x24] sm:$0xf]
      %v2446 = vld [vmem:[#allocation3 + $0x28] sm:$0xf]
      %v2447 = vld [vmem:[#allocation3 + $0x2c] sm:$0xf]
      %v2448 = vld [vmem:[#allocation3 + $0x30] sm:$0xf]
      %v2449 = vld [vmem:[#allocation3 + $0x34] sm:$0xf]
      %v2450 = vld [vmem:[#allocation3 + $0x38] sm:$0xf]
      %v2451 = vld [vmem:[#allocation3 + $0x3c] sm:$0xf]
      %v2452 = vld [vmem:[#allocation3 + $0x40] sm:$0xf]
      %v2453 = vld [vmem:[#allocation3 + $0x44] sm:$0xf]
      %v2454 = vld [vmem:[#allocation3 + $0x48] sm:$0xf]
      %v2455 = vld [vmem:[#allocation3 + $0x4c] sm:$0xf]
      %v2456 = vld [vmem:[#allocation3 + $0x50] sm:$0xf]
      %v2457 = vld [vmem:[#allocation3 + $0x54] sm:$0xf]
      %v2458 = vld [vmem:[#allocation3 + $0x58] sm:$0xf]
      %v2459 = vld [vmem:[#allocation3 + $0x5c] sm:$0xf]
      %v2460 = vld [vmem:[#allocation3 + $0x60] sm:$0xf]
      %v2461 = vld [vmem:[#allocation3 + $0x64] sm:$0xf]
      %v2462 = vld [vmem:[#allocation3 + $0x68] sm:$0xf]
      %v2463 = vld [vmem:[#allocation3 + $0x6c] sm:$0xf]
      %v2464 = vld [vmem:[#allocation3 + $0x70] sm:$0xf]
      %v2465 = vld [vmem:[#allocation3 + $0x74] sm:$0xf]
      %v2466 = vld [vmem:[#allocation3 + $0x78] sm:$0xf]
      %v2467 = vld [vmem:[#allocation3 + $0x7c] sm:$0xf]
      %v2468 = vld [vmem:[#allocation3 + $0x80] sm:$0xf]
      %v2469 = vld [vmem:[#allocation3 + $0x84] sm:$0xf]
      %s2470 = scalar_lea.vmem %s1, 24
      %v2471 = vld [vmem:[%s2470] sm:$0xff]
      %v2472 = vld [vmem:[%s2470 + $0x8] sm:$0xff]
      %v2473 = vld [vmem:[%s2470 + $0x10] sm:$0x33]
      %v2506 = vunpack.c.l.b16 %v2438
      %v2507 = vunpack.c.l.b16 %v2439
      %v2508 = vunpack.c.l.b16 %v2440
      %v2509 = vunpack.c.l.b16 %v2441
      %v2510 = vunpack.c.l.b16 %v2442
      %v2511 = vunpack.c.l.b16 %v2443
      %v2512 = vunpack.c.l.b16 %v2444
      %v2513 = vunpack.c.l.b16 %v2445
      %v2514 = vunpack.c.l.b16 %v2446
      %v2515 = vunpack.c.l.b16 %v2447
      %v2516 = vunpack.c.l.b16 %v2448
      %v2517 = vunpack.c.l.b16 %v2449
      %v2518 = vunpack.c.l.b16 %v2450
      %v2519 = vunpack.c.l.b16 %v2451
      %v2520 = vunpack.c.l.b16 %v2452
      %v2521 = vunpack.c.l.b16 %v2453
      %v2522 = vunpack.c.l.b16 %v2454
      %v2523 = vunpack.c.l.b16 %v2455
      %v2524 = vunpack.c.l.b16 %v2456
      %v2525 = vunpack.c.l.b16 %v2457
      %v2526 = vunpack.c.l.b16 %v2458
      %v2527 = vunpack.c.l.b16 %v2459
      %v2528 = vunpack.c.l.b16 %v2460
      %v2529 = vunpack.c.l.b16 %v2461
      %v2530 = vunpack.c.l.b16 %v2462
      %v2531 = vunpack.c.l.b16 %v2463
      %v2532 = vunpack.c.l.b16 %v2464
      %v2533 = vunpack.c.l.b16 %v2465
      %v2534 = vunpack.c.l.b16 %v2466
      %v2535 = vunpack.c.l.b16 %v2467
      %v2536 = vunpack.c.l.b16 %v2468
      %v2537 = vunpack.c.l.b16 %v2469
      %v2538 = vpack.c.b16 %v2507, %v2506
      %v2539 = vpack.c.b16 %v2509, %v2508
      %v2540 = vpack.c.b16 %v2511, %v2510
      %v2541 = vpack.c.b16 %v2513, %v2512
      %v2542 = vpack.c.b16 %v2515, %v2514
      %v2543 = vpack.c.b16 %v2517, %v2516
      %v2544 = vpack.c.b16 %v2519, %v2518
      %v2545 = vpack.c.b16 %v2521, %v2520
      %v2546 = vpack.c.b16 %v2523, %v2522
      %v2547 = vpack.c.b16 %v2525, %v2524
      %v2548 = vpack.c.b16 %v2527, %v2526
      %v2549 = vpack.c.b16 %v2529, %v2528
      %v2550 = vpack.c.b16 %v2531, %v2530
      %v2551 = vpack.c.b16 %v2533, %v2532
      %v2552 = vpack.c.b16 %v2535, %v2534
      %v2553 = vpack.c.b16 %v2537, %v2536
      %v2557 = vunpack.c.l.b16 %v2471
      %v2558 = vunpack.c.h.b16 %v2471
      %v2559 = vunpack.c.l.b16 %v2472
      %v2560 = vunpack.c.h.b16 %v2472
      %v2561 = vunpack.c.l.b16 %v2473
      %v2562 = vunpack.c.h.b16 %v2473
      %v2563 = vpack.c.b16 %v2559, %v2557
      %v2564 = vpack.c.b16 %v2560, %v2558
      %v2565 = vpack.c.b16 %v2561, %v2561
      %v2566 = vpack.c.b16 %v2562, %v2562
      %v2570 = vsel %vm1986, %v2538, 0
      %v2573 = vsel %vm1986, %v2539, 0
      %v2576 = vsel %vm1986, %v2540, 0
      %v2579 = vsel %vm1986, %v2541, 0
      %v2582 = vsel %vm1986, %v2542, 0
      %v2585 = vsel %vm1986, %v2543, 0
      %v2588 = vsel %vm1986, %v2544, 0
      %v2591 = vsel %vm1986, %v2545, 0
      %v2594 = vsel %vm1986, %v2546, 0
      %v2597 = vsel %vm1986, %v2547, 0
      %v2600 = vsel %vm1986, %v2548, 0
      %v2603 = vsel %vm1986, %v2549, 0
      %v2606 = vsel %vm1986, %v2550, 0
      %v2609 = vsel %vm1986, %v2551, 0
      %v2612 = vsel %vm1986, %v2552, 0
      %v2615 = vsel %vm1986, %v2553, 0
      %v2618 = vsel %vm2035, %v2565, 0
      %v2621 = vsel %vm2035, %v2566, 0
      %2623 = vmatprep.subr.bf16.mxu0 0
      %2624 = vmatpush1.bf16.msra.mxu0 0
      %2625 = vmatprep.subr.bf16.mxu0 0
      %2626 = vmatpush1.bf16.msra.mxu0 0
      %2627 = vmatprep.subr.bf16.mxu0 0
      %2628 = vmatpush1.bf16.msra.mxu0 0
      %2629 = vmatprep.subr.bf16.mxu0 0
      %2630 = vmatpush1.bf16.msra.mxu0 0
      %2631 = vmatprep.subr.bf16.mxu0 0
      %2632 = vmatpush1.bf16.msra.mxu0 0
      %2633 = vmatprep.subr.bf16.mxu0 0
      %2634 = vmatpush1.bf16.msra.mxu0 0
      %2635 = vmatprep.subr.bf16.mxu0 %v2621
      %2636 = vmatpush1.bf16.msra.mxu0 %v2618
      %2637 = vmatprep.subr.bf16.mxu0 %v2564
      %2638 = vmatpush1.bf16.msra.mxu0 %v2563
      %2639 = vmatprep.subr.bf16.mxu0 0
      %2640 = vmatpush2.bf16.msra.mxu0 0
      %2641 = vmatprep.subr.bf16.mxu0 0
      %2642 = vmatpush2.bf16.msra.mxu0 0
      %2643 = vmatprep.subr.bf16.mxu0 0
      %2644 = vmatpush2.bf16.msra.mxu0 0
      %2645 = vmatprep.subr.bf16.mxu0 0
      %2646 = vmatpush2.bf16.msra.mxu0 0
      %2647 = vmatprep.subr.bf16.mxu0 0
      %2648 = vmatpush2.bf16.msra.mxu0 0
      %2649 = vmatprep.subr.bf16.mxu0 0
      %2650 = vmatpush2.bf16.msra.mxu0 0
      %2651 = vmatprep.subr.bf16.mxu0 0
      %2652 = vmatpush2.bf16.msra.mxu0 0
      %2653 = vmatprep.subr.bf16.mxu0 0
      %2654 = vmatpush2.bf16.msra.mxu0 0
      %2655 = vmatprep.mubr.bf16.mxu0 0
      %2656 = vmatmul.mubr.bf16.gmra.mxu0 %v2570
      %v2657 = vpop.f32.mrf.mxu0
      %v2658 = vadd.f32 0.0, %v2657
      %v2659 = vpop.f32.mrf.mxu0
      %v2660 = vadd.f32 0.0, %v2659
      %v2661 = vpop.f32.mrf.mxu0
      %v2662 = vadd.f32 0.0, %v2661
      %v2663 = vpop.f32.mrf.mxu0
      %v2664 = vadd.f32 0.0, %v2663
      %2665 = vmatprep.mubr.bf16.mxu0 0
      %2666 = vmatmul.mubr.bf16.gmra.mxu0 %v2573
      %v2667 = vpop.f32.mrf.mxu0
      %v2668 = vadd.f32 0.0, %v2667
      %v2669 = vpop.f32.mrf.mxu0
      %v2670 = vadd.f32 0.0, %v2669
      %v2671 = vpop.f32.mrf.mxu0
      %v2672 = vadd.f32 0.0, %v2671
      %v2673 = vpop.f32.mrf.mxu0
      %v2674 = vadd.f32 0.0, %v2673
      %2675 = vmatprep.mubr.bf16.mxu0 0
      %2676 = vmatmul.mubr.bf16.gmra.mxu0 %v2576
      %v2677 = vpop.f32.mrf.mxu0
      %v2678 = vadd.f32 0.0, %v2677
      %v2679 = vpop.f32.mrf.mxu0
      %v2680 = vadd.f32 0.0, %v2679
      %v2681 = vpop.f32.mrf.mxu0
      %v2682 = vadd.f32 0.0, %v2681
      %v2683 = vpop.f32.mrf.mxu0
      %v2684 = vadd.f32 0.0, %v2683
      %2685 = vmatprep.mubr.bf16.mxu0 0
      %2686 = vmatmul.mubr.bf16.gmra.mxu0 %v2579
      %v2687 = vpop.f32.mrf.mxu0
      %v2688 = vadd.f32 0.0, %v2687
      %v2689 = vpop.f32.mrf.mxu0
      %v2690 = vadd.f32 0.0, %v2689
      %v2691 = vpop.f32.mrf.mxu0
      %v2692 = vadd.f32 0.0, %v2691
      %v2693 = vpop.f32.mrf.mxu0
      %v2694 = vadd.f32 0.0, %v2693
      %2695 = vmatprep.mubr.bf16.mxu0 0
      %2696 = vmatmul.mubr.bf16.gmra.mxu0 %v2582
      %v2697 = vpop.f32.mrf.mxu0
      %v2698 = vadd.f32 0.0, %v2697
      %v2699 = vpop.f32.mrf.mxu0
      %v2700 = vadd.f32 0.0, %v2699
      %v2701 = vpop.f32.mrf.mxu0
      %v2702 = vadd.f32 0.0, %v2701
      %v2703 = vpop.f32.mrf.mxu0
      %v2704 = vadd.f32 0.0, %v2703
      %2705 = vmatprep.mubr.bf16.mxu0 0
      %2706 = vmatmul.mubr.bf16.gmra.mxu0 %v2585
      %v2707 = vpop.f32.mrf.mxu0
      %v2708 = vadd.f32 0.0, %v2707
      %v2709 = vpop.f32.mrf.mxu0
      %v2710 = vadd.f32 0.0, %v2709
      %v2711 = vpop.f32.mrf.mxu0
      %v2712 = vadd.f32 0.0, %v2711
      %v2713 = vpop.f32.mrf.mxu0
      %v2714 = vadd.f32 0.0, %v2713
      %2715 = vmatprep.mubr.bf16.mxu0 0
      %2716 = vmatmul.mubr.bf16.gmra.mxu0 %v2588
      %v2717 = vpop.f32.mrf.mxu0
      %v2718 = vadd.f32 0.0, %v2717
      %v2719 = vpop.f32.mrf.mxu0
      %v2720 = vadd.f32 0.0, %v2719
      %v2721 = vpop.f32.mrf.mxu0
      %v2722 = vadd.f32 0.0, %v2721
      %v2723 = vpop.f32.mrf.mxu0
      %v2724 = vadd.f32 0.0, %v2723
      %2725 = vmatprep.mubr.bf16.mxu0 0
      %2726 = vmatmul.mubr.bf16.gmra.mxu0 %v2591
      %v2727 = vpop.f32.mrf.mxu0
      %v2728 = vadd.f32 0.0, %v2727
      %v2729 = vpop.f32.mrf.mxu0
      %v2730 = vadd.f32 0.0, %v2729
      %v2731 = vpop.f32.mrf.mxu0
      %v2732 = vadd.f32 0.0, %v2731
      %v2733 = vpop.f32.mrf.mxu0
      %v2734 = vadd.f32 0.0, %v2733
      %2735 = vmatprep.mubr.bf16.mxu0 0
      %2736 = vmatmul.mubr.bf16.gmra.mxu0 %v2594
      %v2737 = vpop.f32.mrf.mxu0
      %v2738 = vadd.f32 0.0, %v2737
      %v2739 = vpop.f32.mrf.mxu0
      %v2740 = vadd.f32 0.0, %v2739
      %v2741 = vpop.f32.mrf.mxu0
      %v2742 = vadd.f32 0.0, %v2741
      %v2743 = vpop.f32.mrf.mxu0
      %v2744 = vadd.f32 0.0, %v2743
      %2745 = vmatprep.mubr.bf16.mxu0 0
      %2746 = vmatmul.mubr.bf16.gmra.mxu0 %v2597
      %v2747 = vpop.f32.mrf.mxu0
      %v2748 = vadd.f32 0.0, %v2747
      %v2749 = vpop.f32.mrf.mxu0
      %v2750 = vadd.f32 0.0, %v2749
      %v2751 = vpop.f32.mrf.mxu0
      %v2752 = vadd.f32 0.0, %v2751
      %v2753 = vpop.f32.mrf.mxu0
      %v2754 = vadd.f32 0.0, %v2753
      %2755 = vmatprep.mubr.bf16.mxu0 0
      %2756 = vmatmul.mubr.bf16.gmra.mxu0 %v2600
      %v2757 = vpop.f32.mrf.mxu0
      %v2758 = vadd.f32 0.0, %v2757
      %v2759 = vpop.f32.mrf.mxu0
      %v2760 = vadd.f32 0.0, %v2759
      %v2761 = vpop.f32.mrf.mxu0
      %v2762 = vadd.f32 0.0, %v2761
      %v2763 = vpop.f32.mrf.mxu0
      %v2764 = vadd.f32 0.0, %v2763
      %2765 = vmatprep.mubr.bf16.mxu0 0
      %2766 = vmatmul.mubr.bf16.gmra.mxu0 %v2603
      %v2767 = vpop.f32.mrf.mxu0
      %v2768 = vadd.f32 0.0, %v2767
      %v2769 = vpop.f32.mrf.mxu0
      %v2770 = vadd.f32 0.0, %v2769
      %v2771 = vpop.f32.mrf.mxu0
      %v2772 = vadd.f32 0.0, %v2771
      %v2773 = vpop.f32.mrf.mxu0
      %v2774 = vadd.f32 0.0, %v2773
      %2775 = vmatprep.mubr.bf16.mxu0 0
      %2776 = vmatmul.mubr.bf16.gmra.mxu0 %v2606
      %v2777 = vpop.f32.mrf.mxu0
      %v2778 = vadd.f32 0.0, %v2777
      %v2779 = vpop.f32.mrf.mxu0
      %v2780 = vadd.f32 0.0, %v2779
      %v2781 = vpop.f32.mrf.mxu0
      %v2782 = vadd.f32 0.0, %v2781
      %v2783 = vpop.f32.mrf.mxu0
      %v2784 = vadd.f32 0.0, %v2783
      %2785 = vmatprep.mubr.bf16.mxu0 0
      %2786 = vmatmul.mubr.bf16.gmra.mxu0 %v2609
      %v2787 = vpop.f32.mrf.mxu0
      %v2788 = vadd.f32 0.0, %v2787
      %v2789 = vpop.f32.mrf.mxu0
      %v2790 = vadd.f32 0.0, %v2789
      %v2791 = vpop.f32.mrf.mxu0
      %v2792 = vadd.f32 0.0, %v2791
      %v2793 = vpop.f32.mrf.mxu0
      %v2794 = vadd.f32 0.0, %v2793
      %2795 = vmatprep.mubr.bf16.mxu0 0
      %2796 = vmatmul.mubr.bf16.gmra.mxu0 %v2612
      %v2797 = vpop.f32.mrf.mxu0
      %v2798 = vadd.f32 0.0, %v2797
      %v2799 = vpop.f32.mrf.mxu0
      %v2800 = vadd.f32 0.0, %v2799
      %v2801 = vpop.f32.mrf.mxu0
      %v2802 = vadd.f32 0.0, %v2801
      %v2803 = vpop.f32.mrf.mxu0
      %v2804 = vadd.f32 0.0, %v2803
      %2805 = vmatprep.mubr.bf16.mxu0 0
      %2806 = vmatmul.mubr.bf16.gmra.mxu0 %v2615
      %v2807 = vpop.f32.mrf.mxu0
      %v2808 = vadd.f32 0.0, %v2807
      %v2809 = vpop.f32.mrf.mxu0
      %v2810 = vadd.f32 0.0, %v2809
      %v2811 = vpop.f32.mrf.mxu0
      %v2812 = vadd.f32 0.0, %v2811
      %v2813 = vpop.f32.mrf.mxu0
      %v2814 = vadd.f32 0.0, %v2813
      %2815 = vdwg.mxu0
      %v2816 = vadd.f32 %v2374, %v2658
      %v2817 = vadd.f32 %v2375, %v2660
      %v2818 = vadd.f32 %v2376, %v2662
      %v2819 = vadd.f32 %v2377, %v2664
      %v2820 = vadd.f32 %v2378, %v2668
      %v2821 = vadd.f32 %v2379, %v2670
      %v2822 = vadd.f32 %v2380, %v2672
      %v2823 = vadd.f32 %v2381, %v2674
      %v2824 = vadd.f32 %v2382, %v2678
      %v2825 = vadd.f32 %v2383, %v2680
      %v2826 = vadd.f32 %v2384, %v2682
      %v2827 = vadd.f32 %v2385, %v2684
      %v2828 = vadd.f32 %v2386, %v2688
      %v2829 = vadd.f32 %v2387, %v2690
      %v2830 = vadd.f32 %v2388, %v2692
      %v2831 = vadd.f32 %v2389, %v2694
      %v2832 = vadd.f32 %v2390, %v2698
      %v2833 = vadd.f32 %v2391, %v2700
      %v2834 = vadd.f32 %v2392, %v2702
      %v2835 = vadd.f32 %v2393, %v2704
      %v2836 = vadd.f32 %v2394, %v2708
      %v2837 = vadd.f32 %v2395, %v2710
      %v2838 = vadd.f32 %v2396, %v2712
      %v2839 = vadd.f32 %v2397, %v2714
      %v2840 = vadd.f32 %v2398, %v2718
      %v2841 = vadd.f32 %v2399, %v2720
      %v2842 = vadd.f32 %v2400, %v2722
      %v2843 = vadd.f32 %v2401, %v2724
      %v2844 = vadd.f32 %v2402, %v2728
      %v2845 = vadd.f32 %v2403, %v2730
      %v2846 = vadd.f32 %v2404, %v2732
      %v2847 = vadd.f32 %v2405, %v2734
      %v2848 = vadd.f32 %v2406, %v2738
      %v2849 = vadd.f32 %v2407, %v2740
      %v2850 = vadd.f32 %v2408, %v2742
      %v2851 = vadd.f32 %v2409, %v2744
      %v2852 = vadd.f32 %v2410, %v2748
      %v2853 = vadd.f32 %v2411, %v2750
      %v2854 = vadd.f32 %v2412, %v2752
      %v2855 = vadd.f32 %v2413, %v2754
      %v2856 = vadd.f32 %v2414, %v2758
      %v2857 = vadd.f32 %v2415, %v2760
      %v2858 = vadd.f32 %v2416, %v2762
      %v2859 = vadd.f32 %v2417, %v2764
      %v2860 = vadd.f32 %v2418, %v2768
      %v2861 = vadd.f32 %v2419, %v2770
      %v2862 = vadd.f32 %v2420, %v2772
      %v2863 = vadd.f32 %v2421, %v2774
      %v2864 = vadd.f32 %v2422, %v2778
      %v2865 = vadd.f32 %v2423, %v2780
      %v2866 = vadd.f32 %v2424, %v2782
      %v2867 = vadd.f32 %v2425, %v2784
      %v2868 = vadd.f32 %v2426, %v2788
      %v2869 = vadd.f32 %v2427, %v2790
      %v2870 = vadd.f32 %v2428, %v2792
      %v2871 = vadd.f32 %v2429, %v2794
      %v2872 = vadd.f32 %v2430, %v2798
      %v2873 = vadd.f32 %v2431, %v2800
      %v2874 = vadd.f32 %v2432, %v2802
      %v2875 = vadd.f32 %v2433, %v2804
      %v2876 = vadd.f32 %v2434, %v2808
      %v2877 = vadd.f32 %v2435, %v2810
      %v2878 = vadd.f32 %v2436, %v2812
      %v2879 = vadd.f32 %v2437, %v2814
      %2880 = vst [vmem:[#allocation4] sm:$0xff] %v2816
      %2881 = vst [vmem:[#allocation4 + $0x8] sm:$0xff] %v2817
      %2882 = vst [vmem:[#allocation4 + $0x10] sm:$0xff] %v2818
      %2883 = vst [vmem:[#allocation4 + $0x18] sm:$0xff] %v2819
      %2884 = vst [vmem:[#allocation4 + $0x20] sm:$0xff] %v2820
      %2885 = vst [vmem:[#allocation4 + $0x28] sm:$0xff] %v2821
      %2886 = vst [vmem:[#allocation4 + $0x30] sm:$0xff] %v2822
      %2887 = vst [vmem:[#allocation4 + $0x38] sm:$0xff] %v2823
      %2888 = vst [vmem:[#allocation4 + $0x40] sm:$0xff] %v2824
      %2889 = vst [vmem:[#allocation4 + $0x48] sm:$0xff] %v2825
      %2890 = vst [vmem:[#allocation4 + $0x50] sm:$0xff] %v2826
      %2891 = vst [vmem:[#allocation4 + $0x58] sm:$0xff] %v2827
      %2892 = vst [vmem:[#allocation4 + $0x60] sm:$0xff] %v2828
      %2893 = vst [vmem:[#allocation4 + $0x68] sm:$0xff] %v2829
      %2894 = vst [vmem:[#allocation4 + $0x70] sm:$0xff] %v2830
      %2895 = vst [vmem:[#allocation4 + $0x78] sm:$0xff] %v2831
      %2896 = vst [vmem:[#allocation4 + $0x80] sm:$0xff] %v2832
      %2897 = vst [vmem:[#allocation4 + $0x88] sm:$0xff] %v2833
      %2898 = vst [vmem:[#allocation4 + $0x90] sm:$0xff] %v2834
      %2899 = vst [vmem:[#allocation4 + $0x98] sm:$0xff] %v2835
      %2900 = vst [vmem:[#allocation4 + $0xa0] sm:$0xff] %v2836
      %2901 = vst [vmem:[#allocation4 + $0xa8] sm:$0xff] %v2837
      %2902 = vst [vmem:[#allocation4 + $0xb0] sm:$0xff] %v2838
      %2903 = vst [vmem:[#allocation4 + $0xb8] sm:$0xff] %v2839
      %2904 = vst [vmem:[#allocation4 + $0xc0] sm:$0xff] %v2840
      %2905 = vst [vmem:[#allocation4 + $0xc8] sm:$0xff] %v2841
      %2906 = vst [vmem:[#allocation4 + $0xd0] sm:$0xff] %v2842
      %2907 = vst [vmem:[#allocation4 + $0xd8] sm:$0xff] %v2843
      %2908 = vst [vmem:[#allocation4 + $0xe0] sm:$0xff] %v2844
      %2909 = vst [vmem:[#allocation4 + $0xe8] sm:$0xff] %v2845
      %2910 = vst [vmem:[#allocation4 + $0xf0] sm:$0xff] %v2846
      %2911 = vst [vmem:[#allocation4 + $0xf8] sm:$0xff] %v2847
      %2912 = vst [vmem:[#allocation4 + $0x100] sm:$0xff] %v2848
      %2913 = vst [vmem:[#allocation4 + $0x108] sm:$0xff] %v2849
      %2914 = vst [vmem:[#allocation4 + $0x110] sm:$0xff] %v2850
      %2915 = vst [vmem:[#allocation4 + $0x118] sm:$0xff] %v2851
      %2916 = vst [vmem:[#allocation4 + $0x120] sm:$0xff] %v2852
      %2917 = vst [vmem:[#allocation4 + $0x128] sm:$0xff] %v2853
      %2918 = vst [vmem:[#allocation4 + $0x130] sm:$0xff] %v2854
      %2919 = vst [vmem:[#allocation4 + $0x138] sm:$0xff] %v2855
      %2920 = vst [vmem:[#allocation4 + $0x140] sm:$0xff] %v2856
      %2921 = vst [vmem:[#allocation4 + $0x148] sm:$0xff] %v2857
      %2922 = vst [vmem:[#allocation4 + $0x150] sm:$0xff] %v2858
      %2923 = vst [vmem:[#allocation4 + $0x158] sm:$0xff] %v2859
      %2924 = vst [vmem:[#allocation4 + $0x160] sm:$0xff] %v2860
      %2925 = vst [vmem:[#allocation4 + $0x168] sm:$0xff] %v2861
      %2926 = vst [vmem:[#allocation4 + $0x170] sm:$0xff] %v2862
      %2927 = vst [vmem:[#allocation4 + $0x178] sm:$0xff] %v2863
      %2928 = vst [vmem:[#allocation4 + $0x180] sm:$0xff] %v2864
      %2929 = vst [vmem:[#allocation4 + $0x188] sm:$0xff] %v2865
      %2930 = vst [vmem:[#allocation4 + $0x190] sm:$0xff] %v2866
      %2931 = vst [vmem:[#allocation4 + $0x198] sm:$0xff] %v2867
      %2932 = vst [vmem:[#allocation4 + $0x1a0] sm:$0xff] %v2868
      %2933 = vst [vmem:[#allocation4 + $0x1a8] sm:$0xff] %v2869
      %2934 = vst [vmem:[#allocation4 + $0x1b0] sm:$0xff] %v2870
      %2935 = vst [vmem:[#allocation4 + $0x1b8] sm:$0xff] %v2871
      %2936 = vst [vmem:[#allocation4 + $0x1c0] sm:$0xff] %v2872
      %2937 = vst [vmem:[#allocation4 + $0x1c8] sm:$0xff] %v2873
      %2938 = vst [vmem:[#allocation4 + $0x1d0] sm:$0xff] %v2874
      %2939 = vst [vmem:[#allocation4 + $0x1d8] sm:$0xff] %v2875
      %2940 = vst [vmem:[#allocation4 + $0x1e0] sm:$0xff] %v2876
      %2941 = vst [vmem:[#allocation4 + $0x1e8] sm:$0xff] %v2877
      %2942 = vst [vmem:[#allocation4 + $0x1f0] sm:$0xff] %v2878
      %2943 = vst [vmem:[#allocation4 + $0x1f8] sm:$0xff] %v2879
      %v2944 = vld [vmem:[#allocation4] sm:$0xff]
      %v2945 = vld [vmem:[#allocation4 + $0x8] sm:$0xff]
      %v2946 = vld [vmem:[#allocation4 + $0x10] sm:$0xff]
      %v2947 = vld [vmem:[#allocation4 + $0x18] sm:$0xff]
      %v2948 = vld [vmem:[#allocation4 + $0x20] sm:$0xff]
      %v2949 = vld [vmem:[#allocation4 + $0x28] sm:$0xff]
      %v2950 = vld [vmem:[#allocation4 + $0x30] sm:$0xff]
      %v2951 = vld [vmem:[#allocation4 + $0x38] sm:$0xff]
      %v2952 = vld [vmem:[#allocation4 + $0x40] sm:$0xff]
      %v2953 = vld [vmem:[#allocation4 + $0x48] sm:$0xff]
      %v2954 = vld [vmem:[#allocation4 + $0x50] sm:$0xff]
      %v2955 = vld [vmem:[#allocation4 + $0x58] sm:$0xff]
      %v2956 = vld [vmem:[#allocation4 + $0x60] sm:$0xff]
      %v2957 = vld [vmem:[#allocation4 + $0x68] sm:$0xff]
      %v2958 = vld [vmem:[#allocation4 + $0x70] sm:$0xff]
      %v2959 = vld [vmem:[#allocation4 + $0x78] sm:$0xff]
      %v2960 = vld [vmem:[#allocation4 + $0x80] sm:$0xff]
      %v2961 = vld [vmem:[#allocation4 + $0x88] sm:$0xff]
      %v2962 = vld [vmem:[#allocation4 + $0x90] sm:$0xff]
      %v2963 = vld [vmem:[#allocation4 + $0x98] sm:$0xff]
      %v2964 = vld [vmem:[#allocation4 + $0xa0] sm:$0xff]
      %v2965 = vld [vmem:[#allocation4 + $0xa8] sm:$0xff]
      %v2966 = vld [vmem:[#allocation4 + $0xb0] sm:$0xff]
      %v2967 = vld [vmem:[#allocation4 + $0xb8] sm:$0xff]
      %v2968 = vld [vmem:[#allocation4 + $0xc0] sm:$0xff]
      %v2969 = vld [vmem:[#allocation4 + $0xc8] sm:$0xff]
      %v2970 = vld [vmem:[#allocation4 + $0xd0] sm:$0xff]
      %v2971 = vld [vmem:[#allocation4 + $0xd8] sm:$0xff]
      %v2972 = vld [vmem:[#allocation4 + $0xe0] sm:$0xff]
      %v2973 = vld [vmem:[#allocation4 + $0xe8] sm:$0xff]
      %v2974 = vld [vmem:[#allocation4 + $0xf0] sm:$0xff]
      %v2975 = vld [vmem:[#allocation4 + $0xf8] sm:$0xff]
      %v2976 = vld [vmem:[#allocation4 + $0x100] sm:$0xff]
      %v2977 = vld [vmem:[#allocation4 + $0x108] sm:$0xff]
      %v2978 = vld [vmem:[#allocation4 + $0x110] sm:$0xff]
      %v2979 = vld [vmem:[#allocation4 + $0x118] sm:$0xff]
      %v2980 = vld [vmem:[#allocation4 + $0x120] sm:$0xff]
      %v2981 = vld [vmem:[#allocation4 + $0x128] sm:$0xff]
      %v2982 = vld [vmem:[#allocation4 + $0x130] sm:$0xff]
      %v2983 = vld [vmem:[#allocation4 + $0x138] sm:$0xff]
      %v2984 = vld [vmem:[#allocation4 + $0x140] sm:$0xff]
      %v2985 = vld [vmem:[#allocation4 + $0x148] sm:$0xff]
      %v2986 = vld [vmem:[#allocation4 + $0x150] sm:$0xff]
      %v2987 = vld [vmem:[#allocation4 + $0x158] sm:$0xff]
      %v2988 = vld [vmem:[#allocation4 + $0x160] sm:$0xff]
      %v2989 = vld [vmem:[#allocation4 + $0x168] sm:$0xff]
      %v2990 = vld [vmem:[#allocation4 + $0x170] sm:$0xff]
      %v2991 = vld [vmem:[#allocation4 + $0x178] sm:$0xff]
      %v2992 = vld [vmem:[#allocation4 + $0x180] sm:$0xff]
      %v2993 = vld [vmem:[#allocation4 + $0x188] sm:$0xff]
      %v2994 = vld [vmem:[#allocation4 + $0x190] sm:$0xff]
      %v2995 = vld [vmem:[#allocation4 + $0x198] sm:$0xff]
      %v2996 = vld [vmem:[#allocation4 + $0x1a0] sm:$0xff]
      %v2997 = vld [vmem:[#allocation4 + $0x1a8] sm:$0xff]
      %v2998 = vld [vmem:[#allocation4 + $0x1b0] sm:$0xff]
      %v2999 = vld [vmem:[#allocation4 + $0x1b8] sm:$0xff]
      %v3000 = vld [vmem:[#allocation4 + $0x1c0] sm:$0xff]
      %v3001 = vld [vmem:[#allocation4 + $0x1c8] sm:$0xff]
      %v3002 = vld [vmem:[#allocation4 + $0x1d0] sm:$0xff]
      %v3003 = vld [vmem:[#allocation4 + $0x1d8] sm:$0xff]
      %v3004 = vld [vmem:[#allocation4 + $0x1e0] sm:$0xff]
      %v3005 = vld [vmem:[#allocation4 + $0x1e8] sm:$0xff]
      %v3006 = vld [vmem:[#allocation4 + $0x1f0] sm:$0xff]
      %v3007 = vld [vmem:[#allocation4 + $0x1f8] sm:$0xff]
      %v3008 = vld [vmem:[#allocation3 + $0x10] sm:$0xf]
      %v3009 = vld [vmem:[#allocation3 + $0x14] sm:$0xf]
      %v3010 = vld [vmem:[#allocation3 + $0x18] sm:$0xf]
      %v3011 = vld [vmem:[#allocation3 + $0x1c] sm:$0xf]
      %v3012 = vld [vmem:[#allocation3 + $0x20] sm:$0xf]
      %v3013 = vld [vmem:[#allocation3 + $0x24] sm:$0xf]
      %v3014 = vld [vmem:[#allocation3 + $0x28] sm:$0xf]
      %v3015 = vld [vmem:[#allocation3 + $0x2c] sm:$0xf]
      %v3016 = vld [vmem:[#allocation3 + $0x30] sm:$0xf]
      %v3017 = vld [vmem:[#allocation3 + $0x34] sm:$0xf]
      %v3018 = vld [vmem:[#allocation3 + $0x38] sm:$0xf]
      %v3019 = vld [vmem:[#allocation3 + $0x3c] sm:$0xf]
      %v3020 = vld [vmem:[#allocation3 + $0x40] sm:$0xf]
      %v3021 = vld [vmem:[#allocation3 + $0x44] sm:$0xf]
      %v3022 = vld [vmem:[#allocation3 + $0x48] sm:$0xf]
      %v3023 = vld [vmem:[#allocation3 + $0x4c] sm:$0xf]
      %v3024 = vld [vmem:[#allocation3 + $0x50] sm:$0xf]
      %v3025 = vld [vmem:[#allocation3 + $0x54] sm:$0xf]
      %v3026 = vld [vmem:[#allocation3 + $0x58] sm:$0xf]
      %v3027 = vld [vmem:[#allocation3 + $0x5c] sm:$0xf]
      %v3028 = vld [vmem:[#allocation3 + $0x60] sm:$0xf]
      %v3029 = vld [vmem:[#allocation3 + $0x64] sm:$0xf]
      %v3030 = vld [vmem:[#allocation3 + $0x68] sm:$0xf]
      %v3031 = vld [vmem:[#allocation3 + $0x6c] sm:$0xf]
      %v3032 = vld [vmem:[#allocation3 + $0x70] sm:$0xf]
      %v3033 = vld [vmem:[#allocation3 + $0x74] sm:$0xf]
      %v3034 = vld [vmem:[#allocation3 + $0x78] sm:$0xf]
      %v3035 = vld [vmem:[#allocation3 + $0x7c] sm:$0xf]
      %v3036 = vld [vmem:[#allocation3 + $0x80] sm:$0xf]
      %v3037 = vld [vmem:[#allocation3 + $0x84] sm:$0xf]
      %v3038 = vld [vmem:[#allocation3 + $0x88] sm:$0xf]
      %v3039 = vld [vmem:[#allocation3 + $0x8c] sm:$0xf]
      %s3040 = scalar_lea.vmem %s1, 48
      %v3041 = vld [vmem:[%s3040] sm:$0xff]
      %v3042 = vld [vmem:[%s3040 + $0x8] sm:$0xff]
      %v3043 = vld [vmem:[%s3040 + $0x10] sm:$0x33]
      %v3076 = vunpack.c.l.b16 %v3008
      %v3077 = vunpack.c.l.b16 %v3009
      %v3078 = vunpack.c.l.b16 %v3010
      %v3079 = vunpack.c.l.b16 %v3011
      %v3080 = vunpack.c.l.b16 %v3012
      %v3081 = vunpack.c.l.b16 %v3013
      %v3082 = vunpack.c.l.b16 %v3014
      %v3083 = vunpack.c.l.b16 %v3015
      %v3084 = vunpack.c.l.b16 %v3016
      %v3085 = vunpack.c.l.b16 %v3017
      %v3086 = vunpack.c.l.b16 %v3018
      %v3087 = vunpack.c.l.b16 %v3019
      %v3088 = vunpack.c.l.b16 %v3020
      %v3089 = vunpack.c.l.b16 %v3021
      %v3090 = vunpack.c.l.b16 %v3022
      %v3091 = vunpack.c.l.b16 %v3023
      %v3092 = vunpack.c.l.b16 %v3024
      %v3093 = vunpack.c.l.b16 %v3025
      %v3094 = vunpack.c.l.b16 %v3026
      %v3095 = vunpack.c.l.b16 %v3027
      %v3096 = vunpack.c.l.b16 %v3028
      %v3097 = vunpack.c.l.b16 %v3029
      %v3098 = vunpack.c.l.b16 %v3030
      %v3099 = vunpack.c.l.b16 %v3031
      %v3100 = vunpack.c.l.b16 %v3032
      %v3101 = vunpack.c.l.b16 %v3033
      %v3102 = vunpack.c.l.b16 %v3034
      %v3103 = vunpack.c.l.b16 %v3035
      %v3104 = vunpack.c.l.b16 %v3036
      %v3105 = vunpack.c.l.b16 %v3037
      %v3106 = vunpack.c.l.b16 %v3038
      %v3107 = vunpack.c.l.b16 %v3039
      %v3108 = vpack.c.b16 %v3077, %v3076
      %v3109 = vpack.c.b16 %v3079, %v3078
      %v3110 = vpack.c.b16 %v3081, %v3080
      %v3111 = vpack.c.b16 %v3083, %v3082
      %v3112 = vpack.c.b16 %v3085, %v3084
      %v3113 = vpack.c.b16 %v3087, %v3086
      %v3114 = vpack.c.b16 %v3089, %v3088
      %v3115 = vpack.c.b16 %v3091, %v3090
      %v3116 = vpack.c.b16 %v3093, %v3092
      %v3117 = vpack.c.b16 %v3095, %v3094
      %v3118 = vpack.c.b16 %v3097, %v3096
      %v3119 = vpack.c.b16 %v3099, %v3098
      %v3120 = vpack.c.b16 %v3101, %v3100
      %v3121 = vpack.c.b16 %v3103, %v3102
      %v3122 = vpack.c.b16 %v3105, %v3104
      %v3123 = vpack.c.b16 %v3107, %v3106
      %v3127 = vunpack.c.l.b16 %v3041
      %v3128 = vunpack.c.h.b16 %v3041
      %v3129 = vunpack.c.l.b16 %v3042
      %v3130 = vunpack.c.h.b16 %v3042
      %v3131 = vunpack.c.l.b16 %v3043
      %v3132 = vunpack.c.h.b16 %v3043
      %v3133 = vpack.c.b16 %v3129, %v3127
      %v3134 = vpack.c.b16 %v3130, %v3128
      %v3135 = vpack.c.b16 %v3131, %v3131
      %v3136 = vpack.c.b16 %v3132, %v3132
      %v3140 = vsel %vm1986, %v3108, 0
      %v3143 = vsel %vm1986, %v3109, 0
      %v3146 = vsel %vm1986, %v3110, 0
      %v3149 = vsel %vm1986, %v3111, 0
      %v3152 = vsel %vm1986, %v3112, 0
      %v3155 = vsel %vm1986, %v3113, 0
      %v3158 = vsel %vm1986, %v3114, 0
      %v3161 = vsel %vm1986, %v3115, 0
      %v3164 = vsel %vm1986, %v3116, 0
      %v3167 = vsel %vm1986, %v3117, 0
      %v3170 = vsel %vm1986, %v3118, 0
      %v3173 = vsel %vm1986, %v3119, 0
      %v3176 = vsel %vm1986, %v3120, 0
      %v3179 = vsel %vm1986, %v3121, 0
      %v3182 = vsel %vm1986, %v3122, 0
      %v3185 = vsel %vm1986, %v3123, 0
      %v3188 = vsel %vm2035, %v3135, 0
      %v3191 = vsel %vm2035, %v3136, 0
      %3193 = vmatprep.subr.bf16.mxu0 0
      %3194 = vmatpush1.bf16.msra.mxu0 0
      %3195 = vmatprep.subr.bf16.mxu0 0
      %3196 = vmatpush1.bf16.msra.mxu0 0
      %3197 = vmatprep.subr.bf16.mxu0 0
      %3198 = vmatpush1.bf16.msra.mxu0 0
      %3199 = vmatprep.subr.bf16.mxu0 0
      %3200 = vmatpush1.bf16.msra.mxu0 0
      %3201 = vmatprep.subr.bf16.mxu0 0
      %3202 = vmatpush1.bf16.msra.mxu0 0
      %3203 = vmatprep.subr.bf16.mxu0 0
      %3204 = vmatpush1.bf16.msra.mxu0 0
      %3205 = vmatprep.subr.bf16.mxu0 %v3191
      %3206 = vmatpush1.bf16.msra.mxu0 %v3188
      %3207 = vmatprep.subr.bf16.mxu0 %v3134
      %3208 = vmatpush1.bf16.msra.mxu0 %v3133
      %3209 = vmatprep.subr.bf16.mxu0 0
      %3210 = vmatpush2.bf16.msra.mxu0 0
      %3211 = vmatprep.subr.bf16.mxu0 0
      %3212 = vmatpush2.bf16.msra.mxu0 0
      %3213 = vmatprep.subr.bf16.mxu0 0
      %3214 = vmatpush2.bf16.msra.mxu0 0
      %3215 = vmatprep.subr.bf16.mxu0 0
      %3216 = vmatpush2.bf16.msra.mxu0 0
      %3217 = vmatprep.subr.bf16.mxu0 0
      %3218 = vmatpush2.bf16.msra.mxu0 0
      %3219 = vmatprep.subr.bf16.mxu0 0
      %3220 = vmatpush2.bf16.msra.mxu0 0
      %3221 = vmatprep.subr.bf16.mxu0 0
      %3222 = vmatpush2.bf16.msra.mxu0 0
      %3223 = vmatprep.subr.bf16.mxu0 0
      %3224 = vmatpush2.bf16.msra.mxu0 0
      %3225 = vmatprep.mubr.bf16.mxu0 0
      %3226 = vmatmul.mubr.bf16.gmra.mxu0 %v3140
      %v3227 = vpop.f32.mrf.mxu0
      %v3228 = vadd.f32 0.0, %v3227
      %v3229 = vpop.f32.mrf.mxu0
      %v3230 = vadd.f32 0.0, %v3229
      %v3231 = vpop.f32.mrf.mxu0
      %v3232 = vadd.f32 0.0, %v3231
      %v3233 = vpop.f32.mrf.mxu0
      %v3234 = vadd.f32 0.0, %v3233
      %3235 = vmatprep.mubr.bf16.mxu0 0
      %3236 = vmatmul.mubr.bf16.gmra.mxu0 %v3143
      %v3237 = vpop.f32.mrf.mxu0
      %v3238 = vadd.f32 0.0, %v3237
      %v3239 = vpop.f32.mrf.mxu0
      %v3240 = vadd.f32 0.0, %v3239
      %v3241 = vpop.f32.mrf.mxu0
      %v3242 = vadd.f32 0.0, %v3241
      %v3243 = vpop.f32.mrf.mxu0
      %v3244 = vadd.f32 0.0, %v3243
      %3245 = vmatprep.mubr.bf16.mxu0 0
      %3246 = vmatmul.mubr.bf16.gmra.mxu0 %v3146
      %v3247 = vpop.f32.mrf.mxu0
      %v3248 = vadd.f32 0.0, %v3247
      %v3249 = vpop.f32.mrf.mxu0
      %v3250 = vadd.f32 0.0, %v3249
      %v3251 = vpop.f32.mrf.mxu0
      %v3252 = vadd.f32 0.0, %v3251
      %v3253 = vpop.f32.mrf.mxu0
      %v3254 = vadd.f32 0.0, %v3253
      %3255 = vmatprep.mubr.bf16.mxu0 0
      %3256 = vmatmul.mubr.bf16.gmra.mxu0 %v3149
      %v3257 = vpop.f32.mrf.mxu0
      %v3258 = vadd.f32 0.0, %v3257
      %v3259 = vpop.f32.mrf.mxu0
      %v3260 = vadd.f32 0.0, %v3259
      %v3261 = vpop.f32.mrf.mxu0
      %v3262 = vadd.f32 0.0, %v3261
      %v3263 = vpop.f32.mrf.mxu0
      %v3264 = vadd.f32 0.0, %v3263
      %3265 = vmatprep.mubr.bf16.mxu0 0
      %3266 = vmatmul.mubr.bf16.gmra.mxu0 %v3152
      %v3267 = vpop.f32.mrf.mxu0
      %v3268 = vadd.f32 0.0, %v3267
      %v3269 = vpop.f32.mrf.mxu0
      %v3270 = vadd.f32 0.0, %v3269
      %v3271 = vpop.f32.mrf.mxu0
      %v3272 = vadd.f32 0.0, %v3271
      %v3273 = vpop.f32.mrf.mxu0
      %v3274 = vadd.f32 0.0, %v3273
      %3275 = vmatprep.mubr.bf16.mxu0 0
      %3276 = vmatmul.mubr.bf16.gmra.mxu0 %v3155
      %v3277 = vpop.f32.mrf.mxu0
      %v3278 = vadd.f32 0.0, %v3277
      %v3279 = vpop.f32.mrf.mxu0
      %v3280 = vadd.f32 0.0, %v3279
      %v3281 = vpop.f32.mrf.mxu0
      %v3282 = vadd.f32 0.0, %v3281
      %v3283 = vpop.f32.mrf.mxu0
      %v3284 = vadd.f32 0.0, %v3283
      %3285 = vmatprep.mubr.bf16.mxu0 0
      %3286 = vmatmul.mubr.bf16.gmra.mxu0 %v3158
      %v3287 = vpop.f32.mrf.mxu0
      %v3288 = vadd.f32 0.0, %v3287
      %v3289 = vpop.f32.mrf.mxu0
      %v3290 = vadd.f32 0.0, %v3289
      %v3291 = vpop.f32.mrf.mxu0
      %v3292 = vadd.f32 0.0, %v3291
      %v3293 = vpop.f32.mrf.mxu0
      %v3294 = vadd.f32 0.0, %v3293
      %3295 = vmatprep.mubr.bf16.mxu0 0
      %3296 = vmatmul.mubr.bf16.gmra.mxu0 %v3161
      %v3297 = vpop.f32.mrf.mxu0
      %v3298 = vadd.f32 0.0, %v3297
      %v3299 = vpop.f32.mrf.mxu0
      %v3300 = vadd.f32 0.0, %v3299
      %v3301 = vpop.f32.mrf.mxu0
      %v3302 = vadd.f32 0.0, %v3301
      %v3303 = vpop.f32.mrf.mxu0
      %v3304 = vadd.f32 0.0, %v3303
      %3305 = vmatprep.mubr.bf16.mxu0 0
      %3306 = vmatmul.mubr.bf16.gmra.mxu0 %v3164
      %v3307 = vpop.f32.mrf.mxu0
      %v3308 = vadd.f32 0.0, %v3307
      %v3309 = vpop.f32.mrf.mxu0
      %v3310 = vadd.f32 0.0, %v3309
      %v3311 = vpop.f32.mrf.mxu0
      %v3312 = vadd.f32 0.0, %v3311
      %v3313 = vpop.f32.mrf.mxu0
      %v3314 = vadd.f32 0.0, %v3313
      %3315 = vmatprep.mubr.bf16.mxu0 0
      %3316 = vmatmul.mubr.bf16.gmra.mxu0 %v3167
      %v3317 = vpop.f32.mrf.mxu0
      %v3318 = vadd.f32 0.0, %v3317
      %v3319 = vpop.f32.mrf.mxu0
      %v3320 = vadd.f32 0.0, %v3319
      %v3321 = vpop.f32.mrf.mxu0
      %v3322 = vadd.f32 0.0, %v3321
      %v3323 = vpop.f32.mrf.mxu0
      %v3324 = vadd.f32 0.0, %v3323
      %3325 = vmatprep.mubr.bf16.mxu0 0
      %3326 = vmatmul.mubr.bf16.gmra.mxu0 %v3170
      %v3327 = vpop.f32.mrf.mxu0
      %v3328 = vadd.f32 0.0, %v3327
      %v3329 = vpop.f32.mrf.mxu0
      %v3330 = vadd.f32 0.0, %v3329
      %v3331 = vpop.f32.mrf.mxu0
      %v3332 = vadd.f32 0.0, %v3331
      %v3333 = vpop.f32.mrf.mxu0
      %v3334 = vadd.f32 0.0, %v3333
      %3335 = vmatprep.mubr.bf16.mxu0 0
      %3336 = vmatmul.mubr.bf16.gmra.mxu0 %v3173
      %v3337 = vpop.f32.mrf.mxu0
      %v3338 = vadd.f32 0.0, %v3337
      %v3339 = vpop.f32.mrf.mxu0
      %v3340 = vadd.f32 0.0, %v3339
      %v3341 = vpop.f32.mrf.mxu0
      %v3342 = vadd.f32 0.0, %v3341
      %v3343 = vpop.f32.mrf.mxu0
      %v3344 = vadd.f32 0.0, %v3343
      %3345 = vmatprep.mubr.bf16.mxu0 0
      %3346 = vmatmul.mubr.bf16.gmra.mxu0 %v3176
      %v3347 = vpop.f32.mrf.mxu0
      %v3348 = vadd.f32 0.0, %v3347
      %v3349 = vpop.f32.mrf.mxu0
      %v3350 = vadd.f32 0.0, %v3349
      %v3351 = vpop.f32.mrf.mxu0
      %v3352 = vadd.f32 0.0, %v3351
      %v3353 = vpop.f32.mrf.mxu0
      %v3354 = vadd.f32 0.0, %v3353
      %3355 = vmatprep.mubr.bf16.mxu0 0
      %3356 = vmatmul.mubr.bf16.gmra.mxu0 %v3179
      %v3357 = vpop.f32.mrf.mxu0
      %v3358 = vadd.f32 0.0, %v3357
      %v3359 = vpop.f32.mrf.mxu0
      %v3360 = vadd.f32 0.0, %v3359
      %v3361 = vpop.f32.mrf.mxu0
      %v3362 = vadd.f32 0.0, %v3361
      %v3363 = vpop.f32.mrf.mxu0
      %v3364 = vadd.f32 0.0, %v3363
      %3365 = vmatprep.mubr.bf16.mxu0 0
      %3366 = vmatmul.mubr.bf16.gmra.mxu0 %v3182
      %v3367 = vpop.f32.mrf.mxu0
      %v3368 = vadd.f32 0.0, %v3367
      %v3369 = vpop.f32.mrf.mxu0
      %v3370 = vadd.f32 0.0, %v3369
      %v3371 = vpop.f32.mrf.mxu0
      %v3372 = vadd.f32 0.0, %v3371
      %v3373 = vpop.f32.mrf.mxu0
      %v3374 = vadd.f32 0.0, %v3373
      %3375 = vmatprep.mubr.bf16.mxu0 0
      %3376 = vmatmul.mubr.bf16.gmra.mxu0 %v3185
      %v3377 = vpop.f32.mrf.mxu0
      %v3378 = vadd.f32 0.0, %v3377
      %v3379 = vpop.f32.mrf.mxu0
      %v3380 = vadd.f32 0.0, %v3379
      %v3381 = vpop.f32.mrf.mxu0
      %v3382 = vadd.f32 0.0, %v3381
      %v3383 = vpop.f32.mrf.mxu0
      %v3384 = vadd.f32 0.0, %v3383
      %3385 = vdwg.mxu0
      %v3386 = vadd.f32 %v2944, %v3228
      %v3387 = vadd.f32 %v2945, %v3230
      %v3388 = vadd.f32 %v2946, %v3232
      %v3389 = vadd.f32 %v2947, %v3234
      %v3390 = vadd.f32 %v2948, %v3238
      %v3391 = vadd.f32 %v2949, %v3240
      %v3392 = vadd.f32 %v2950, %v3242
      %v3393 = vadd.f32 %v2951, %v3244
      %v3394 = vadd.f32 %v2952, %v3248
      %v3395 = vadd.f32 %v2953, %v3250
      %v3396 = vadd.f32 %v2954, %v3252
      %v3397 = vadd.f32 %v2955, %v3254
      %v3398 = vadd.f32 %v2956, %v3258
      %v3399 = vadd.f32 %v2957, %v3260
      %v3400 = vadd.f32 %v2958, %v3262
      %v3401 = vadd.f32 %v2959, %v3264
      %v3402 = vadd.f32 %v2960, %v3268
      %v3403 = vadd.f32 %v2961, %v3270
      %v3404 = vadd.f32 %v2962, %v3272
      %v3405 = vadd.f32 %v2963, %v3274
      %v3406 = vadd.f32 %v2964, %v3278
      %v3407 = vadd.f32 %v2965, %v3280
      %v3408 = vadd.f32 %v2966, %v3282
      %v3409 = vadd.f32 %v2967, %v3284
      %v3410 = vadd.f32 %v2968, %v3288
      %v3411 = vadd.f32 %v2969, %v3290
      %v3412 = vadd.f32 %v2970, %v3292
      %v3413 = vadd.f32 %v2971, %v3294
      %v3414 = vadd.f32 %v2972, %v3298
      %v3415 = vadd.f32 %v2973, %v3300
      %v3416 = vadd.f32 %v2974, %v3302
      %v3417 = vadd.f32 %v2975, %v3304
      %v3418 = vadd.f32 %v2976, %v3308
      %v3419 = vadd.f32 %v2977, %v3310
      %v3420 = vadd.f32 %v2978, %v3312
      %v3421 = vadd.f32 %v2979, %v3314
      %v3422 = vadd.f32 %v2980, %v3318
      %v3423 = vadd.f32 %v2981, %v3320
      %v3424 = vadd.f32 %v2982, %v3322
      %v3425 = vadd.f32 %v2983, %v3324
      %v3426 = vadd.f32 %v2984, %v3328
      %v3427 = vadd.f32 %v2985, %v3330
      %v3428 = vadd.f32 %v2986, %v3332
      %v3429 = vadd.f32 %v2987, %v3334
      %v3430 = vadd.f32 %v2988, %v3338
      %v3431 = vadd.f32 %v2989, %v3340
      %v3432 = vadd.f32 %v2990, %v3342
      %v3433 = vadd.f32 %v2991, %v3344
      %v3434 = vadd.f32 %v2992, %v3348
      %v3435 = vadd.f32 %v2993, %v3350
      %v3436 = vadd.f32 %v2994, %v3352
      %v3437 = vadd.f32 %v2995, %v3354
      %v3438 = vadd.f32 %v2996, %v3358
      %v3439 = vadd.f32 %v2997, %v3360
      %v3440 = vadd.f32 %v2998, %v3362
      %v3441 = vadd.f32 %v2999, %v3364
      %v3442 = vadd.f32 %v3000, %v3368
      %v3443 = vadd.f32 %v3001, %v3370
      %v3444 = vadd.f32 %v3002, %v3372
      %v3445 = vadd.f32 %v3003, %v3374
      %v3446 = vadd.f32 %v3004, %v3378
      %v3447 = vadd.f32 %v3005, %v3380
      %v3448 = vadd.f32 %v3006, %v3382
      %v3449 = vadd.f32 %v3007, %v3384
      %3450 = vst [vmem:[#allocation4] sm:$0xff] %v3386
      %3451 = vst [vmem:[#allocation4 + $0x8] sm:$0xff] %v3387
      %3452 = vst [vmem:[#allocation4 + $0x10] sm:$0xff] %v3388
      %3453 = vst [vmem:[#allocation4 + $0x18] sm:$0xff] %v3389
      %3454 = vst [vmem:[#allocation4 + $0x20] sm:$0xff] %v3390
      %3455 = vst [vmem:[#allocation4 + $0x28] sm:$0xff] %v3391
      %3456 = vst [vmem:[#allocation4 + $0x30] sm:$0xff] %v3392
      %3457 = vst [vmem:[#allocation4 + $0x38] sm:$0xff] %v3393
      %3458 = vst [vmem:[#allocation4 + $0x40] sm:$0xff] %v3394
      %3459 = vst [vmem:[#allocation4 + $0x48] sm:$0xff] %v3395
      %3460 = vst [vmem:[#allocation4 + $0x50] sm:$0xff] %v3396
      %3461 = vst [vmem:[#allocation4 + $0x58] sm:$0xff] %v3397
      %3462 = vst [vmem:[#allocation4 + $0x60] sm:$0xff] %v3398
      %3463 = vst [vmem:[#allocation4 + $0x68] sm:$0xff] %v3399
      %3464 = vst [vmem:[#allocation4 + $0x70] sm:$0xff] %v3400
      %3465 = vst [vmem:[#allocation4 + $0x78] sm:$0xff] %v3401
      %3466 = vst [vmem:[#allocation4 + $0x80] sm:$0xff] %v3402
      %3467 = vst [vmem:[#allocation4 + $0x88] sm:$0xff] %v3403
      %3468 = vst [vmem:[#allocation4 + $0x90] sm:$0xff] %v3404
      %3469 = vst [vmem:[#allocation4 + $0x98] sm:$0xff] %v3405
      %3470 = vst [vmem:[#allocation4 + $0xa0] sm:$0xff] %v3406
      %3471 = vst [vmem:[#allocation4 + $0xa8] sm:$0xff] %v3407
      %3472 = vst [vmem:[#allocation4 + $0xb0] sm:$0xff] %v3408
      %3473 = vst [vmem:[#allocation4 + $0xb8] sm:$0xff] %v3409
      %3474 = vst [vmem:[#allocation4 + $0xc0] sm:$0xff] %v3410
      %3475 = vst [vmem:[#allocation4 + $0xc8] sm:$0xff] %v3411
      %3476 = vst [vmem:[#allocation4 + $0xd0] sm:$0xff] %v3412
      %3477 = vst [vmem:[#allocation4 + $0xd8] sm:$0xff] %v3413
      %3478 = vst [vmem:[#allocation4 + $0xe0] sm:$0xff] %v3414
      %3479 = vst [vmem:[#allocation4 + $0xe8] sm:$0xff] %v3415
      %3480 = vst [vmem:[#allocation4 + $0xf0] sm:$0xff] %v3416
      %3481 = vst [vmem:[#allocation4 + $0xf8] sm:$0xff] %v3417
      %3482 = vst [vmem:[#allocation4 + $0x100] sm:$0xff] %v3418
      %3483 = vst [vmem:[#allocation4 + $0x108] sm:$0xff] %v3419
      %3484 = vst [vmem:[#allocation4 + $0x110] sm:$0xff] %v3420
      %3485 = vst [vmem:[#allocation4 + $0x118] sm:$0xff] %v3421
      %3486 = vst [vmem:[#allocation4 + $0x120] sm:$0xff] %v3422
      %3487 = vst [vmem:[#allocation4 + $0x128] sm:$0xff] %v3423
      %3488 = vst [vmem:[#allocation4 + $0x130] sm:$0xff] %v3424
      %3489 = vst [vmem:[#allocation4 + $0x138] sm:$0xff] %v3425
      %3490 = vst [vmem:[#allocation4 + $0x140] sm:$0xff] %v3426
      %3491 = vst [vmem:[#allocation4 + $0x148] sm:$0xff] %v3427
      %3492 = vst [vmem:[#allocation4 + $0x150] sm:$0xff] %v3428
      %3493 = vst [vmem:[#allocation4 + $0x158] sm:$0xff] %v3429
      %3494 = vst [vmem:[#allocation4 + $0x160] sm:$0xff] %v3430
      %3495 = vst [vmem:[#allocation4 + $0x168] sm:$0xff] %v3431
      %3496 = vst [vmem:[#allocation4 + $0x170] sm:$0xff] %v3432
      %3497 = vst [vmem:[#allocation4 + $0x178] sm:$0xff] %v3433
      %3498 = vst [vmem:[#allocation4 + $0x180] sm:$0xff] %v3434
      %3499 = vst [vmem:[#allocation4 + $0x188] sm:$0xff] %v3435
      %3500 = vst [vmem:[#allocation4 + $0x190] sm:$0xff] %v3436
      %3501 = vst [vmem:[#allocation4 + $0x198] sm:$0xff] %v3437
      %3502 = vst [vmem:[#allocation4 + $0x1a0] sm:$0xff] %v3438
      %3503 = vst [vmem:[#allocation4 + $0x1a8] sm:$0xff] %v3439
      %3504 = vst [vmem:[#allocation4 + $0x1b0] sm:$0xff] %v3440
      %3505 = vst [vmem:[#allocation4 + $0x1b8] sm:$0xff] %v3441
      %3506 = vst [vmem:[#allocation4 + $0x1c0] sm:$0xff] %v3442
      %3507 = vst [vmem:[#allocation4 + $0x1c8] sm:$0xff] %v3443
      %3508 = vst [vmem:[#allocation4 + $0x1d0] sm:$0xff] %v3444
      %3509 = vst [vmem:[#allocation4 + $0x1d8] sm:$0xff] %v3445
      %3510 = vst [vmem:[#allocation4 + $0x1e0] sm:$0xff] %v3446
      %3511 = vst [vmem:[#allocation4 + $0x1e8] sm:$0xff] %v3447
      %3512 = vst [vmem:[#allocation4 + $0x1f0] sm:$0xff] %v3448
      %3513 = vst [vmem:[#allocation4 + $0x1f8] sm:$0xff] %v3449
      %v3514 = vld [vmem:[#allocation4] sm:$0xff]
      %v3515 = vld [vmem:[#allocation4 + $0x8] sm:$0xff]
      %v3516 = vld [vmem:[#allocation4 + $0x10] sm:$0xff]
      %v3517 = vld [vmem:[#allocation4 + $0x18] sm:$0xff]
      %v3518 = vld [vmem:[#allocation4 + $0x20] sm:$0xff]
      %v3519 = vld [vmem:[#allocation4 + $0x28] sm:$0xff]
      %v3520 = vld [vmem:[#allocation4 + $0x30] sm:$0xff]
      %v3521 = vld [vmem:[#allocation4 + $0x38] sm:$0xff]
      %v3522 = vld [vmem:[#allocation4 + $0x40] sm:$0xff]
      %v3523 = vld [vmem:[#allocation4 + $0x48] sm:$0xff]
      %v3524 = vld [vmem:[#allocation4 + $0x50] sm:$0xff]
      %v3525 = vld [vmem:[#allocation4 + $0x58] sm:$0xff]
      %v3526 = vld [vmem:[#allocation4 + $0x60] sm:$0xff]
      %v3527 = vld [vmem:[#allocation4 + $0x68] sm:$0xff]
      %v3528 = vld [vmem:[#allocation4 + $0x70] sm:$0xff]
      %v3529 = vld [vmem:[#allocation4 + $0x78] sm:$0xff]
      %v3530 = vld [vmem:[#allocation4 + $0x80] sm:$0xff]
      %v3531 = vld [vmem:[#allocation4 + $0x88] sm:$0xff]
      %v3532 = vld [vmem:[#allocation4 + $0x90] sm:$0xff]
      %v3533 = vld [vmem:[#allocation4 + $0x98] sm:$0xff]
      %v3534 = vld [vmem:[#allocation4 + $0xa0] sm:$0xff]
      %v3535 = vld [vmem:[#allocation4 + $0xa8] sm:$0xff]
      %v3536 = vld [vmem:[#allocation4 + $0xb0] sm:$0xff]
      %v3537 = vld [vmem:[#allocation4 + $0xb8] sm:$0xff]
      %v3538 = vld [vmem:[#allocation4 + $0xc0] sm:$0xff]
      %v3539 = vld [vmem:[#allocation4 + $0xc8] sm:$0xff]
      %v3540 = vld [vmem:[#allocation4 + $0xd0] sm:$0xff]
      %v3541 = vld [vmem:[#allocation4 + $0xd8] sm:$0xff]
      %v3542 = vld [vmem:[#allocation4 + $0xe0] sm:$0xff]
      %v3543 = vld [vmem:[#allocation4 + $0xe8] sm:$0xff]
      %v3544 = vld [vmem:[#allocation4 + $0xf0] sm:$0xff]
      %v3545 = vld [vmem:[#allocation4 + $0xf8] sm:$0xff]
      %v3546 = vld [vmem:[#allocation4 + $0x100] sm:$0xff]
      %v3547 = vld [vmem:[#allocation4 + $0x108] sm:$0xff]
      %v3548 = vld [vmem:[#allocation4 + $0x110] sm:$0xff]
      %v3549 = vld [vmem:[#allocation4 + $0x118] sm:$0xff]
      %v3550 = vld [vmem:[#allocation4 + $0x120] sm:$0xff]
      %v3551 = vld [vmem:[#allocation4 + $0x128] sm:$0xff]
      %v3552 = vld [vmem:[#allocation4 + $0x130] sm:$0xff]
      %v3553 = vld [vmem:[#allocation4 + $0x138] sm:$0xff]
      %v3554 = vld [vmem:[#allocation4 + $0x140] sm:$0xff]
      %v3555 = vld [vmem:[#allocation4 + $0x148] sm:$0xff]
      %v3556 = vld [vmem:[#allocation4 + $0x150] sm:$0xff]
      %v3557 = vld [vmem:[#allocation4 + $0x158] sm:$0xff]
      %v3558 = vld [vmem:[#allocation4 + $0x160] sm:$0xff]
      %v3559 = vld [vmem:[#allocation4 + $0x168] sm:$0xff]
      %v3560 = vld [vmem:[#allocation4 + $0x170] sm:$0xff]
      %v3561 = vld [vmem:[#allocation4 + $0x178] sm:$0xff]
      %v3562 = vld [vmem:[#allocation4 + $0x180] sm:$0xff]
      %v3563 = vld [vmem:[#allocation4 + $0x188] sm:$0xff]
      %v3564 = vld [vmem:[#allocation4 + $0x190] sm:$0xff]
      %v3565 = vld [vmem:[#allocation4 + $0x198] sm:$0xff]
      %v3566 = vld [vmem:[#allocation4 + $0x1a0] sm:$0xff]
      %v3567 = vld [vmem:[#allocation4 + $0x1a8] sm:$0xff]
      %v3568 = vld [vmem:[#allocation4 + $0x1b0] sm:$0xff]
      %v3569 = vld [vmem:[#allocation4 + $0x1b8] sm:$0xff]
      %v3570 = vld [vmem:[#allocation4 + $0x1c0] sm:$0xff]
      %v3571 = vld [vmem:[#allocation4 + $0x1c8] sm:$0xff]
      %v3572 = vld [vmem:[#allocation4 + $0x1d0] sm:$0xff]
      %v3573 = vld [vmem:[#allocation4 + $0x1d8] sm:$0xff]
      %v3574 = vld [vmem:[#allocation4 + $0x1e0] sm:$0xff]
      %v3575 = vld [vmem:[#allocation4 + $0x1e8] sm:$0xff]
      %v3576 = vld [vmem:[#allocation4 + $0x1f0] sm:$0xff]
      %v3577 = vld [vmem:[#allocation4 + $0x1f8] sm:$0xff]
      %v3578 = vld [vmem:[#allocation3 + $0x18] sm:$0xf]
      %v3579 = vld [vmem:[#allocation3 + $0x1c] sm:$0xf]
      %v3580 = vld [vmem:[#allocation3 + $0x20] sm:$0xf]
      %v3581 = vld [vmem:[#allocation3 + $0x24] sm:$0xf]
      %v3582 = vld [vmem:[#allocation3 + $0x28] sm:$0xf]
      %v3583 = vld [vmem:[#allocation3 + $0x2c] sm:$0xf]
      %v3584 = vld [vmem:[#allocation3 + $0x30] sm:$0xf]
      %v3585 = vld [vmem:[#allocation3 + $0x34] sm:$0xf]
      %v3586 = vld [vmem:[#allocation3 + $0x38] sm:$0xf]
      %v3587 = vld [vmem:[#allocation3 + $0x3c] sm:$0xf]
      %v3588 = vld [vmem:[#allocation3 + $0x40] sm:$0xf]
      %v3589 = vld [vmem:[#allocation3 + $0x44] sm:$0xf]
      %v3590 = vld [vmem:[#allocation3 + $0x48] sm:$0xf]
      %v3591 = vld [vmem:[#allocation3 + $0x4c] sm:$0xf]
      %v3592 = vld [vmem:[#allocation3 + $0x50] sm:$0xf]
      %v3593 = vld [vmem:[#allocation3 + $0x54] sm:$0xf]
      %v3594 = vld [vmem:[#allocation3 + $0x58] sm:$0xf]
      %v3595 = vld [vmem:[#allocation3 + $0x5c] sm:$0xf]
      %v3596 = vld [vmem:[#allocation3 + $0x60] sm:$0xf]
      %v3597 = vld [vmem:[#allocation3 + $0x64] sm:$0xf]
      %v3598 = vld [vmem:[#allocation3 + $0x68] sm:$0xf]
      %v3599 = vld [vmem:[#allocation3 + $0x6c] sm:$0xf]
      %v3600 = vld [vmem:[#allocation3 + $0x70] sm:$0xf]
      %v3601 = vld [vmem:[#allocation3 + $0x74] sm:$0xf]
      %v3602 = vld [vmem:[#allocation3 + $0x78] sm:$0xf]
      %v3603 = vld [vmem:[#allocation3 + $0x7c] sm:$0xf]
      %v3604 = vld [vmem:[#allocation3 + $0x80] sm:$0xf]
      %v3605 = vld [vmem:[#allocation3 + $0x84] sm:$0xf]
      %v3606 = vld [vmem:[#allocation3 + $0x88] sm:$0xf]
      %v3607 = vld [vmem:[#allocation3 + $0x8c] sm:$0xf]
      %v3608 = vld [vmem:[#allocation3 + $0x90] sm:$0xf]
      %v3609 = vld [vmem:[#allocation3 + $0x94] sm:$0xf]
      %s3610 = scalar_lea.vmem %s1, 72
      %v3611 = vld [vmem:[%s3610] sm:$0xff]
      %v3612 = vld [vmem:[%s3610 + $0x8] sm:$0xff]
      %v3613 = vld [vmem:[%s3610 + $0x10] sm:$0x33]
      %v3646 = vunpack.c.l.b16 %v3578
      %v3647 = vunpack.c.l.b16 %v3579
      %v3648 = vunpack.c.l.b16 %v3580
      %v3649 = vunpack.c.l.b16 %v3581
      %v3650 = vunpack.c.l.b16 %v3582
      %v3651 = vunpack.c.l.b16 %v3583
      %v3652 = vunpack.c.l.b16 %v3584
      %v3653 = vunpack.c.l.b16 %v3585
      %v3654 = vunpack.c.l.b16 %v3586
      %v3655 = vunpack.c.l.b16 %v3587
      %v3656 = vunpack.c.l.b16 %v3588
      %v3657 = vunpack.c.l.b16 %v3589
      %v3658 = vunpack.c.l.b16 %v3590
      %v3659 = vunpack.c.l.b16 %v3591
      %v3660 = vunpack.c.l.b16 %v3592
      %v3661 = vunpack.c.l.b16 %v3593
      %v3662 = vunpack.c.l.b16 %v3594
      %v3663 = vunpack.c.l.b16 %v3595
      %v3664 = vunpack.c.l.b16 %v3596
      %v3665 = vunpack.c.l.b16 %v3597
      %v3666 = vunpack.c.l.b16 %v3598
      %v3667 = vunpack.c.l.b16 %v3599
      %v3668 = vunpack.c.l.b16 %v3600
      %v3669 = vunpack.c.l.b16 %v3601
      %v3670 = vunpack.c.l.b16 %v3602
      %v3671 = vunpack.c.l.b16 %v3603
      %v3672 = vunpack.c.l.b16 %v3604
      %v3673 = vunpack.c.l.b16 %v3605
      %v3674 = vunpack.c.l.b16 %v3606
      %v3675 = vunpack.c.l.b16 %v3607
      %v3676 = vunpack.c.l.b16 %v3608
      %v3677 = vunpack.c.l.b16 %v3609
      %v3678 = vpack.c.b16 %v3647, %v3646
      %v3679 = vpack.c.b16 %v3649, %v3648
      %v3680 = vpack.c.b16 %v3651, %v3650
      %v3681 = vpack.c.b16 %v3653, %v3652
      %v3682 = vpack.c.b16 %v3655, %v3654
      %v3683 = vpack.c.b16 %v3657, %v3656
      %v3684 = vpack.c.b16 %v3659, %v3658
      %v3685 = vpack.c.b16 %v3661, %v3660
      %v3686 = vpack.c.b16 %v3663, %v3662
      %v3687 = vpack.c.b16 %v3665, %v3664
      %v3688 = vpack.c.b16 %v3667, %v3666
      %v3689 = vpack.c.b16 %v3669, %v3668
      %v3690 = vpack.c.b16 %v3671, %v3670
      %v3691 = vpack.c.b16 %v3673, %v3672
      %v3692 = vpack.c.b16 %v3675, %v3674
      %v3693 = vpack.c.b16 %v3677, %v3676
      %v3697 = vunpack.c.l.b16 %v3611
      %v3698 = vunpack.c.h.b16 %v3611
      %v3699 = vunpack.c.l.b16 %v3612
      %v3700 = vunpack.c.h.b16 %v3612
      %v3701 = vunpack.c.l.b16 %v3613
      %v3702 = vunpack.c.h.b16 %v3613
      %v3703 = vpack.c.b16 %v3699, %v3697
      %v3704 = vpack.c.b16 %v3700, %v3698
      %v3705 = vpack.c.b16 %v3701, %v3701
      %v3706 = vpack.c.b16 %v3702, %v3702
      %v3710 = vsel %vm1986, %v3678, 0
      %v3713 = vsel %vm1986, %v3679, 0
      %v3716 = vsel %vm1986, %v3680, 0
      %v3719 = vsel %vm1986, %v3681, 0
      %v3722 = vsel %vm1986, %v3682, 0
      %v3725 = vsel %vm1986, %v3683, 0
      %v3728 = vsel %vm1986, %v3684, 0
      %v3731 = vsel %vm1986, %v3685, 0
      %v3734 = vsel %vm1986, %v3686, 0
      %v3737 = vsel %vm1986, %v3687, 0
      %v3740 = vsel %vm1986, %v3688, 0
      %v3743 = vsel %vm1986, %v3689, 0
      %v3746 = vsel %vm1986, %v3690, 0
      %v3749 = vsel %vm1986, %v3691, 0
      %v3752 = vsel %vm1986, %v3692, 0
      %v3755 = vsel %vm1986, %v3693, 0
      %v3758 = vsel %vm2035, %v3705, 0
      %v3761 = vsel %vm2035, %v3706, 0
      %3763 = vmatprep.subr.bf16.mxu0 0
      %3764 = vmatpush1.bf16.msra.mxu0 0
      %3765 = vmatprep.subr.bf16.mxu0 0
      %3766 = vmatpush1.bf16.msra.mxu0 0
      %3767 = vmatprep.subr.bf16.mxu0 0
      %3768 = vmatpush1.bf16.msra.mxu0 0
      %3769 = vmatprep.subr.bf16.mxu0 0
      %3770 = vmatpush1.bf16.msra.mxu0 0
      %3771 = vmatprep.subr.bf16.mxu0 0
      %3772 = vmatpush1.bf16.msra.mxu0 0
      %3773 = vmatprep.subr.bf16.mxu0 0
      %3774 = vmatpush1.bf16.msra.mxu0 0
      %3775 = vmatprep.subr.bf16.mxu0 %v3761
      %3776 = vmatpush1.bf16.msra.mxu0 %v3758
      %3777 = vmatprep.subr.bf16.mxu0 %v3704
      %3778 = vmatpush1.bf16.msra.mxu0 %v3703
      %3779 = vmatprep.subr.bf16.mxu0 0
      %3780 = vmatpush2.bf16.msra.mxu0 0
      %3781 = vmatprep.subr.bf16.mxu0 0
      %3782 = vmatpush2.bf16.msra.mxu0 0
      %3783 = vmatprep.subr.bf16.mxu0 0
      %3784 = vmatpush2.bf16.msra.mxu0 0
      %3785 = vmatprep.subr.bf16.mxu0 0
      %3786 = vmatpush2.bf16.msra.mxu0 0
      %3787 = vmatprep.subr.bf16.mxu0 0
      %3788 = vmatpush2.bf16.msra.mxu0 0
      %3789 = vmatprep.subr.bf16.mxu0 0
      %3790 = vmatpush2.bf16.msra.mxu0 0
      %3791 = vmatprep.subr.bf16.mxu0 0
      %3792 = vmatpush2.bf16.msra.mxu0 0
      %3793 = vmatprep.subr.bf16.mxu0 0
      %3794 = vmatpush2.bf16.msra.mxu0 0
      %3795 = vmatprep.mubr.bf16.mxu0 0
      %3796 = vmatmul.mubr.bf16.gmra.mxu0 %v3710
      %v3797 = vpop.f32.mrf.mxu0
      %v3798 = vadd.f32 0.0, %v3797
      %v3799 = vpop.f32.mrf.mxu0
      %v3800 = vadd.f32 0.0, %v3799
      %v3801 = vpop.f32.mrf.mxu0
      %v3802 = vadd.f32 0.0, %v3801
      %v3803 = vpop.f32.mrf.mxu0
      %v3804 = vadd.f32 0.0, %v3803
      %3805 = vmatprep.mubr.bf16.mxu0 0
      %3806 = vmatmul.mubr.bf16.gmra.mxu0 %v3713
      %v3807 = vpop.f32.mrf.mxu0
      %v3808 = vadd.f32 0.0, %v3807
      %v3809 = vpop.f32.mrf.mxu0
      %v3810 = vadd.f32 0.0, %v3809
      %v3811 = vpop.f32.mrf.mxu0
      %v3812 = vadd.f32 0.0, %v3811
      %v3813 = vpop.f32.mrf.mxu0
      %v3814 = vadd.f32 0.0, %v3813
      %3815 = vmatprep.mubr.bf16.mxu0 0
      %3816 = vmatmul.mubr.bf16.gmra.mxu0 %v3716
      %v3817 = vpop.f32.mrf.mxu0
      %v3818 = vadd.f32 0.0, %v3817
      %v3819 = vpop.f32.mrf.mxu0
      %v3820 = vadd.f32 0.0, %v3819
      %v3821 = vpop.f32.mrf.mxu0
      %v3822 = vadd.f32 0.0, %v3821
      %v3823 = vpop.f32.mrf.mxu0
      %v3824 = vadd.f32 0.0, %v3823
      %3825 = vmatprep.mubr.bf16.mxu0 0
      %3826 = vmatmul.mubr.bf16.gmra.mxu0 %v3719
      %v3827 = vpop.f32.mrf.mxu0
      %v3828 = vadd.f32 0.0, %v3827
      %v3829 = vpop.f32.mrf.mxu0
      %v3830 = vadd.f32 0.0, %v3829
      %v3831 = vpop.f32.mrf.mxu0
      %v3832 = vadd.f32 0.0, %v3831
      %v3833 = vpop.f32.mrf.mxu0
      %v3834 = vadd.f32 0.0, %v3833
      %3835 = vmatprep.mubr.bf16.mxu0 0
      %3836 = vmatmul.mubr.bf16.gmra.mxu0 %v3722
      %v3837 = vpop.f32.mrf.mxu0
      %v3838 = vadd.f32 0.0, %v3837
      %v3839 = vpop.f32.mrf.mxu0
      %v3840 = vadd.f32 0.0, %v3839
      %v3841 = vpop.f32.mrf.mxu0
      %v3842 = vadd.f32 0.0, %v3841
      %v3843 = vpop.f32.mrf.mxu0
      %v3844 = vadd.f32 0.0, %v3843
      %3845 = vmatprep.mubr.bf16.mxu0 0
      %3846 = vmatmul.mubr.bf16.gmra.mxu0 %v3725
      %v3847 = vpop.f32.mrf.mxu0
      %v3848 = vadd.f32 0.0, %v3847
      %v3849 = vpop.f32.mrf.mxu0
      %v3850 = vadd.f32 0.0, %v3849
      %v3851 = vpop.f32.mrf.mxu0
      %v3852 = vadd.f32 0.0, %v3851
      %v3853 = vpop.f32.mrf.mxu0
      %v3854 = vadd.f32 0.0, %v3853
      %3855 = vmatprep.mubr.bf16.mxu0 0
      %3856 = vmatmul.mubr.bf16.gmra.mxu0 %v3728
      %v3857 = vpop.f32.mrf.mxu0
      %v3858 = vadd.f32 0.0, %v3857
      %v3859 = vpop.f32.mrf.mxu0
      %v3860 = vadd.f32 0.0, %v3859
      %v3861 = vpop.f32.mrf.mxu0
      %v3862 = vadd.f32 0.0, %v3861
      %v3863 = vpop.f32.mrf.mxu0
      %v3864 = vadd.f32 0.0, %v3863
      %3865 = vmatprep.mubr.bf16.mxu0 0
      %3866 = vmatmul.mubr.bf16.gmra.mxu0 %v3731
      %v3867 = vpop.f32.mrf.mxu0
      %v3868 = vadd.f32 0.0, %v3867
      %v3869 = vpop.f32.mrf.mxu0
      %v3870 = vadd.f32 0.0, %v3869
      %v3871 = vpop.f32.mrf.mxu0
      %v3872 = vadd.f32 0.0, %v3871
      %v3873 = vpop.f32.mrf.mxu0
      %v3874 = vadd.f32 0.0, %v3873
      %3875 = vmatprep.mubr.bf16.mxu0 0
      %3876 = vmatmul.mubr.bf16.gmra.mxu0 %v3734
      %v3877 = vpop.f32.mrf.mxu0
      %v3878 = vadd.f32 0.0, %v3877
      %v3879 = vpop.f32.mrf.mxu0
      %v3880 = vadd.f32 0.0, %v3879
      %v3881 = vpop.f32.mrf.mxu0
      %v3882 = vadd.f32 0.0, %v3881
      %v3883 = vpop.f32.mrf.mxu0
      %v3884 = vadd.f32 0.0, %v3883
      %3885 = vmatprep.mubr.bf16.mxu0 0
      %3886 = vmatmul.mubr.bf16.gmra.mxu0 %v3737
      %v3887 = vpop.f32.mrf.mxu0
      %v3888 = vadd.f32 0.0, %v3887
      %v3889 = vpop.f32.mrf.mxu0
      %v3890 = vadd.f32 0.0, %v3889
      %v3891 = vpop.f32.mrf.mxu0
      %v3892 = vadd.f32 0.0, %v3891
      %v3893 = vpop.f32.mrf.mxu0
      %v3894 = vadd.f32 0.0, %v3893
      %3895 = vmatprep.mubr.bf16.mxu0 0
      %3896 = vmatmul.mubr.bf16.gmra.mxu0 %v3740
      %v3897 = vpop.f32.mrf.mxu0
      %v3898 = vadd.f32 0.0, %v3897
      %v3899 = vpop.f32.mrf.mxu0
      %v3900 = vadd.f32 0.0, %v3899
      %v3901 = vpop.f32.mrf.mxu0
      %v3902 = vadd.f32 0.0, %v3901
      %v3903 = vpop.f32.mrf.mxu0
      %v3904 = vadd.f32 0.0, %v3903
      %3905 = vmatprep.mubr.bf16.mxu0 0
      %3906 = vmatmul.mubr.bf16.gmra.mxu0 %v3743
      %v3907 = vpop.f32.mrf.mxu0
      %v3908 = vadd.f32 0.0, %v3907
      %v3909 = vpop.f32.mrf.mxu0
      %v3910 = vadd.f32 0.0, %v3909
      %v3911 = vpop.f32.mrf.mxu0
      %v3912 = vadd.f32 0.0, %v3911
      %v3913 = vpop.f32.mrf.mxu0
      %v3914 = vadd.f32 0.0, %v3913
      %3915 = vmatprep.mubr.bf16.mxu0 0
      %3916 = vmatmul.mubr.bf16.gmra.mxu0 %v3746
      %v3917 = vpop.f32.mrf.mxu0
      %v3918 = vadd.f32 0.0, %v3917
      %v3919 = vpop.f32.mrf.mxu0
      %v3920 = vadd.f32 0.0, %v3919
      %v3921 = vpop.f32.mrf.mxu0
      %v3922 = vadd.f32 0.0, %v3921
      %v3923 = vpop.f32.mrf.mxu0
      %v3924 = vadd.f32 0.0, %v3923
      %3925 = vmatprep.mubr.bf16.mxu0 0
      %3926 = vmatmul.mubr.bf16.gmra.mxu0 %v3749
      %v3927 = vpop.f32.mrf.mxu0
      %v3928 = vadd.f32 0.0, %v3927
      %v3929 = vpop.f32.mrf.mxu0
      %v3930 = vadd.f32 0.0, %v3929
      %v3931 = vpop.f32.mrf.mxu0
      %v3932 = vadd.f32 0.0, %v3931
      %v3933 = vpop.f32.mrf.mxu0
      %v3934 = vadd.f32 0.0, %v3933
      %3935 = vmatprep.mubr.bf16.mxu0 0
      %3936 = vmatmul.mubr.bf16.gmra.mxu0 %v3752
      %v3937 = vpop.f32.mrf.mxu0
      %v3938 = vadd.f32 0.0, %v3937
      %v3939 = vpop.f32.mrf.mxu0
      %v3940 = vadd.f32 0.0, %v3939
      %v3941 = vpop.f32.mrf.mxu0
      %v3942 = vadd.f32 0.0, %v3941
      %v3943 = vpop.f32.mrf.mxu0
      %v3944 = vadd.f32 0.0, %v3943
      %3945 = vmatprep.mubr.bf16.mxu0 0
      %3946 = vmatmul.mubr.bf16.gmra.mxu0 %v3755
      %v3947 = vpop.f32.mrf.mxu0
      %v3948 = vadd.f32 0.0, %v3947
      %v3949 = vpop.f32.mrf.mxu0
      %v3950 = vadd.f32 0.0, %v3949
      %v3951 = vpop.f32.mrf.mxu0
      %v3952 = vadd.f32 0.0, %v3951
      %v3953 = vpop.f32.mrf.mxu0
      %v3954 = vadd.f32 0.0, %v3953
      %3955 = vdwg.mxu0
      %v3956 = vadd.f32 %v3514, %v3798
      %v3957 = vadd.f32 %v3515, %v3800
      %v3958 = vadd.f32 %v3516, %v3802
      %v3959 = vadd.f32 %v3517, %v3804
      %v3960 = vadd.f32 %v3518, %v3808
      %v3961 = vadd.f32 %v3519, %v3810
      %v3962 = vadd.f32 %v3520, %v3812
      %v3963 = vadd.f32 %v3521, %v3814
      %v3964 = vadd.f32 %v3522, %v3818
      %v3965 = vadd.f32 %v3523, %v3820
      %v3966 = vadd.f32 %v3524, %v3822
      %v3967 = vadd.f32 %v3525, %v3824
      %v3968 = vadd.f32 %v3526, %v3828
      %v3969 = vadd.f32 %v3527, %v3830
      %v3970 = vadd.f32 %v3528, %v3832
      %v3971 = vadd.f32 %v3529, %v3834
      %v3972 = vadd.f32 %v3530, %v3838
      %v3973 = vadd.f32 %v3531, %v3840
      %v3974 = vadd.f32 %v3532, %v3842
      %v3975 = vadd.f32 %v3533, %v3844
      %v3976 = vadd.f32 %v3534, %v3848
      %v3977 = vadd.f32 %v3535, %v3850
      %v3978 = vadd.f32 %v3536, %v3852
      %v3979 = vadd.f32 %v3537, %v3854
      %v3980 = vadd.f32 %v3538, %v3858
      %v3981 = vadd.f32 %v3539, %v3860
      %v3982 = vadd.f32 %v3540, %v3862
      %v3983 = vadd.f32 %v3541, %v3864
      %v3984 = vadd.f32 %v3542, %v3868
      %v3985 = vadd.f32 %v3543, %v3870
      %v3986 = vadd.f32 %v3544, %v3872
      %v3987 = vadd.f32 %v3545, %v3874
      %v3988 = vadd.f32 %v3546, %v3878
      %v3989 = vadd.f32 %v3547, %v3880
      %v3990 = vadd.f32 %v3548, %v3882
      %v3991 = vadd.f32 %v3549, %v3884
      %v3992 = vadd.f32 %v3550, %v3888
      %v3993 = vadd.f32 %v3551, %v3890
      %v3994 = vadd.f32 %v3552, %v3892
      %v3995 = vadd.f32 %v3553, %v3894
      %v3996 = vadd.f32 %v3554, %v3898
      %v3997 = vadd.f32 %v3555, %v3900
      %v3998 = vadd.f32 %v3556, %v3902
      %v3999 = vadd.f32 %v3557, %v3904
      %v4000 = vadd.f32 %v3558, %v3908
      %v4001 = vadd.f32 %v3559, %v3910
      %v4002 = vadd.f32 %v3560, %v3912
      %v4003 = vadd.f32 %v3561, %v3914
      %v4004 = vadd.f32 %v3562, %v3918
      %v4005 = vadd.f32 %v3563, %v3920
      %v4006 = vadd.f32 %v3564, %v3922
      %v4007 = vadd.f32 %v3565, %v3924
      %v4008 = vadd.f32 %v3566, %v3928
      %v4009 = vadd.f32 %v3567, %v3930
      %v4010 = vadd.f32 %v3568, %v3932
      %v4011 = vadd.f32 %v3569, %v3934
      %v4012 = vadd.f32 %v3570, %v3938
      %v4013 = vadd.f32 %v3571, %v3940
      %v4014 = vadd.f32 %v3572, %v3942
      %v4015 = vadd.f32 %v3573, %v3944
      %v4016 = vadd.f32 %v3574, %v3948
      %v4017 = vadd.f32 %v3575, %v3950
      %v4018 = vadd.f32 %v3576, %v3952
      %v4019 = vadd.f32 %v3577, %v3954
      %4020 = vst [vmem:[#allocation4] sm:$0xff] %v3956
      %4021 = vst [vmem:[#allocation4 + $0x8] sm:$0xff] %v3957
      %4022 = vst [vmem:[#allocation4 + $0x10] sm:$0xff] %v3958
      %4023 = vst [vmem:[#allocation4 + $0x18] sm:$0xff] %v3959
      %4024 = vst [vmem:[#allocation4 + $0x20] sm:$0xff] %v3960
      %4025 = vst [vmem:[#allocation4 + $0x28] sm:$0xff] %v3961
      %4026 = vst [vmem:[#allocation4 + $0x30] sm:$0xff] %v3962
      %4027 = vst [vmem:[#allocation4 + $0x38] sm:$0xff] %v3963
      %4028 = vst [vmem:[#allocation4 + $0x40] sm:$0xff] %v3964
      %4029 = vst [vmem:[#allocation4 + $0x48] sm:$0xff] %v3965
      %4030 = vst [vmem:[#allocation4 + $0x50] sm:$0xff] %v3966
      %4031 = vst [vmem:[#allocation4 + $0x58] sm:$0xff] %v3967
      %4032 = vst [vmem:[#allocation4 + $0x60] sm:$0xff] %v3968
      %4033 = vst [vmem:[#allocation4 + $0x68] sm:$0xff] %v3969
      %4034 = vst [vmem:[#allocation4 + $0x70] sm:$0xff] %v3970
      %4035 = vst [vmem:[#allocation4 + $0x78] sm:$0xff] %v3971
      %4036 = vst [vmem:[#allocation4 + $0x80] sm:$0xff] %v3972
      %4037 = vst [vmem:[#allocation4 + $0x88] sm:$0xff] %v3973
      %4038 = vst [vmem:[#allocation4 + $0x90] sm:$0xff] %v3974
      %4039 = vst [vmem:[#allocation4 + $0x98] sm:$0xff] %v3975
      %4040 = vst [vmem:[#allocation4 + $0xa0] sm:$0xff] %v3976
      %4041 = vst [vmem:[#allocation4 + $0xa8] sm:$0xff] %v3977
      %4042 = vst [vmem:[#allocation4 + $0xb0] sm:$0xff] %v3978
      %4043 = vst [vmem:[#allocation4 + $0xb8] sm:$0xff] %v3979
      %4044 = vst [vmem:[#allocation4 + $0xc0] sm:$0xff] %v3980
      %4045 = vst [vmem:[#allocation4 + $0xc8] sm:$0xff] %v3981
      %4046 = vst [vmem:[#allocation4 + $0xd0] sm:$0xff] %v3982
      %4047 = vst [vmem:[#allocation4 + $0xd8] sm:$0xff] %v3983
      %4048 = vst [vmem:[#allocation4 + $0xe0] sm:$0xff] %v3984
      %4049 = vst [vmem:[#allocation4 + $0xe8] sm:$0xff] %v3985
      %4050 = vst [vmem:[#allocation4 + $0xf0] sm:$0xff] %v3986
      %4051 = vst [vmem:[#allocation4 + $0xf8] sm:$0xff] %v3987
      %4052 = vst [vmem:[#allocation4 + $0x100] sm:$0xff] %v3988
      %4053 = vst [vmem:[#allocation4 + $0x108] sm:$0xff] %v3989
      %4054 = vst [vmem:[#allocation4 + $0x110] sm:$0xff] %v3990
      %4055 = vst [vmem:[#allocation4 + $0x118] sm:$0xff] %v3991
      %4056 = vst [vmem:[#allocation4 + $0x120] sm:$0xff] %v3992
      %4057 = vst [vmem:[#allocation4 + $0x128] sm:$0xff] %v3993
      %4058 = vst [vmem:[#allocation4 + $0x130] sm:$0xff] %v3994
      %4059 = vst [vmem:[#allocation4 + $0x138] sm:$0xff] %v3995
      %4060 = vst [vmem:[#allocation4 + $0x140] sm:$0xff] %v3996
      %4061 = vst [vmem:[#allocation4 + $0x148] sm:$0xff] %v3997
      %4062 = vst [vmem:[#allocation4 + $0x150] sm:$0xff] %v3998
      %4063 = vst [vmem:[#allocation4 + $0x158] sm:$0xff] %v3999
      %4064 = vst [vmem:[#allocation4 + $0x160] sm:$0xff] %v4000
      %4065 = vst [vmem:[#allocation4 + $0x168] sm:$0xff] %v4001
      %4066 = vst [vmem:[#allocation4 + $0x170] sm:$0xff] %v4002
      %4067 = vst [vmem:[#allocation4 + $0x178] sm:$0xff] %v4003
      %4068 = vst [vmem:[#allocation4 + $0x180] sm:$0xff] %v4004
      %4069 = vst [vmem:[#allocation4 + $0x188] sm:$0xff] %v4005
      %4070 = vst [vmem:[#allocation4 + $0x190] sm:$0xff] %v4006
      %4071 = vst [vmem:[#allocation4 + $0x198] sm:$0xff] %v4007
      %4072 = vst [vmem:[#allocation4 + $0x1a0] sm:$0xff] %v4008
      %4073 = vst [vmem:[#allocation4 + $0x1a8] sm:$0xff] %v4009
      %4074 = vst [vmem:[#allocation4 + $0x1b0] sm:$0xff] %v4010
      %4075 = vst [vmem:[#allocation4 + $0x1b8] sm:$0xff] %v4011
      %4076 = vst [vmem:[#allocation4 + $0x1c0] sm:$0xff] %v4012
      %4077 = vst [vmem:[#allocation4 + $0x1c8] sm:$0xff] %v4013
      %4078 = vst [vmem:[#allocation4 + $0x1d0] sm:$0xff] %v4014
      %4079 = vst [vmem:[#allocation4 + $0x1d8] sm:$0xff] %v4015
      %4080 = vst [vmem:[#allocation4 + $0x1e0] sm:$0xff] %v4016
      %4081 = vst [vmem:[#allocation4 + $0x1e8] sm:$0xff] %v4017
      %4082 = vst [vmem:[#allocation4 + $0x1f0] sm:$0xff] %v4018
      %4083 = vst [vmem:[#allocation4 + $0x1f8] sm:$0xff] %v4019
      %v4084 = vld [vmem:[#allocation4] sm:$0xff]
      %v4085 = vld [vmem:[#allocation4 + $0x8] sm:$0xff]
      %v4086 = vld [vmem:[#allocation4 + $0x10] sm:$0xff]
      %v4087 = vld [vmem:[#allocation4 + $0x18] sm:$0xff]
      %v4088 = vld [vmem:[#allocation4 + $0x20] sm:$0xff]
      %v4089 = vld [vmem:[#allocation4 + $0x28] sm:$0xff]
      %v4090 = vld [vmem:[#allocation4 + $0x30] sm:$0xff]
      %v4091 = vld [vmem:[#allocation4 + $0x38] sm:$0xff]
      %v4092 = vld [vmem:[#allocation4 + $0x40] sm:$0xff]
      %v4093 = vld [vmem:[#allocation4 + $0x48] sm:$0xff]
      %v4094 = vld [vmem:[#allocation4 + $0x50] sm:$0xff]
      %v4095 = vld [vmem:[#allocation4 + $0x58] sm:$0xff]
      %v4096 = vld [vmem:[#allocation4 + $0x60] sm:$0xff]
      %v4097 = vld [vmem:[#allocation4 + $0x68] sm:$0xff]
      %v4098 = vld [vmem:[#allocation4 + $0x70] sm:$0xff]
      %v4099 = vld [vmem:[#allocation4 + $0x78] sm:$0xff]
      %v4100 = vld [vmem:[#allocation4 + $0x80] sm:$0xff]
      %v4101 = vld [vmem:[#allocation4 + $0x88] sm:$0xff]
      %v4102 = vld [vmem:[#allocation4 + $0x90] sm:$0xff]
      %v4103 = vld [vmem:[#allocation4 + $0x98] sm:$0xff]
      %v4104 = vld [vmem:[#allocation4 + $0xa0] sm:$0xff]
      %v4105 = vld [vmem:[#allocation4 + $0xa8] sm:$0xff]
      %v4106 = vld [vmem:[#allocation4 + $0xb0] sm:$0xff]
      %v4107 = vld [vmem:[#allocation4 + $0xb8] sm:$0xff]
      %v4108 = vld [vmem:[#allocation4 + $0xc0] sm:$0xff]
      %v4109 = vld [vmem:[#allocation4 + $0xc8] sm:$0xff]
      %v4110 = vld [vmem:[#allocation4 + $0xd0] sm:$0xff]
      %v4111 = vld [vmem:[#allocation4 + $0xd8] sm:$0xff]
      %v4112 = vld [vmem:[#allocation4 + $0xe0] sm:$0xff]
      %v4113 = vld [vmem:[#allocation4 + $0xe8] sm:$0xff]
      %v4114 = vld [vmem:[#allocation4 + $0xf0] sm:$0xff]
      %v4115 = vld [vmem:[#allocation4 + $0xf8] sm:$0xff]
      %v4116 = vld [vmem:[#allocation4 + $0x100] sm:$0xff]
      %v4117 = vld [vmem:[#allocation4 + $0x108] sm:$0xff]
      %v4118 = vld [vmem:[#allocation4 + $0x110] sm:$0xff]
      %v4119 = vld [vmem:[#allocation4 + $0x118] sm:$0xff]
      %v4120 = vld [vmem:[#allocation4 + $0x120] sm:$0xff]
      %v4121 = vld [vmem:[#allocation4 + $0x128] sm:$0xff]
      %v4122 = vld [vmem:[#allocation4 + $0x130] sm:$0xff]
      %v4123 = vld [vmem:[#allocation4 + $0x138] sm:$0xff]
      %v4124 = vld [vmem:[#allocation4 + $0x140] sm:$0xff]
      %v4125 = vld [vmem:[#allocation4 + $0x148] sm:$0xff]
      %v4126 = vld [vmem:[#allocation4 + $0x150] sm:$0xff]
      %v4127 = vld [vmem:[#allocation4 + $0x158] sm:$0xff]
      %v4128 = vld [vmem:[#allocation4 + $0x160] sm:$0xff]
      %v4129 = vld [vmem:[#allocation4 + $0x168] sm:$0xff]
      %v4130 = vld [vmem:[#allocation4 + $0x170] sm:$0xff]
      %v4131 = vld [vmem:[#allocation4 + $0x178] sm:$0xff]
      %v4132 = vld [vmem:[#allocation4 + $0x180] sm:$0xff]
      %v4133 = vld [vmem:[#allocation4 + $0x188] sm:$0xff]
      %v4134 = vld [vmem:[#allocation4 + $0x190] sm:$0xff]
      %v4135 = vld [vmem:[#allocation4 + $0x198] sm:$0xff]
      %v4136 = vld [vmem:[#allocation4 + $0x1a0] sm:$0xff]
      %v4137 = vld [vmem:[#allocation4 + $0x1a8] sm:$0xff]
      %v4138 = vld [vmem:[#allocation4 + $0x1b0] sm:$0xff]
      %v4139 = vld [vmem:[#allocation4 + $0x1b8] sm:$0xff]
      %v4140 = vld [vmem:[#allocation4 + $0x1c0] sm:$0xff]
      %v4141 = vld [vmem:[#allocation4 + $0x1c8] sm:$0xff]
      %v4142 = vld [vmem:[#allocation4 + $0x1d0] sm:$0xff]
      %v4143 = vld [vmem:[#allocation4 + $0x1d8] sm:$0xff]
      %v4144 = vld [vmem:[#allocation4 + $0x1e0] sm:$0xff]
      %v4145 = vld [vmem:[#allocation4 + $0x1e8] sm:$0xff]
      %v4146 = vld [vmem:[#allocation4 + $0x1f0] sm:$0xff]
      %v4147 = vld [vmem:[#allocation4 + $0x1f8] sm:$0xff]
      %v4148 = vld [vmem:[#allocation3 + $0x20] sm:$0xf]
      %v4149 = vld [vmem:[#allocation3 + $0x24] sm:$0xf]
      %v4150 = vld [vmem:[#allocation3 + $0x28] sm:$0xf]
      %v4151 = vld [vmem:[#allocation3 + $0x2c] sm:$0xf]
      %v4152 = vld [vmem:[#allocation3 + $0x30] sm:$0xf]
      %v4153 = vld [vmem:[#allocation3 + $0x34] sm:$0xf]
      %v4154 = vld [vmem:[#allocation3 + $0x38] sm:$0xf]
      %v4155 = vld [vmem:[#allocation3 + $0x3c] sm:$0xf]
      %v4156 = vld [vmem:[#allocation3 + $0x40] sm:$0xf]
      %v4157 = vld [vmem:[#allocation3 + $0x44] sm:$0xf]
      %v4158 = vld [vmem:[#allocation3 + $0x48] sm:$0xf]
      %v4159 = vld [vmem:[#allocation3 + $0x4c] sm:$0xf]
      %v4160 = vld [vmem:[#allocation3 + $0x50] sm:$0xf]
      %v4161 = vld [vmem:[#allocation3 + $0x54] sm:$0xf]
      %v4162 = vld [vmem:[#allocation3 + $0x58] sm:$0xf]
      %v4163 = vld [vmem:[#allocation3 + $0x5c] sm:$0xf]
      %v4164 = vld [vmem:[#allocation3 + $0x60] sm:$0xf]
      %v4165 = vld [vmem:[#allocation3 + $0x64] sm:$0xf]
      %v4166 = vld [vmem:[#allocation3 + $0x68] sm:$0xf]
      %v4167 = vld [vmem:[#allocation3 + $0x6c] sm:$0xf]
      %v4168 = vld [vmem:[#allocation3 + $0x70] sm:$0xf]
      %v4169 = vld [vmem:[#allocation3 + $0x74] sm:$0xf]
      %v4170 = vld [vmem:[#allocation3 + $0x78] sm:$0xf]
      %v4171 = vld [vmem:[#allocation3 + $0x7c] sm:$0xf]
      %v4172 = vld [vmem:[#allocation3 + $0x80] sm:$0xf]
      %v4173 = vld [vmem:[#allocation3 + $0x84] sm:$0xf]
      %v4174 = vld [vmem:[#allocation3 + $0x88] sm:$0xf]
      %v4175 = vld [vmem:[#allocation3 + $0x8c] sm:$0xf]
      %v4176 = vld [vmem:[#allocation3 + $0x90] sm:$0xf]
      %v4177 = vld [vmem:[#allocation3 + $0x94] sm:$0xf]
      %v4178 = vld [vmem:[#allocation3 + $0x98] sm:$0xf]
      %v4179 = vld [vmem:[#allocation3 + $0x9c] sm:$0xf]
      %s4180 = scalar_lea.vmem %s1, 96
      %v4181 = vld [vmem:[%s4180] sm:$0xff]
      %v4182 = vld [vmem:[%s4180 + $0x8] sm:$0xff]
      %v4183 = vld [vmem:[%s4180 + $0x10] sm:$0x33]
      %v4216 = vunpack.c.l.b16 %v4148
      %v4217 = vunpack.c.l.b16 %v4149
      %v4218 = vunpack.c.l.b16 %v4150
      %v4219 = vunpack.c.l.b16 %v4151
      %v4220 = vunpack.c.l.b16 %v4152
      %v4221 = vunpack.c.l.b16 %v4153
      %v4222 = vunpack.c.l.b16 %v4154
      %v4223 = vunpack.c.l.b16 %v4155
      %v4224 = vunpack.c.l.b16 %v4156
      %v4225 = vunpack.c.l.b16 %v4157
      %v4226 = vunpack.c.l.b16 %v4158
      %v4227 = vunpack.c.l.b16 %v4159
      %v4228 = vunpack.c.l.b16 %v4160
      %v4229 = vunpack.c.l.b16 %v4161
      %v4230 = vunpack.c.l.b16 %v4162
      %v4231 = vunpack.c.l.b16 %v4163
      %v4232 = vunpack.c.l.b16 %v4164
      %v4233 = vunpack.c.l.b16 %v4165
      %v4234 = vunpack.c.l.b16 %v4166
      %v4235 = vunpack.c.l.b16 %v4167
      %v4236 = vunpack.c.l.b16 %v4168
      %v4237 = vunpack.c.l.b16 %v4169
      %v4238 = vunpack.c.l.b16 %v4170
      %v4239 = vunpack.c.l.b16 %v4171
      %v4240 = vunpack.c.l.b16 %v4172
      %v4241 = vunpack.c.l.b16 %v4173
      %v4242 = vunpack.c.l.b16 %v4174
      %v4243 = vunpack.c.l.b16 %v4175
      %v4244 = vunpack.c.l.b16 %v4176
      %v4245 = vunpack.c.l.b16 %v4177
      %v4246 = vunpack.c.l.b16 %v4178
      %v4247 = vunpack.c.l.b16 %v4179
      %v4248 = vpack.c.b16 %v4217, %v4216
      %v4249 = vpack.c.b16 %v4219, %v4218
      %v4250 = vpack.c.b16 %v4221, %v4220
      %v4251 = vpack.c.b16 %v4223, %v4222
      %v4252 = vpack.c.b16 %v4225, %v4224
      %v4253 = vpack.c.b16 %v4227, %v4226
      %v4254 = vpack.c.b16 %v4229, %v4228
      %v4255 = vpack.c.b16 %v4231, %v4230
      %v4256 = vpack.c.b16 %v4233, %v4232
      %v4257 = vpack.c.b16 %v4235, %v4234
      %v4258 = vpack.c.b16 %v4237, %v4236
      %v4259 = vpack.c.b16 %v4239, %v4238
      %v4260 = vpack.c.b16 %v4241, %v4240
      %v4261 = vpack.c.b16 %v4243, %v4242
      %v4262 = vpack.c.b16 %v4245, %v4244
      %v4263 = vpack.c.b16 %v4247, %v4246
      %v4267 = vunpack.c.l.b16 %v4181
      %v4268 = vunpack.c.h.b16 %v4181
      %v4269 = vunpack.c.l.b16 %v4182
      %v4270 = vunpack.c.h.b16 %v4182
      %v4271 = vunpack.c.l.b16 %v4183
      %v4272 = vunpack.c.h.b16 %v4183
      %v4273 = vpack.c.b16 %v4269, %v4267
      %v4274 = vpack.c.b16 %v4270, %v4268
      %v4275 = vpack.c.b16 %v4271, %v4271
      %v4276 = vpack.c.b16 %v4272, %v4272
      %v4280 = vsel %vm1986, %v4248, 0
      %v4283 = vsel %vm1986, %v4249, 0
      %v4286 = vsel %vm1986, %v4250, 0
      %v4289 = vsel %vm1986, %v4251, 0
      %v4292 = vsel %vm1986, %v4252, 0
      %v4295 = vsel %vm1986, %v4253, 0
      %v4298 = vsel %vm1986, %v4254, 0
      %v4301 = vsel %vm1986, %v4255, 0
      %v4304 = vsel %vm1986, %v4256, 0
      %v4307 = vsel %vm1986, %v4257, 0
      %v4310 = vsel %vm1986, %v4258, 0
      %v4313 = vsel %vm1986, %v4259, 0
      %v4316 = vsel %vm1986, %v4260, 0
      %v4319 = vsel %vm1986, %v4261, 0
      %v4322 = vsel %vm1986, %v4262, 0
      %v4325 = vsel %vm1986, %v4263, 0
      %v4328 = vsel %vm2035, %v4275, 0
      %v4331 = vsel %vm2035, %v4276, 0
      %4333 = vmatprep.subr.bf16.mxu0 0
      %4334 = vmatpush1.bf16.msra.mxu0 0
      %4335 = vmatprep.subr.bf16.mxu0 0
      %4336 = vmatpush1.bf16.msra.mxu0 0
      %4337 = vmatprep.subr.bf16.mxu0 0
      %4338 = vmatpush1.bf16.msra.mxu0 0
      %4339 = vmatprep.subr.bf16.mxu0 0
      %4340 = vmatpush1.bf16.msra.mxu0 0
      %4341 = vmatprep.subr.bf16.mxu0 0
      %4342 = vmatpush1.bf16.msra.mxu0 0
      %4343 = vmatprep.subr.bf16.mxu0 0
      %4344 = vmatpush1.bf16.msra.mxu0 0
      %4345 = vmatprep.subr.bf16.mxu0 %v4331
      %4346 = vmatpush1.bf16.msra.mxu0 %v4328
      %4347 = vmatprep.subr.bf16.mxu0 %v4274
      %4348 = vmatpush1.bf16.msra.mxu0 %v4273
      %4349 = vmatprep.subr.bf16.mxu0 0
      %4350 = vmatpush2.bf16.msra.mxu0 0
      %4351 = vmatprep.subr.bf16.mxu0 0
      %4352 = vmatpush2.bf16.msra.mxu0 0
      %4353 = vmatprep.subr.bf16.mxu0 0
      %4354 = vmatpush2.bf16.msra.mxu0 0
      %4355 = vmatprep.subr.bf16.mxu0 0
      %4356 = vmatpush2.bf16.msra.mxu0 0
      %4357 = vmatprep.subr.bf16.mxu0 0
      %4358 = vmatpush2.bf16.msra.mxu0 0
      %4359 = vmatprep.subr.bf16.mxu0 0
      %4360 = vmatpush2.bf16.msra.mxu0 0
      %4361 = vmatprep.subr.bf16.mxu0 0
      %4362 = vmatpush2.bf16.msra.mxu0 0
      %4363 = vmatprep.subr.bf16.mxu0 0
      %4364 = vmatpush2.bf16.msra.mxu0 0
      %4365 = vmatprep.mubr.bf16.mxu0 0
      %4366 = vmatmul.mubr.bf16.gmra.mxu0 %v4280
      %v4367 = vpop.f32.mrf.mxu0
      %v4368 = vadd.f32 0.0, %v4367
      %v4369 = vpop.f32.mrf.mxu0
      %v4370 = vadd.f32 0.0, %v4369
      %v4371 = vpop.f32.mrf.mxu0
      %v4372 = vadd.f32 0.0, %v4371
      %v4373 = vpop.f32.mrf.mxu0
      %v4374 = vadd.f32 0.0, %v4373
      %4375 = vmatprep.mubr.bf16.mxu0 0
      %4376 = vmatmul.mubr.bf16.gmra.mxu0 %v4283
      %v4377 = vpop.f32.mrf.mxu0
      %v4378 = vadd.f32 0.0, %v4377
      %v4379 = vpop.f32.mrf.mxu0
      %v4380 = vadd.f32 0.0, %v4379
      %v4381 = vpop.f32.mrf.mxu0
      %v4382 = vadd.f32 0.0, %v4381
      %v4383 = vpop.f32.mrf.mxu0
      %v4384 = vadd.f32 0.0, %v4383
      %4385 = vmatprep.mubr.bf16.mxu0 0
      %4386 = vmatmul.mubr.bf16.gmra.mxu0 %v4286
      %v4387 = vpop.f32.mrf.mxu0
      %v4388 = vadd.f32 0.0, %v4387
      %v4389 = vpop.f32.mrf.mxu0
      %v4390 = vadd.f32 0.0, %v4389
      %v4391 = vpop.f32.mrf.mxu0
      %v4392 = vadd.f32 0.0, %v4391
      %v4393 = vpop.f32.mrf.mxu0
      %v4394 = vadd.f32 0.0, %v4393
      %4395 = vmatprep.mubr.bf16.mxu0 0
      %4396 = vmatmul.mubr.bf16.gmra.mxu0 %v4289
      %v4397 = vpop.f32.mrf.mxu0
      %v4398 = vadd.f32 0.0, %v4397
      %v4399 = vpop.f32.mrf.mxu0
      %v4400 = vadd.f32 0.0, %v4399
      %v4401 = vpop.f32.mrf.mxu0
      %v4402 = vadd.f32 0.0, %v4401
      %v4403 = vpop.f32.mrf.mxu0
      %v4404 = vadd.f32 0.0, %v4403
      %4405 = vmatprep.mubr.bf16.mxu0 0
      %4406 = vmatmul.mubr.bf16.gmra.mxu0 %v4292
      %v4407 = vpop.f32.mrf.mxu0
      %v4408 = vadd.f32 0.0, %v4407
      %v4409 = vpop.f32.mrf.mxu0
      %v4410 = vadd.f32 0.0, %v4409
      %v4411 = vpop.f32.mrf.mxu0
      %v4412 = vadd.f32 0.0, %v4411
      %v4413 = vpop.f32.mrf.mxu0
      %v4414 = vadd.f32 0.0, %v4413
      %4415 = vmatprep.mubr.bf16.mxu0 0
      %4416 = vmatmul.mubr.bf16.gmra.mxu0 %v4295
      %v4417 = vpop.f32.mrf.mxu0
      %v4418 = vadd.f32 0.0, %v4417
      %v4419 = vpop.f32.mrf.mxu0
      %v4420 = vadd.f32 0.0, %v4419
      %v4421 = vpop.f32.mrf.mxu0
      %v4422 = vadd.f32 0.0, %v4421
      %v4423 = vpop.f32.mrf.mxu0
      %v4424 = vadd.f32 0.0, %v4423
      %4425 = vmatprep.mubr.bf16.mxu0 0
      %4426 = vmatmul.mubr.bf16.gmra.mxu0 %v4298
      %v4427 = vpop.f32.mrf.mxu0
      %v4428 = vadd.f32 0.0, %v4427
      %v4429 = vpop.f32.mrf.mxu0
      %v4430 = vadd.f32 0.0, %v4429
      %v4431 = vpop.f32.mrf.mxu0
      %v4432 = vadd.f32 0.0, %v4431
      %v4433 = vpop.f32.mrf.mxu0
      %v4434 = vadd.f32 0.0, %v4433
      %4435 = vmatprep.mubr.bf16.mxu0 0
      %4436 = vmatmul.mubr.bf16.gmra.mxu0 %v4301
      %v4437 = vpop.f32.mrf.mxu0
      %v4438 = vadd.f32 0.0, %v4437
      %v4439 = vpop.f32.mrf.mxu0
      %v4440 = vadd.f32 0.0, %v4439
      %v4441 = vpop.f32.mrf.mxu0
      %v4442 = vadd.f32 0.0, %v4441
      %v4443 = vpop.f32.mrf.mxu0
      %v4444 = vadd.f32 0.0, %v4443
      %4445 = vmatprep.mubr.bf16.mxu0 0
      %4446 = vmatmul.mubr.bf16.gmra.mxu0 %v4304
      %v4447 = vpop.f32.mrf.mxu0
      %v4448 = vadd.f32 0.0, %v4447
      %v4449 = vpop.f32.mrf.mxu0
      %v4450 = vadd.f32 0.0, %v4449
      %v4451 = vpop.f32.mrf.mxu0
      %v4452 = vadd.f32 0.0, %v4451
      %v4453 = vpop.f32.mrf.mxu0
      %v4454 = vadd.f32 0.0, %v4453
      %4455 = vmatprep.mubr.bf16.mxu0 0
      %4456 = vmatmul.mubr.bf16.gmra.mxu0 %v4307
      %v4457 = vpop.f32.mrf.mxu0
      %v4458 = vadd.f32 0.0, %v4457
      %v4459 = vpop.f32.mrf.mxu0
      %v4460 = vadd.f32 0.0, %v4459
      %v4461 = vpop.f32.mrf.mxu0
      %v4462 = vadd.f32 0.0, %v4461
      %v4463 = vpop.f32.mrf.mxu0
      %v4464 = vadd.f32 0.0, %v4463
      %4465 = vmatprep.mubr.bf16.mxu0 0
      %4466 = vmatmul.mubr.bf16.gmra.mxu0 %v4310
      %v4467 = vpop.f32.mrf.mxu0
      %v4468 = vadd.f32 0.0, %v4467
      %v4469 = vpop.f32.mrf.mxu0
      %v4470 = vadd.f32 0.0, %v4469
      %v4471 = vpop.f32.mrf.mxu0
      %v4472 = vadd.f32 0.0, %v4471
      %v4473 = vpop.f32.mrf.mxu0
      %v4474 = vadd.f32 0.0, %v4473
      %4475 = vmatprep.mubr.bf16.mxu0 0
      %4476 = vmatmul.mubr.bf16.gmra.mxu0 %v4313
      %v4477 = vpop.f32.mrf.mxu0
      %v4478 = vadd.f32 0.0, %v4477
      %v4479 = vpop.f32.mrf.mxu0
      %v4480 = vadd.f32 0.0, %v4479
      %v4481 = vpop.f32.mrf.mxu0
      %v4482 = vadd.f32 0.0, %v4481
      %v4483 = vpop.f32.mrf.mxu0
      %v4484 = vadd.f32 0.0, %v4483
      %4485 = vmatprep.mubr.bf16.mxu0 0
      %4486 = vmatmul.mubr.bf16.gmra.mxu0 %v4316
      %v4487 = vpop.f32.mrf.mxu0
      %v4488 = vadd.f32 0.0, %v4487
      %v4489 = vpop.f32.mrf.mxu0
      %v4490 = vadd.f32 0.0, %v4489
      %v4491 = vpop.f32.mrf.mxu0
      %v4492 = vadd.f32 0.0, %v4491
      %v4493 = vpop.f32.mrf.mxu0
      %v4494 = vadd.f32 0.0, %v4493
      %4495 = vmatprep.mubr.bf16.mxu0 0
      %4496 = vmatmul.mubr.bf16.gmra.mxu0 %v4319
      %v4497 = vpop.f32.mrf.mxu0
      %v4498 = vadd.f32 0.0, %v4497
      %v4499 = vpop.f32.mrf.mxu0
      %v4500 = vadd.f32 0.0, %v4499
      %v4501 = vpop.f32.mrf.mxu0
      %v4502 = vadd.f32 0.0, %v4501
      %v4503 = vpop.f32.mrf.mxu0
      %v4504 = vadd.f32 0.0, %v4503
      %4505 = vmatprep.mubr.bf16.mxu0 0
      %4506 = vmatmul.mubr.bf16.gmra.mxu0 %v4322
      %v4507 = vpop.f32.mrf.mxu0
      %v4508 = vadd.f32 0.0, %v4507
      %v4509 = vpop.f32.mrf.mxu0
      %v4510 = vadd.f32 0.0, %v4509
      %v4511 = vpop.f32.mrf.mxu0
      %v4512 = vadd.f32 0.0, %v4511
      %v4513 = vpop.f32.mrf.mxu0
      %v4514 = vadd.f32 0.0, %v4513
      %4515 = vmatprep.mubr.bf16.mxu0 0
      %4516 = vmatmul.mubr.bf16.gmra.mxu0 %v4325
      %v4517 = vpop.f32.mrf.mxu0
      %v4518 = vadd.f32 0.0, %v4517
      %v4519 = vpop.f32.mrf.mxu0
      %v4520 = vadd.f32 0.0, %v4519
      %v4521 = vpop.f32.mrf.mxu0
      %v4522 = vadd.f32 0.0, %v4521
      %v4523 = vpop.f32.mrf.mxu0
      %v4524 = vadd.f32 0.0, %v4523
      %4525 = vdwg.mxu0
      %v4526 = vadd.f32 %v4084, %v4368
      %v4527 = vadd.f32 %v4085, %v4370
      %v4528 = vadd.f32 %v4086, %v4372
      %v4529 = vadd.f32 %v4087, %v4374
      %v4530 = vadd.f32 %v4088, %v4378
      %v4531 = vadd.f32 %v4089, %v4380
      %v4532 = vadd.f32 %v4090, %v4382
      %v4533 = vadd.f32 %v4091, %v4384
      %v4534 = vadd.f32 %v4092, %v4388
      %v4535 = vadd.f32 %v4093, %v4390
      %v4536 = vadd.f32 %v4094, %v4392
      %v4537 = vadd.f32 %v4095, %v4394
      %v4538 = vadd.f32 %v4096, %v4398
      %v4539 = vadd.f32 %v4097, %v4400
      %v4540 = vadd.f32 %v4098, %v4402
      %v4541 = vadd.f32 %v4099, %v4404
      %v4542 = vadd.f32 %v4100, %v4408
      %v4543 = vadd.f32 %v4101, %v4410
      %v4544 = vadd.f32 %v4102, %v4412
      %v4545 = vadd.f32 %v4103, %v4414
      %v4546 = vadd.f32 %v4104, %v4418
      %v4547 = vadd.f32 %v4105, %v4420
      %v4548 = vadd.f32 %v4106, %v4422
      %v4549 = vadd.f32 %v4107, %v4424
      %v4550 = vadd.f32 %v4108, %v4428
      %v4551 = vadd.f32 %v4109, %v4430
      %v4552 = vadd.f32 %v4110, %v4432
      %v4553 = vadd.f32 %v4111, %v4434
      %v4554 = vadd.f32 %v4112, %v4438
      %v4555 = vadd.f32 %v4113, %v4440
      %v4556 = vadd.f32 %v4114, %v4442
      %v4557 = vadd.f32 %v4115, %v4444
      %v4558 = vadd.f32 %v4116, %v4448
      %v4559 = vadd.f32 %v4117, %v4450
      %v4560 = vadd.f32 %v4118, %v4452
      %v4561 = vadd.f32 %v4119, %v4454
      %v4562 = vadd.f32 %v4120, %v4458
      %v4563 = vadd.f32 %v4121, %v4460
      %v4564 = vadd.f32 %v4122, %v4462
      %v4565 = vadd.f32 %v4123, %v4464
      %v4566 = vadd.f32 %v4124, %v4468
      %v4567 = vadd.f32 %v4125, %v4470
      %v4568 = vadd.f32 %v4126, %v4472
      %v4569 = vadd.f32 %v4127, %v4474
      %v4570 = vadd.f32 %v4128, %v4478
      %v4571 = vadd.f32 %v4129, %v4480
      %v4572 = vadd.f32 %v4130, %v4482
      %v4573 = vadd.f32 %v4131, %v4484
      %v4574 = vadd.f32 %v4132, %v4488
      %v4575 = vadd.f32 %v4133, %v4490
      %v4576 = vadd.f32 %v4134, %v4492
      %v4577 = vadd.f32 %v4135, %v4494
      %v4578 = vadd.f32 %v4136, %v4498
      %v4579 = vadd.f32 %v4137, %v4500
      %v4580 = vadd.f32 %v4138, %v4502
      %v4581 = vadd.f32 %v4139, %v4504
      %v4582 = vadd.f32 %v4140, %v4508
      %v4583 = vadd.f32 %v4141, %v4510
      %v4584 = vadd.f32 %v4142, %v4512
      %v4585 = vadd.f32 %v4143, %v4514
      %v4586 = vadd.f32 %v4144, %v4518
      %v4587 = vadd.f32 %v4145, %v4520
      %v4588 = vadd.f32 %v4146, %v4522
      %v4589 = vadd.f32 %v4147, %v4524
      %4590 = vst [vmem:[#allocation4] sm:$0xff] %v4526
      %4591 = vst [vmem:[#allocation4 + $0x8] sm:$0xff] %v4527
      %4592 = vst [vmem:[#allocation4 + $0x10] sm:$0xff] %v4528
      %4593 = vst [vmem:[#allocation4 + $0x18] sm:$0xff] %v4529
      %4594 = vst [vmem:[#allocation4 + $0x20] sm:$0xff] %v4530
      %4595 = vst [vmem:[#allocation4 + $0x28] sm:$0xff] %v4531
      %4596 = vst [vmem:[#allocation4 + $0x30] sm:$0xff] %v4532
      %4597 = vst [vmem:[#allocation4 + $0x38] sm:$0xff] %v4533
      %4598 = vst [vmem:[#allocation4 + $0x40] sm:$0xff] %v4534
      %4599 = vst [vmem:[#allocation4 + $0x48] sm:$0xff] %v4535
      %4600 = vst [vmem:[#allocation4 + $0x50] sm:$0xff] %v4536
      %4601 = vst [vmem:[#allocation4 + $0x58] sm:$0xff] %v4537
      %4602 = vst [vmem:[#allocation4 + $0x60] sm:$0xff] %v4538
      %4603 = vst [vmem:[#allocation4 + $0x68] sm:$0xff] %v4539
      %4604 = vst [vmem:[#allocation4 + $0x70] sm:$0xff] %v4540
      %4605 = vst [vmem:[#allocation4 + $0x78] sm:$0xff] %v4541
      %4606 = vst [vmem:[#allocation4 + $0x80] sm:$0xff] %v4542
      %4607 = vst [vmem:[#allocation4 + $0x88] sm:$0xff] %v4543
      %4608 = vst [vmem:[#allocation4 + $0x90] sm:$0xff] %v4544
      %4609 = vst [vmem:[#allocation4 + $0x98] sm:$0xff] %v4545
      %4610 = vst [vmem:[#allocation4 + $0xa0] sm:$0xff] %v4546
      %4611 = vst [vmem:[#allocation4 + $0xa8] sm:$0xff] %v4547
      %4612 = vst [vmem:[#allocation4 + $0xb0] sm:$0xff] %v4548
      %4613 = vst [vmem:[#allocation4 + $0xb8] sm:$0xff] %v4549
      %4614 = vst [vmem:[#allocation4 + $0xc0] sm:$0xff] %v4550
      %4615 = vst [vmem:[#allocation4 + $0xc8] sm:$0xff] %v4551
      %4616 = vst [vmem:[#allocation4 + $0xd0] sm:$0xff] %v4552
      %4617 = vst [vmem:[#allocation4 + $0xd8] sm:$0xff] %v4553
      %4618 = vst [vmem:[#allocation4 + $0xe0] sm:$0xff] %v4554
      %4619 = vst [vmem:[#allocation4 + $0xe8] sm:$0xff] %v4555
      %4620 = vst [vmem:[#allocation4 + $0xf0] sm:$0xff] %v4556
      %4621 = vst [vmem:[#allocation4 + $0xf8] sm:$0xff] %v4557
      %4622 = vst [vmem:[#allocation4 + $0x100] sm:$0xff] %v4558
      %4623 = vst [vmem:[#allocation4 + $0x108] sm:$0xff] %v4559
      %4624 = vst [vmem:[#allocation4 + $0x110] sm:$0xff] %v4560
      %4625 = vst [vmem:[#allocation4 + $0x118] sm:$0xff] %v4561
      %4626 = vst [vmem:[#allocation4 + $0x120] sm:$0xff] %v4562
      %4627 = vst [vmem:[#allocation4 + $0x128] sm:$0xff] %v4563
      %4628 = vst [vmem:[#allocation4 + $0x130] sm:$0xff] %v4564
      %4629 = vst [vmem:[#allocation4 + $0x138] sm:$0xff] %v4565
      %4630 = vst [vmem:[#allocation4 + $0x140] sm:$0xff] %v4566
      %4631 = vst [vmem:[#allocation4 + $0x148] sm:$0xff] %v4567
      %4632 = vst [vmem:[#allocation4 + $0x150] sm:$0xff] %v4568
      %4633 = vst [vmem:[#allocation4 + $0x158] sm:$0xff] %v4569
      %4634 = vst [vmem:[#allocation4 + $0x160] sm:$0xff] %v4570
      %4635 = vst [vmem:[#allocation4 + $0x168] sm:$0xff] %v4571
      %4636 = vst [vmem:[#allocation4 + $0x170] sm:$0xff] %v4572
      %4637 = vst [vmem:[#allocation4 + $0x178] sm:$0xff] %v4573
      %4638 = vst [vmem:[#allocation4 + $0x180] sm:$0xff] %v4574
      %4639 = vst [vmem:[#allocation4 + $0x188] sm:$0xff] %v4575
      %4640 = vst [vmem:[#allocation4 + $0x190] sm:$0xff] %v4576
      %4641 = vst [vmem:[#allocation4 + $0x198] sm:$0xff] %v4577
      %4642 = vst [vmem:[#allocation4 + $0x1a0] sm:$0xff] %v4578
      %4643 = vst [vmem:[#allocation4 + $0x1a8] sm:$0xff] %v4579
      %4644 = vst [vmem:[#allocation4 + $0x1b0] sm:$0xff] %v4580
      %4645 = vst [vmem:[#allocation4 + $0x1b8] sm:$0xff] %v4581
      %4646 = vst [vmem:[#allocation4 + $0x1c0] sm:$0xff] %v4582
      %4647 = vst [vmem:[#allocation4 + $0x1c8] sm:$0xff] %v4583
      %4648 = vst [vmem:[#allocation4 + $0x1d0] sm:$0xff] %v4584
      %4649 = vst [vmem:[#allocation4 + $0x1d8] sm:$0xff] %v4585
      %4650 = vst [vmem:[#allocation4 + $0x1e0] sm:$0xff] %v4586
      %4651 = vst [vmem:[#allocation4 + $0x1e8] sm:$0xff] %v4587
      %4652 = vst [vmem:[#allocation4 + $0x1f0] sm:$0xff] %v4588
      %4653 = vst [vmem:[#allocation4 + $0x1f8] sm:$0xff] %v4589
      %v4654 = vld [vmem:[#allocation4] sm:$0xff]
      %v4655 = vld [vmem:[#allocation4 + $0x8] sm:$0xff]
      %v4656 = vld [vmem:[#allocation4 + $0x10] sm:$0xff]
      %v4657 = vld [vmem:[#allocation4 + $0x18] sm:$0xff]
      %v4658 = vld [vmem:[#allocation4 + $0x20] sm:$0xff]
      %v4659 = vld [vmem:[#allocation4 + $0x28] sm:$0xff]
      %v4660 = vld [vmem:[#allocation4 + $0x30] sm:$0xff]
      %v4661 = vld [vmem:[#allocation4 + $0x38] sm:$0xff]
      %v4662 = vld [vmem:[#allocation4 + $0x40] sm:$0xff]
      %v4663 = vld [vmem:[#allocation4 + $0x48] sm:$0xff]
      %v4664 = vld [vmem:[#allocation4 + $0x50] sm:$0xff]
      %v4665 = vld [vmem:[#allocation4 + $0x58] sm:$0xff]
      %v4666 = vld [vmem:[#allocation4 + $0x60] sm:$0xff]
      %v4667 = vld [vmem:[#allocation4 + $0x68] sm:$0xff]
      %v4668 = vld [vmem:[#allocation4 + $0x70] sm:$0xff]
      %v4669 = vld [vmem:[#allocation4 + $0x78] sm:$0xff]
      %v4670 = vld [vmem:[#allocation4 + $0x80] sm:$0xff]
      %v4671 = vld [vmem:[#allocation4 + $0x88] sm:$0xff]
      %v4672 = vld [vmem:[#allocation4 + $0x90] sm:$0xff]
      %v4673 = vld [vmem:[#allocation4 + $0x98] sm:$0xff]
      %v4674 = vld [vmem:[#allocation4 + $0xa0] sm:$0xff]
      %v4675 = vld [vmem:[#allocation4 + $0xa8] sm:$0xff]
      %v4676 = vld [vmem:[#allocation4 + $0xb0] sm:$0xff]
      %v4677 = vld [vmem:[#allocation4 + $0xb8] sm:$0xff]
      %v4678 = vld [vmem:[#allocation4 + $0xc0] sm:$0xff]
      %v4679 = vld [vmem:[#allocation4 + $0xc8] sm:$0xff]
      %v4680 = vld [vmem:[#allocation4 + $0xd0] sm:$0xff]
      %v4681 = vld [vmem:[#allocation4 + $0xd8] sm:$0xff]
      %v4682 = vld [vmem:[#allocation4 + $0xe0] sm:$0xff]
      %v4683 = vld [vmem:[#allocation4 + $0xe8] sm:$0xff]
      %v4684 = vld [vmem:[#allocation4 + $0xf0] sm:$0xff]
      %v4685 = vld [vmem:[#allocation4 + $0xf8] sm:$0xff]
      %v4686 = vld [vmem:[#allocation4 + $0x100] sm:$0xff]
      %v4687 = vld [vmem:[#allocation4 + $0x108] sm:$0xff]
      %v4688 = vld [vmem:[#allocation4 + $0x110] sm:$0xff]
      %v4689 = vld [vmem:[#allocation4 + $0x118] sm:$0xff]
      %v4690 = vld [vmem:[#allocation4 + $0x120] sm:$0xff]
      %v4691 = vld [vmem:[#allocation4 + $0x128] sm:$0xff]
      %v4692 = vld [vmem:[#allocation4 + $0x130] sm:$0xff]
      %v4693 = vld [vmem:[#allocation4 + $0x138] sm:$0xff]
      %v4694 = vld [vmem:[#allocation4 + $0x140] sm:$0xff]
      %v4695 = vld [vmem:[#allocation4 + $0x148] sm:$0xff]
      %v4696 = vld [vmem:[#allocation4 + $0x150] sm:$0xff]
      %v4697 = vld [vmem:[#allocation4 + $0x158] sm:$0xff]
      %v4698 = vld [vmem:[#allocation4 + $0x160] sm:$0xff]
      %v4699 = vld [vmem:[#allocation4 + $0x168] sm:$0xff]
      %v4700 = vld [vmem:[#allocation4 + $0x170] sm:$0xff]
      %v4701 = vld [vmem:[#allocation4 + $0x178] sm:$0xff]
      %v4702 = vld [vmem:[#allocation4 + $0x180] sm:$0xff]
      %v4703 = vld [vmem:[#allocation4 + $0x188] sm:$0xff]
      %v4704 = vld [vmem:[#allocation4 + $0x190] sm:$0xff]
      %v4705 = vld [vmem:[#allocation4 + $0x198] sm:$0xff]
      %v4706 = vld [vmem:[#allocation4 + $0x1a0] sm:$0xff]
      %v4707 = vld [vmem:[#allocation4 + $0x1a8] sm:$0xff]
      %v4708 = vld [vmem:[#allocation4 + $0x1b0] sm:$0xff]
      %v4709 = vld [vmem:[#allocation4 + $0x1b8] sm:$0xff]
      %v4710 = vld [vmem:[#allocation4 + $0x1c0] sm:$0xff]
      %v4711 = vld [vmem:[#allocation4 + $0x1c8] sm:$0xff]
      %v4712 = vld [vmem:[#allocation4 + $0x1d0] sm:$0xff]
      %v4713 = vld [vmem:[#allocation4 + $0x1d8] sm:$0xff]
      %v4714 = vld [vmem:[#allocation4 + $0x1e0] sm:$0xff]
      %v4715 = vld [vmem:[#allocation4 + $0x1e8] sm:$0xff]
      %v4716 = vld [vmem:[#allocation4 + $0x1f0] sm:$0xff]
      %v4717 = vld [vmem:[#allocation4 + $0x1f8] sm:$0xff]
      %v4718 = vmax.f32 %v4654, 0.0
      %v4719 = vmax.f32 %v4655, 0.0
      %v4720 = vmax.f32 %v4656, 0.0
      %v4721 = vmax.f32 %v4657, 0.0
      %v4722 = vmax.f32 %v4658, 0.0
      %v4723 = vmax.f32 %v4659, 0.0
      %v4724 = vmax.f32 %v4660, 0.0
      %v4725 = vmax.f32 %v4661, 0.0
      %v4726 = vmax.f32 %v4662, 0.0
      %v4727 = vmax.f32 %v4663, 0.0
      %v4728 = vmax.f32 %v4664, 0.0
      %v4729 = vmax.f32 %v4665, 0.0
      %v4730 = vmax.f32 %v4666, 0.0
      %v4731 = vmax.f32 %v4667, 0.0
      %v4732 = vmax.f32 %v4668, 0.0
      %v4733 = vmax.f32 %v4669, 0.0
      %v4734 = vmax.f32 %v4670, 0.0
      %v4735 = vmax.f32 %v4671, 0.0
      %v4736 = vmax.f32 %v4672, 0.0
      %v4737 = vmax.f32 %v4673, 0.0
      %v4738 = vmax.f32 %v4674, 0.0
      %v4739 = vmax.f32 %v4675, 0.0
      %v4740 = vmax.f32 %v4676, 0.0
      %v4741 = vmax.f32 %v4677, 0.0
      %v4742 = vmax.f32 %v4678, 0.0
      %v4743 = vmax.f32 %v4679, 0.0
      %v4744 = vmax.f32 %v4680, 0.0
      %v4745 = vmax.f32 %v4681, 0.0
      %v4746 = vmax.f32 %v4682, 0.0
      %v4747 = vmax.f32 %v4683, 0.0
      %v4748 = vmax.f32 %v4684, 0.0
      %v4749 = vmax.f32 %v4685, 0.0
      %v4750 = vmax.f32 %v4686, 0.0
      %v4751 = vmax.f32 %v4687, 0.0
      %v4752 = vmax.f32 %v4688, 0.0
      %v4753 = vmax.f32 %v4689, 0.0
      %v4754 = vmax.f32 %v4690, 0.0
      %v4755 = vmax.f32 %v4691, 0.0
      %v4756 = vmax.f32 %v4692, 0.0
      %v4757 = vmax.f32 %v4693, 0.0
      %v4758 = vmax.f32 %v4694, 0.0
      %v4759 = vmax.f32 %v4695, 0.0
      %v4760 = vmax.f32 %v4696, 0.0
      %v4761 = vmax.f32 %v4697, 0.0
      %v4762 = vmax.f32 %v4698, 0.0
      %v4763 = vmax.f32 %v4699, 0.0
      %v4764 = vmax.f32 %v4700, 0.0
      %v4765 = vmax.f32 %v4701, 0.0
      %v4766 = vmax.f32 %v4702, 0.0
      %v4767 = vmax.f32 %v4703, 0.0
      %v4768 = vmax.f32 %v4704, 0.0
      %v4769 = vmax.f32 %v4705, 0.0
      %v4770 = vmax.f32 %v4706, 0.0
      %v4771 = vmax.f32 %v4707, 0.0
      %v4772 = vmax.f32 %v4708, 0.0
      %v4773 = vmax.f32 %v4709, 0.0
      %v4774 = vmax.f32 %v4710, 0.0
      %v4775 = vmax.f32 %v4711, 0.0
      %v4776 = vmax.f32 %v4712, 0.0
      %v4777 = vmax.f32 %v4713, 0.0
      %v4778 = vmax.f32 %v4714, 0.0
      %v4779 = vmax.f32 %v4715, 0.0
      %v4780 = vmax.f32 %v4716, 0.0
      %v4781 = vmax.f32 %v4717, 0.0
      %v4782 = vld [vmem:[%s3] sm:$0x3]
      %v4784 = vlaneseq
      %v4785 = vshrl.u32 %v4784, 7
      %v4786 = vsub.s32 0, %v4785
      %v4787 = vrot.slane %v4782, %v4786
      %v4788 = vlaneseq
      %v4789 = vshrl.u32 %v4788, 7
      %v4790 = vsub.s32 1, %v4789
      %v4791 = vrot.slane %v4782, %v4790
      %v4794 = vmul.f32 %v4718, %v4787
      %v4795 = vmul.f32 %v4719, %v4791
      %v4796 = vmul.f32 %v4720, %v4787
      %v4797 = vmul.f32 %v4721, %v4791
      %v4798 = vmul.f32 %v4722, %v4787
      %v4799 = vmul.f32 %v4723, %v4791
      %v4800 = vmul.f32 %v4724, %v4787
      %v4801 = vmul.f32 %v4725, %v4791
      %v4802 = vmul.f32 %v4726, %v4787
      %v4803 = vmul.f32 %v4727, %v4791
      %v4804 = vmul.f32 %v4728, %v4787
      %v4805 = vmul.f32 %v4729, %v4791
      %v4806 = vmul.f32 %v4730, %v4787
      %v4807 = vmul.f32 %v4731, %v4791
      %v4808 = vmul.f32 %v4732, %v4787
      %v4809 = vmul.f32 %v4733, %v4791
      %v4810 = vmul.f32 %v4734, %v4787
      %v4811 = vmul.f32 %v4735, %v4791
      %v4812 = vmul.f32 %v4736, %v4787
      %v4813 = vmul.f32 %v4737, %v4791
      %v4814 = vmul.f32 %v4738, %v4787
      %v4815 = vmul.f32 %v4739, %v4791
      %v4816 = vmul.f32 %v4740, %v4787
      %v4817 = vmul.f32 %v4741, %v4791
      %v4818 = vmul.f32 %v4742, %v4787
      %v4819 = vmul.f32 %v4743, %v4791
      %v4820 = vmul.f32 %v4744, %v4787
      %v4821 = vmul.f32 %v4745, %v4791
      %v4822 = vmul.f32 %v4746, %v4787
      %v4823 = vmul.f32 %v4747, %v4791
      %v4824 = vmul.f32 %v4748, %v4787
      %v4825 = vmul.f32 %v4749, %v4791
      %v4826 = vmul.f32 %v4750, %v4787
      %v4827 = vmul.f32 %v4751, %v4791
      %v4828 = vmul.f32 %v4752, %v4787
      %v4829 = vmul.f32 %v4753, %v4791
      %v4830 = vmul.f32 %v4754, %v4787
      %v4831 = vmul.f32 %v4755, %v4791
      %v4832 = vmul.f32 %v4756, %v4787
      %v4833 = vmul.f32 %v4757, %v4791
      %v4834 = vmul.f32 %v4758, %v4787
      %v4835 = vmul.f32 %v4759, %v4791
      %v4836 = vmul.f32 %v4760, %v4787
      %v4837 = vmul.f32 %v4761, %v4791
      %v4838 = vmul.f32 %v4762, %v4787
      %v4839 = vmul.f32 %v4763, %v4791
      %v4840 = vmul.f32 %v4764, %v4787
      %v4841 = vmul.f32 %v4765, %v4791
      %v4842 = vmul.f32 %v4766, %v4787
      %v4843 = vmul.f32 %v4767, %v4791
      %v4844 = vmul.f32 %v4768, %v4787
      %v4845 = vmul.f32 %v4769, %v4791
      %v4846 = vmul.f32 %v4770, %v4787
      %v4847 = vmul.f32 %v4771, %v4791
      %v4848 = vmul.f32 %v4772, %v4787
      %v4849 = vmul.f32 %v4773, %v4791
      %v4850 = vmul.f32 %v4774, %v4787
      %v4851 = vmul.f32 %v4775, %v4791
      %v4852 = vmul.f32 %v4776, %v4787
      %v4853 = vmul.f32 %v4777, %v4791
      %v4854 = vmul.f32 %v4778, %v4787
      %v4855 = vmul.f32 %v4779, %v4791
      %v4856 = vmul.f32 %v4780, %v4787
      %v4857 = vmul.f32 %v4781, %v4791
      %v4858 = vadd.f32 %v4794, %v4795
      %4859 = vadd.xlane.f32.xlu0 %v4858
      %v4860 = vpop.xlane.xlu0 %4859
      %v4861 = vadd.f32 %v4796, %v4797
      %4862 = vadd.xlane.f32.xlu0 %v4861
      %v4863 = vpop.xlane.xlu0 %4862
      %v4864 = vadd.f32 %v4798, %v4799
      %4865 = vadd.xlane.f32.xlu0 %v4864
      %v4866 = vpop.xlane.xlu0 %4865
      %v4867 = vadd.f32 %v4800, %v4801
      %4868 = vadd.xlane.f32.xlu0 %v4867
      %v4869 = vpop.xlane.xlu0 %4868
      %v4870 = vadd.f32 %v4802, %v4803
      %4871 = vadd.xlane.f32.xlu0 %v4870
      %v4872 = vpop.xlane.xlu0 %4871
      %v4873 = vadd.f32 %v4804, %v4805
      %4874 = vadd.xlane.f32.xlu0 %v4873
      %v4875 = vpop.xlane.xlu0 %4874
      %v4876 = vadd.f32 %v4806, %v4807
      %4877 = vadd.xlane.f32.xlu0 %v4876
      %v4878 = vpop.xlane.xlu0 %4877
      %v4879 = vadd.f32 %v4808, %v4809
      %4880 = vadd.xlane.f32.xlu0 %v4879
      %v4881 = vpop.xlane.xlu0 %4880
      %v4882 = vadd.f32 %v4810, %v4811
      %4883 = vadd.xlane.f32.xlu0 %v4882
      %v4884 = vpop.xlane.xlu0 %4883
      %v4885 = vadd.f32 %v4812, %v4813
      %4886 = vadd.xlane.f32.xlu0 %v4885
      %v4887 = vpop.xlane.xlu0 %4886
      %v4888 = vadd.f32 %v4814, %v4815
      %4889 = vadd.xlane.f32.xlu0 %v4888
      %v4890 = vpop.xlane.xlu0 %4889
      %v4891 = vadd.f32 %v4816, %v4817
      %4892 = vadd.xlane.f32.xlu0 %v4891
      %v4893 = vpop.xlane.xlu0 %4892
      %v4894 = vadd.f32 %v4818, %v4819
      %4895 = vadd.xlane.f32.xlu0 %v4894
      %v4896 = vpop.xlane.xlu0 %4895
      %v4897 = vadd.f32 %v4820, %v4821
      %4898 = vadd.xlane.f32.xlu0 %v4897
      %v4899 = vpop.xlane.xlu0 %4898
      %v4900 = vadd.f32 %v4822, %v4823
      %4901 = vadd.xlane.f32.xlu0 %v4900
      %v4902 = vpop.xlane.xlu0 %4901
      %v4903 = vadd.f32 %v4824, %v4825
      %4904 = vadd.xlane.f32.xlu0 %v4903
      %v4905 = vpop.xlane.xlu0 %4904
      %v4906 = vadd.f32 %v4826, %v4827
      %4907 = vadd.xlane.f32.xlu0 %v4906
      %v4908 = vpop.xlane.xlu0 %4907
      %v4909 = vadd.f32 %v4828, %v4829
      %4910 = vadd.xlane.f32.xlu0 %v4909
      %v4911 = vpop.xlane.xlu0 %4910
      %v4912 = vadd.f32 %v4830, %v4831
      %4913 = vadd.xlane.f32.xlu0 %v4912
      %v4914 = vpop.xlane.xlu0 %4913
      %v4915 = vadd.f32 %v4832, %v4833
      %4916 = vadd.xlane.f32.xlu0 %v4915
      %v4917 = vpop.xlane.xlu0 %4916
      %v4918 = vadd.f32 %v4834, %v4835
      %4919 = vadd.xlane.f32.xlu0 %v4918
      %v4920 = vpop.xlane.xlu0 %4919
      %v4921 = vadd.f32 %v4836, %v4837
      %4922 = vadd.xlane.f32.xlu0 %v4921
      %v4923 = vpop.xlane.xlu0 %4922
      %v4924 = vadd.f32 %v4838, %v4839
      %4925 = vadd.xlane.f32.xlu0 %v4924
      %v4926 = vpop.xlane.xlu0 %4925
      %v4927 = vadd.f32 %v4840, %v4841
      %4928 = vadd.xlane.f32.xlu0 %v4927
      %v4929 = vpop.xlane.xlu0 %4928
      %v4930 = vadd.f32 %v4842, %v4843
      %4931 = vadd.xlane.f32.xlu0 %v4930
      %v4932 = vpop.xlane.xlu0 %4931
      %v4933 = vadd.f32 %v4844, %v4845
      %4934 = vadd.xlane.f32.xlu0 %v4933
      %v4935 = vpop.xlane.xlu0 %4934
      %v4936 = vadd.f32 %v4846, %v4847
      %4937 = vadd.xlane.f32.xlu0 %v4936
      %v4938 = vpop.xlane.xlu0 %4937
      %v4939 = vadd.f32 %v4848, %v4849
      %4940 = vadd.xlane.f32.xlu0 %v4939
      %v4941 = vpop.xlane.xlu0 %4940
      %v4942 = vadd.f32 %v4850, %v4851
      %4943 = vadd.xlane.f32.xlu0 %v4942
      %v4944 = vpop.xlane.xlu0 %4943
      %v4945 = vadd.f32 %v4852, %v4853
      %4946 = vadd.xlane.f32.xlu0 %v4945
      %v4947 = vpop.xlane.xlu0 %4946
      %v4948 = vadd.f32 %v4854, %v4855
      %4949 = vadd.xlane.f32.xlu0 %v4948
      %v4950 = vpop.xlane.xlu0 %4949
      %v4951 = vadd.f32 %v4856, %v4857
      %4952 = vadd.xlane.f32.xlu0 %v4951
      %v4953 = vpop.xlane.xlu0 %4952
      %v4954 = vld [vmem:[#allocation5] sm:$0x1]
      %v4956 = vlaneseq
      %v4957 = vshrl.u32 %v4956, 7
      %v4958 = vsub.s32 0, %v4957
      %v4959 = vrot.slane %v4954, %v4958
      %v4961 = vadd.f32 %v4860, %v4959
      %v4962 = vadd.f32 %v4863, %v4959
      %v4963 = vadd.f32 %v4866, %v4959
      %v4964 = vadd.f32 %v4869, %v4959
      %v4965 = vadd.f32 %v4872, %v4959
      %v4966 = vadd.f32 %v4875, %v4959
      %v4967 = vadd.f32 %v4878, %v4959
      %v4968 = vadd.f32 %v4881, %v4959
      %v4969 = vadd.f32 %v4884, %v4959
      %v4970 = vadd.f32 %v4887, %v4959
      %v4971 = vadd.f32 %v4890, %v4959
      %v4972 = vadd.f32 %v4893, %v4959
      %v4973 = vadd.f32 %v4896, %v4959
      %v4974 = vadd.f32 %v4899, %v4959
      %v4975 = vadd.f32 %v4902, %v4959
      %v4976 = vadd.f32 %v4905, %v4959
      %v4977 = vadd.f32 %v4908, %v4959
      %v4978 = vadd.f32 %v4911, %v4959
      %v4979 = vadd.f32 %v4914, %v4959
      %v4980 = vadd.f32 %v4917, %v4959
      %v4981 = vadd.f32 %v4920, %v4959
      %v4982 = vadd.f32 %v4923, %v4959
      %v4983 = vadd.f32 %v4926, %v4959
      %v4984 = vadd.f32 %v4929, %v4959
      %v4985 = vadd.f32 %v4932, %v4959
      %v4986 = vadd.f32 %v4935, %v4959
      %v4987 = vadd.f32 %v4938, %v4959
      %v4988 = vadd.f32 %v4941, %v4959
      %v4989 = vadd.f32 %v4944, %v4959
      %v4990 = vadd.f32 %v4947, %v4959
      %v4991 = vadd.f32 %v4950, %v4959
      %v4992 = vadd.f32 %v4953, %v4959
      %v4993 = vsub.f32 0.0, %v4961
      %v4994 = vsub.f32 0.0, %v4962
      %v4995 = vsub.f32 0.0, %v4963
      %v4996 = vsub.f32 0.0, %v4964
      %v4997 = vsub.f32 0.0, %v4965
      %v4998 = vsub.f32 0.0, %v4966
      %v4999 = vsub.f32 0.0, %v4967
      %v5000 = vsub.f32 0.0, %v4968
      %v5001 = vsub.f32 0.0, %v4969
      %v5002 = vsub.f32 0.0, %v4970
      %v5003 = vsub.f32 0.0, %v4971
      %v5004 = vsub.f32 0.0, %v4972
      %v5005 = vsub.f32 0.0, %v4973
      %v5006 = vsub.f32 0.0, %v4974
      %v5007 = vsub.f32 0.0, %v4975
      %v5008 = vsub.f32 0.0, %v4976
      %v5009 = vsub.f32 0.0, %v4977
      %v5010 = vsub.f32 0.0, %v4978
      %v5011 = vsub.f32 0.0, %v4979
      %v5012 = vsub.f32 0.0, %v4980
      %v5013 = vsub.f32 0.0, %v4981
      %v5014 = vsub.f32 0.0, %v4982
      %v5015 = vsub.f32 0.0, %v4983
      %v5016 = vsub.f32 0.0, %v4984
      %v5017 = vsub.f32 0.0, %v4985
      %v5018 = vsub.f32 0.0, %v4986
      %v5019 = vsub.f32 0.0, %v4987
      %v5020 = vsub.f32 0.0, %v4988
      %v5021 = vsub.f32 0.0, %v4989
      %v5022 = vsub.f32 0.0, %v4990
      %v5023 = vsub.f32 0.0, %v4991
      %v5024 = vsub.f32 0.0, %v4992
      %v5025 = vmul.f32 %v4993, 1.442695
      %v5026 = vpow.pop %v5025
      %v5027 = vmul.f32 %v4994, 1.442695
      %v5028 = vpow.pop %v5027
      %v5029 = vmul.f32 %v4995, 1.442695
      %v5030 = vpow.pop %v5029
      %v5031 = vmul.f32 %v4996, 1.442695
      %v5032 = vpow.pop %v5031
      %v5033 = vmul.f32 %v4997, 1.442695
      %v5034 = vpow.pop %v5033
      %v5035 = vmul.f32 %v4998, 1.442695
      %v5036 = vpow.pop %v5035
      %v5037 = vmul.f32 %v4999, 1.442695
      %v5038 = vpow.pop %v5037
      %v5039 = vmul.f32 %v5000, 1.442695
      %v5040 = vpow.pop %v5039
      %v5041 = vmul.f32 %v5001, 1.442695
      %v5042 = vpow.pop %v5041
      %v5043 = vmul.f32 %v5002, 1.442695
      %v5044 = vpow.pop %v5043
      %v5045 = vmul.f32 %v5003, 1.442695
      %v5046 = vpow.pop %v5045
      %v5047 = vmul.f32 %v5004, 1.442695
      %v5048 = vpow.pop %v5047
      %v5049 = vmul.f32 %v5005, 1.442695
      %v5050 = vpow.pop %v5049
      %v5051 = vmul.f32 %v5006, 1.442695
      %v5052 = vpow.pop %v5051
      %v5053 = vmul.f32 %v5007, 1.442695
      %v5054 = vpow.pop %v5053
      %v5055 = vmul.f32 %v5008, 1.442695
      %v5056 = vpow.pop %v5055
      %v5057 = vmul.f32 %v5009, 1.442695
      %v5058 = vpow.pop %v5057
      %v5059 = vmul.f32 %v5010, 1.442695
      %v5060 = vpow.pop %v5059
      %v5061 = vmul.f32 %v5011, 1.442695
      %v5062 = vpow.pop %v5061
      %v5063 = vmul.f32 %v5012, 1.442695
      %v5064 = vpow.pop %v5063
      %v5065 = vmul.f32 %v5013, 1.442695
      %v5066 = vpow.pop %v5065
      %v5067 = vmul.f32 %v5014, 1.442695
      %v5068 = vpow.pop %v5067
      %v5069 = vmul.f32 %v5015, 1.442695
      %v5070 = vpow.pop %v5069
      %v5071 = vmul.f32 %v5016, 1.442695
      %v5072 = vpow.pop %v5071
      %v5073 = vmul.f32 %v5017, 1.442695
      %v5074 = vpow.pop %v5073
      %v5075 = vmul.f32 %v5018, 1.442695
      %v5076 = vpow.pop %v5075
      %v5077 = vmul.f32 %v5019, 1.442695
      %v5078 = vpow.pop %v5077
      %v5079 = vmul.f32 %v5020, 1.442695
      %v5080 = vpow.pop %v5079
      %v5081 = vmul.f32 %v5021, 1.442695
      %v5082 = vpow.pop %v5081
      %v5083 = vmul.f32 %v5022, 1.442695
      %v5084 = vpow.pop %v5083
      %v5085 = vmul.f32 %v5023, 1.442695
      %v5086 = vpow.pop %v5085
      %v5087 = vmul.f32 %v5024, 1.442695
      %v5088 = vpow.pop %v5087
      %v5089 = vadd.f32 %v5026, 1.0
      %v5090 = vadd.f32 %v5028, 1.0
      %v5091 = vadd.f32 %v5030, 1.0
      %v5092 = vadd.f32 %v5032, 1.0
      %v5093 = vadd.f32 %v5034, 1.0
      %v5094 = vadd.f32 %v5036, 1.0
      %v5095 = vadd.f32 %v5038, 1.0
      %v5096 = vadd.f32 %v5040, 1.0
      %v5097 = vadd.f32 %v5042, 1.0
      %v5098 = vadd.f32 %v5044, 1.0
      %v5099 = vadd.f32 %v5046, 1.0
      %v5100 = vadd.f32 %v5048, 1.0
      %v5101 = vadd.f32 %v5050, 1.0
      %v5102 = vadd.f32 %v5052, 1.0
      %v5103 = vadd.f32 %v5054, 1.0
      %v5104 = vadd.f32 %v5056, 1.0
      %v5105 = vadd.f32 %v5058, 1.0
      %v5106 = vadd.f32 %v5060, 1.0
      %v5107 = vadd.f32 %v5062, 1.0
      %v5108 = vadd.f32 %v5064, 1.0
      %v5109 = vadd.f32 %v5066, 1.0
      %v5110 = vadd.f32 %v5068, 1.0
      %v5111 = vadd.f32 %v5070, 1.0
      %v5112 = vadd.f32 %v5072, 1.0
      %v5113 = vadd.f32 %v5074, 1.0
      %v5114 = vadd.f32 %v5076, 1.0
      %v5115 = vadd.f32 %v5078, 1.0
      %v5116 = vadd.f32 %v5080, 1.0
      %v5117 = vadd.f32 %v5082, 1.0
      %v5118 = vadd.f32 %v5084, 1.0
      %v5119 = vadd.f32 %v5086, 1.0
      %v5120 = vadd.f32 %v5088, 1.0
      %v5121 = vrcp.pop %v5089
      %v5122 = vrcp.pop %v5090
      %v5123 = vrcp.pop %v5091
      %v5124 = vrcp.pop %v5092
      %v5125 = vrcp.pop %v5093
      %v5126 = vrcp.pop %v5094
      %v5127 = vrcp.pop %v5095
      %v5128 = vrcp.pop %v5096
      %v5129 = vrcp.pop %v5097
      %v5130 = vrcp.pop %v5098
      %v5131 = vrcp.pop %v5099
      %v5132 = vrcp.pop %v5100
      %v5133 = vrcp.pop %v5101
      %v5134 = vrcp.pop %v5102
      %v5135 = vrcp.pop %v5103
      %v5136 = vrcp.pop %v5104
      %v5137 = vrcp.pop %v5105
      %v5138 = vrcp.pop %v5106
      %v5139 = vrcp.pop %v5107
      %v5140 = vrcp.pop %v5108
      %v5141 = vrcp.pop %v5109
      %v5142 = vrcp.pop %v5110
      %v5143 = vrcp.pop %v5111
      %v5144 = vrcp.pop %v5112
      %v5145 = vrcp.pop %v5113
      %v5146 = vrcp.pop %v5114
      %v5147 = vrcp.pop %v5115
      %v5148 = vrcp.pop %v5116
      %v5149 = vrcp.pop %v5117
      %v5150 = vrcp.pop %v5118
      %v5151 = vrcp.pop %v5119
      %v5152 = vrcp.pop %v5120
      %5154 = vset.pattern.permute.xlu0 0
      %5155 = vperm.xlu0 %5154, %v5121
      %v5156 = vpop.permute.xlu0 %5155
      %5159 = vset.pattern.permute.xlu0 0
      %5160 = vperm.xlu0 %5159, %v5122
      %v5161 = vpop.permute.xlu0 %5160
      %5164 = vset.pattern.permute.xlu0 0
      %5165 = vperm.xlu0 %5164, %v5123
      %v5166 = vpop.permute.xlu0 %5165
      %5169 = vset.pattern.permute.xlu0 0
      %5170 = vperm.xlu0 %5169, %v5124
      %v5171 = vpop.permute.xlu0 %5170
      %5174 = vset.pattern.permute.xlu0 0
      %5175 = vperm.xlu0 %5174, %v5125
      %v5176 = vpop.permute.xlu0 %5175
      %5179 = vset.pattern.permute.xlu0 0
      %5180 = vperm.xlu0 %5179, %v5126
      %v5181 = vpop.permute.xlu0 %5180
      %5184 = vset.pattern.permute.xlu0 0
      %5185 = vperm.xlu0 %5184, %v5127
      %v5186 = vpop.permute.xlu0 %5185
      %5189 = vset.pattern.permute.xlu0 0
      %5190 = vperm.xlu0 %5189, %v5128
      %v5191 = vpop.permute.xlu0 %5190
      %5194 = vset.pattern.permute.xlu0 0
      %5195 = vperm.xlu0 %5194, %v5129
      %v5196 = vpop.permute.xlu0 %5195
      %5199 = vset.pattern.permute.xlu0 0
      %5200 = vperm.xlu0 %5199, %v5130
      %v5201 = vpop.permute.xlu0 %5200
      %5204 = vset.pattern.permute.xlu0 0
      %5205 = vperm.xlu0 %5204, %v5131
      %v5206 = vpop.permute.xlu0 %5205
      %5209 = vset.pattern.permute.xlu0 0
      %5210 = vperm.xlu0 %5209, %v5132
      %v5211 = vpop.permute.xlu0 %5210
      %5214 = vset.pattern.permute.xlu0 0
      %5215 = vperm.xlu0 %5214, %v5133
      %v5216 = vpop.permute.xlu0 %5215
      %5219 = vset.pattern.permute.xlu0 0
      %5220 = vperm.xlu0 %5219, %v5134
      %v5221 = vpop.permute.xlu0 %5220
      %5224 = vset.pattern.permute.xlu0 0
      %5225 = vperm.xlu0 %5224, %v5135
      %v5226 = vpop.permute.xlu0 %5225
      %5229 = vset.pattern.permute.xlu0 0
      %5230 = vperm.xlu0 %5229, %v5136
      %v5231 = vpop.permute.xlu0 %5230
      %5234 = vset.pattern.permute.xlu0 0
      %5235 = vperm.xlu0 %5234, %v5137
      %v5236 = vpop.permute.xlu0 %5235
      %5239 = vset.pattern.permute.xlu0 0
      %5240 = vperm.xlu0 %5239, %v5138
      %v5241 = vpop.permute.xlu0 %5240
      %5244 = vset.pattern.permute.xlu0 0
      %5245 = vperm.xlu0 %5244, %v5139
      %v5246 = vpop.permute.xlu0 %5245
      %5249 = vset.pattern.permute.xlu0 0
      %5250 = vperm.xlu0 %5249, %v5140
      %v5251 = vpop.permute.xlu0 %5250
      %5254 = vset.pattern.permute.xlu0 0
      %5255 = vperm.xlu0 %5254, %v5141
      %v5256 = vpop.permute.xlu0 %5255
      %5259 = vset.pattern.permute.xlu0 0
      %5260 = vperm.xlu0 %5259, %v5142
      %v5261 = vpop.permute.xlu0 %5260
      %5264 = vset.pattern.permute.xlu0 0
      %5265 = vperm.xlu0 %5264, %v5143
      %v5266 = vpop.permute.xlu0 %5265
      %5269 = vset.pattern.permute.xlu0 0
      %5270 = vperm.xlu0 %5269, %v5144
      %v5271 = vpop.permute.xlu0 %5270
      %5274 = vset.pattern.permute.xlu0 0
      %5275 = vperm.xlu0 %5274, %v5145
      %v5276 = vpop.permute.xlu0 %5275
      %5279 = vset.pattern.permute.xlu0 0
      %5280 = vperm.xlu0 %5279, %v5146
      %v5281 = vpop.permute.xlu0 %5280
      %5284 = vset.pattern.permute.xlu0 0
      %5285 = vperm.xlu0 %5284, %v5147
      %v5286 = vpop.permute.xlu0 %5285
      %5289 = vset.pattern.permute.xlu0 0
      %5290 = vperm.xlu0 %5289, %v5148
      %v5291 = vpop.permute.xlu0 %5290
      %5294 = vset.pattern.permute.xlu0 0
      %5295 = vperm.xlu0 %5294, %v5149
      %v5296 = vpop.permute.xlu0 %5295
      %5299 = vset.pattern.permute.xlu0 0
      %5300 = vperm.xlu0 %5299, %v5150
      %v5301 = vpop.permute.xlu0 %5300
      %5304 = vset.pattern.permute.xlu0 0
      %5305 = vperm.xlu0 %5304, %v5151
      %v5306 = vpop.permute.xlu0 %5305
      %5309 = vset.pattern.permute.xlu0 0
      %5310 = vperm.xlu0 %5309, %v5152
      %v5311 = vpop.permute.xlu0 %5310
      %v5313 = vmul.f32 %v228, %v5156
      %v5314 = vmul.f32 %v229, %v5161
      %v5315 = vmul.f32 %v230, %v5166
      %v5316 = vmul.f32 %v231, %v5171
      %v5317 = vmul.f32 %v232, %v5176
      %v5318 = vmul.f32 %v233, %v5181
      %v5319 = vmul.f32 %v234, %v5186
      %v5320 = vmul.f32 %v235, %v5191
      %v5321 = vmul.f32 %v236, %v5196
      %v5322 = vmul.f32 %v237, %v5201
      %v5323 = vmul.f32 %v238, %v5206
      %v5324 = vmul.f32 %v239, %v5211
      %v5325 = vmul.f32 %v240, %v5216
      %v5326 = vmul.f32 %v241, %v5221
      %v5327 = vmul.f32 %v242, %v5226
      %v5328 = vmul.f32 %v243, %v5231
      %v5329 = vmul.f32 %v244, %v5236
      %v5330 = vmul.f32 %v245, %v5241
      %v5331 = vmul.f32 %v246, %v5246
      %v5332 = vmul.f32 %v247, %v5251
      %v5333 = vmul.f32 %v248, %v5256
      %v5334 = vmul.f32 %v249, %v5261
      %v5335 = vmul.f32 %v250, %v5266
      %v5336 = vmul.f32 %v251, %v5271
      %v5337 = vmul.f32 %v252, %v5276
      %v5338 = vmul.f32 %v253, %v5281
      %v5339 = vmul.f32 %v254, %v5286
      %v5340 = vmul.f32 %v255, %v5291
      %v5341 = vmul.f32 %v256, %v5296
      %v5342 = vmul.f32 %v257, %v5301
      %v5343 = vmul.f32 %v258, %v5306
      %v5344 = vmul.f32 %v259, %v5311
      %5345 = vst.msk [vmem:[%s226] sm:$0xff] %vm1510, %v5313
      %5346 = vst.msk [vmem:[%s226 + $0x8] sm:$0xff] %vm1510, %v5314
      %5347 = vst.msk [vmem:[%s226 + $0x10] sm:$0xff] %vm1510, %v5315
      %5348 = vst.msk [vmem:[%s226 + $0x18] sm:$0xff] %vm1510, %v5316
      %5349 = vst.msk [vmem:[%s226 + $0x20] sm:$0xff] %vm1510, %v5317
      %5350 = vst.msk [vmem:[%s226 + $0x28] sm:$0xff] %vm1510, %v5318
      %5351 = vst.msk [vmem:[%s226 + $0x30] sm:$0xff] %vm1510, %v5319
      %5352 = vst.msk [vmem:[%s226 + $0x38] sm:$0xff] %vm1510, %v5320
      %5353 = vst.msk [vmem:[%s226 + $0x40] sm:$0xff] %vm1510, %v5321
      %5354 = vst.msk [vmem:[%s226 + $0x48] sm:$0xff] %vm1510, %v5322
      %5355 = vst.msk [vmem:[%s226 + $0x50] sm:$0xff] %vm1510, %v5323
      %5356 = vst.msk [vmem:[%s226 + $0x58] sm:$0xff] %vm1510, %v5324
      %5357 = vst.msk [vmem:[%s226 + $0x60] sm:$0xff] %vm1510, %v5325
      %5358 = vst.msk [vmem:[%s226 + $0x68] sm:$0xff] %vm1510, %v5326
      %5359 = vst.msk [vmem:[%s226 + $0x70] sm:$0xff] %vm1510, %v5327
      %5360 = vst.msk [vmem:[%s226 + $0x78] sm:$0xff] %vm1510, %v5328
      %5361 = vst.msk [vmem:[%s226 + $0x80] sm:$0xff] %vm1510, %v5329
      %5362 = vst.msk [vmem:[%s226 + $0x88] sm:$0xff] %vm1510, %v5330
      %5363 = vst.msk [vmem:[%s226 + $0x90] sm:$0xff] %vm1510, %v5331
      %5364 = vst.msk [vmem:[%s226 + $0x98] sm:$0xff] %vm1510, %v5332
      %5365 = vst.msk [vmem:[%s226 + $0xa0] sm:$0xff] %vm1510, %v5333
      %5366 = vst.msk [vmem:[%s226 + $0xa8] sm:$0xff] %vm1510, %v5334
      %5367 = vst.msk [vmem:[%s226 + $0xb0] sm:$0xff] %vm1510, %v5335
      %5368 = vst.msk [vmem:[%s226 + $0xb8] sm:$0xff] %vm1510, %v5336
      %5369 = vst.msk [vmem:[%s226 + $0xc0] sm:$0xff] %vm1510, %v5337
      %5370 = vst.msk [vmem:[%s226 + $0xc8] sm:$0xff] %vm1510, %v5338
      %5371 = vst.msk [vmem:[%s226 + $0xd0] sm:$0xff] %vm1510, %v5339
      %5372 = vst.msk [vmem:[%s226 + $0xd8] sm:$0xff] %vm1510, %v5340
      %5373 = vst.msk [vmem:[%s226 + $0xe0] sm:$0xff] %vm1510, %v5341
      %5374 = vst.msk [vmem:[%s226 + $0xe8] sm:$0xff] %vm1510, %v5342
      %5375 = vst.msk [vmem:[%s226 + $0xf0] sm:$0xff] %vm1510, %v5343
      %5376 = vst.msk [vmem:[%s226 + $0xf8] sm:$0xff] %vm1510, %v5344
      %p5377 = scmp.lt.s32.totalorder %s18, 1
      %s5378 = scalar_select %p5377, %s18, 1
      %s5379 = smul.addr %s5378, 32
      %s5380 = smul.addr %s5379, 8
      %s5381 = scalar_lea.vmem %s5, %s5380
      // Predicated region
      $region41: #{context_aware_forward.1} parent=39 // pred_check
        %p5382 = pneg %p146
      $region42: #{context_aware_forward.1} parent=39 // pred_check_branch
        %5384 = sbr.rel (%p5382) target = $region44
      $region43: #{context_aware_forward.1} parent=39 // pred_region
        _
      $region44: #{context_aware_forward.1} parent=39 // pred_fallthru
        _
    $region40: #{context_aware_forward.1} parent=5 // pred_fallthru
      _
    %p5385 = scmp.le.s32.totalorder 2, %s13
    // Predicated region
    $region45: #{context_aware_forward.1} parent=5 // pred_check
      %p5386 = pneg %p5385
    $region46: #{context_aware_forward.1} parent=5 // pred_check_branch
      %5388 = sbr.rel (%p5386) target = $region48
    $region47: #{context_aware_forward.1} parent=5 // pred_region
      %s5389 = ssub.s32 %s13, 2
      // Predicated region
      $region49: #{context_aware_forward.1} parent=47 // pred_check
        %p5390 = pneg %p152
      $region50: #{context_aware_forward.1} parent=47 // pred_check_branch
        %5392 = sbr.rel (%p5390) target = $region52
      $region51: #{context_aware_forward.1} parent=47 // pred_region
        %p5393 = scmp.lt.s32.totalorder %s19, 1
        %s5394 = scalar_select %p5393, %s19, 1
        %s5395 = smul.addr %s5394, 32
        %s5396 = smul.addr %s5395, 8
        %s5397 = scalar_lea.vmem %s5, %s5396
      $region52: #{context_aware_forward.1} parent=47 // pred_fallthru
        _
    $region48: #{context_aware_forward.1} parent=5 // pred_fallthru
      _
  $region6: #{context_aware_forward.1} parent=0 // loop_footer
    %s17 = sadd.s32 1, %s13
  $region7: #{context_aware_forward.1} parent=0 // loop_footer_branch
    %12 = sbr.rel target = $region3
  $region8: #{context_aware_forward.1} parent=0 // loop_exit
    _

</llo_original>
